<compile_context>
chip_gen: v5e
topology: v5e:2x2
jax: 0.10.0
libtpu: 0.0.40
codegen_flags: <defaults>
</compile_context>

<pallas_src>
import functools

import jax
import jax.numpy as jnp
import numpy as np
from jax.experimental import pallas as pl
from jax.experimental.pallas import tpu as pltpu


def _layer_norm(x, gamma, beta, eps=1e-5):
    # PyTorch nn.LayerNorm semantics (biased variance, eps inside rsqrt).
    mu = jnp.mean(x, axis=-1, keepdims=True)
    var = jnp.mean((x - mu) ** 2, axis=-1, keepdims=True)
    return (x - mu) * jax.lax.rsqrt(var + eps) * gamma + beta


def _ple_trans_kernel(x_ref, res_w_ref, res_b_ref,
                      msh_ref, msp_ref, qmask_ref, hmask_ref, abias_ref,
                      win_ref, bin_ref, wout_ref, bout_ref,
                      g1_ref, b1n_ref, w1_ref, b1_ref, w2_ref, b2_ref,
                      g2_ref, b2n_ref, outw_ref, outb_ref,
                      o_ref, cls_scratch, *, num_heads):
    f32 = jnp.float32
    bf16 = jnp.bfloat16

    num_layers = win_ref.shape[0]
    d = win_ref.shape[1]
    nh = num_heads
    n = msh_ref.shape[0]            # B * (num_phase + 1)
    batch = o_ref.shape[0]
    seq = n // batch

    # ---- res_model stand-in -------------------------------------------------
    # TODO(synk): the real `_3d_resnet.resnet18` body is not provided; stand-in
    # is a mean-pool over the depth axis + a linear projection to embed_dim*8.
    pooled = jnp.mean(x_ref[...], axis=1)                           # (B*P, H*W)
    res_feat = jnp.dot(pooled.astype(bf16), res_w_ref[...],
                       preferred_element_type=f32) + res_b_ref[...]  # (B*P, 2d)

    # ---- share / specific token construction via bf16 mixing matmuls -------
    # tokens[b, 0]     = mean_p res_feat[b, p, :d]      (share)
    # tokens[b, 1 + p] = res_feat[b, p, d:]             (specific)
    res_left = res_feat[:, :d].astype(bf16)
    res_right = res_feat[:, d:].astype(bf16)
    tok = (jnp.dot(msh_ref[...], res_left, preferred_element_type=f32)
           + jnp.dot(msp_ref[...], res_right, preferred_element_type=f32))  # (n, d)

    qmask = qmask_ref[...]          # f32, per-head lanes hold 1/sqrt(dh)
    hmask = hmask_ref[...]          # bf16, per-head lanes hold 1.0
    abias = abias_ref[...]          # f32 block-diagonal batch bias

    # ---- transformer encoder stack (post-norm, ReLU, inference: no dropout) -
    for l in range(num_layers):
        x = tok                                                     # (n, d) f32
        xb = x.astype(bf16)

        qkv = jnp.dot(xb, win_ref[l],
                      preferred_element_type=f32) + bin_ref[l]      # (n, 3d)
        q = qkv[:, :d]
        k = qkv[:, d:2 * d]
        v = qkv[:, 2 * d:]

        # All heads at once: replicate q per head on the sublane axis (pure
        # copy, no MXU), zero the other heads' lanes and fold in the softmax
        # scale, so the score contraction is one full-width (K = d) matmul
        # covering every (head, query) pair.
        qs = (jnp.concatenate([q] * nh, axis=0) * qmask).astype(bf16)  # (nh*n, d)
        scores = jnp.einsum('rd,kd->rk', qs, k.astype(bf16),
                            preferred_element_type=f32)             # (nh*n, n)
        scores = scores + abias                                     # batch block-diag
        scores = scores - jnp.max(scores, axis=-1, keepdims=True)
        pexp = jnp.exp(scores)
        pexp = pexp * pl.reciprocal(jnp.sum(pexp, axis=-1, keepdims=True),
                                    approx=True)

        ctx = jnp.dot(pexp.astype(bf16), v.astype(bf16),
                      preferred_element_type=f32)                   # (nh*n, d)
        # keep each head's own lanes, then fold the nh sublane groups back to
        # (n, d) with plain adds -> heads concatenated in their lane positions.
        ctx = ctx * hmask
        folded = ctx[0:n]
        for hh in range(1, nh):
            folded = folded + ctx[hh * n:(hh + 1) * n]              # (n, d)

        attn = jnp.dot(folded.astype(bf16), wout_ref[l],
                       preferred_element_type=f32) + bout_ref[l]    # (n, d)

        y = _layer_norm(x + attn, g1_ref[l], b1n_ref[l])

        hid = jnp.maximum(
            jnp.dot(y.astype(bf16), w1_ref[l],
                    preferred_element_type=f32) + b1_ref[l], 0.0)   # (n, ff)
        ffo = jnp.dot(hid.astype(bf16), w2_ref[l],
                      preferred_element_type=f32) + b2_ref[l]       # (n, d)
        tok = _layer_norm(y + ffo, g2_ref[l], b2n_ref[l])

    # ---- classifier head: single K = seq*d matmul, lane-dense (128) output --
    # Flatten tokens to (B, seq*d) via static row/lane-slice stores into a
    # VMEM scratch (matches torch .view(b, -1) ordering: seq-major over d).
    for bi in range(batch):
        for si in range(seq):
            r = bi * seq + si
            cls_scratch[bi:bi + 1, si * d:(si + 1) * d] = tok[r:r + 1, :]
    tok2 = cls_scratch[...].astype(bf16)                            # (B, seq*d)
    o_ref[...] = jnp.dot(tok2, outw_ref[...],
                         preferred_element_type=f32) + outb_ref[...]


def init_params(key, *, embed_dim, num_phase, num_depth, num_classes, hw,
                num_classes_padded=128):
    del num_classes  # padded weight; wrapper slices logits back down
    d = embed_dim * 4
    feat_dim = embed_dim * 8
    ff = num_depth * embed_dim
    seq = num_phase + 1
    L = num_depth

    ks = jax.random.split(key, 6)

    def nrm(k, shape, dtype=jnp.bfloat16, s=0.02):
        return (s * jax.random.normal(k, shape, dtype=jnp.float32)).astype(dtype)

    return {
        'res_w': nrm(ks[0], (hw, feat_dim)),
        'res_b': jnp.zeros((1, feat_dim), jnp.float32),
        'win':   nrm(ks[1], (L, d, 3 * d)),          # W_in^T, stacked over layers
        'bin':   jnp.zeros((L, 1, 3 * d), jnp.float32),
        'wout':  nrm(ks[2], (L, d, d)),              # W_out^T
        'bout':  jnp.zeros((L, 1, d), jnp.float32),
        'g1':    jnp.ones((L, 1, d), jnp.float32),
        'b1n':   jnp.zeros((L, 1, d), jnp.float32),
        'w1':    nrm(ks[3], (L, d, ff)),             # linear1^T
        'b1':    jnp.zeros((L, 1, ff), jnp.float32),
        'w2':    nrm(ks[4], (L, ff, d)),             # linear2^T
        'b2':    jnp.zeros((L, 1, d), jnp.float32),
        'g2':    jnp.ones((L, 1, d), jnp.float32),
        'b2n':   jnp.zeros((L, 1, d), jnp.float32),
        # classifier: flattened ((num_phase+1)*d, C_pad), row index = s*d + j,
        # matching torch.flatten's (b, seq*d) ordering. Lanes padded to 128;
        # wrapper slices logits back to num_classes.
        'out_w': nrm(ks[5], (seq * d, num_classes_padded)),
        'out_b': jnp.zeros((1, num_classes_padded), jnp.float32),
    }


def ple_trans_forward(x, params, *, embed_dim, num_phase, num_depth, num_classes):
    b, p, s, h, w = x.shape
    d = embed_dim * 4
    seq = num_phase + 1
    n = b * seq
    nh = num_depth                      # nhead == depth in the PyTorch spec
    dh = d // nh
    scale = 1.0 / float(dh) ** 0.5
    c_pad = params['out_w'].shape[-1]

    x_flat = x.reshape(b * p, s, h * w).astype(jnp.float32)

    # --- static helper matrices (built once on host) -------------------------
    # share/specific token mixing (bf16: 0/1 and 1/p selector values)
    m_share = np.zeros((n, b * p), np.float32)
    m_spec = np.zeros((n, b * p), np.float32)
    for bi in range(b):
        for pi in range(p):
            m_share[bi * seq, bi * p + pi] = 1.0 / p
            m_spec[bi * seq + 1 + pi, bi * p + pi] = 1.0

    # head-stacked attention helpers (row index = head * n + token)
    qmask = np.zeros((nh * n, d), np.float32)        # per-head lanes = softmax scale
    hmask = np.zeros((nh * n, d), np.float32)        # per-head lanes = 1.0 (ctx fold)
    abias = np.full((nh * n, n), -1e30, np.float32)  # block-diag batch bias (f32!)
    for hh in range(nh):
        for i in range(n):
            r = hh * n + i
            qmask[r, hh * dh:(hh + 1) * dh] = scale
            hmask[r, hh * dh:(hh + 1) * dh] = 1.0
            bi = i // seq
            abias[r, bi * seq:(bi + 1) * seq] = 0.0

    kernel = functools.partial(_ple_trans_kernel, num_heads=nh)

    # Footprint (~1.5 MB weights + helpers + activations) fits default scoped
    # VMEM on v5e/v6e/v7x; no vmem_limit override needed.
    logits_pad = pl.pallas_call(
        kernel,
        out_shape=jax.ShapeDtypeStruct((b, c_pad), jnp.float32),
        scratch_shapes=[pltpu.VMEM((b, seq * d), jnp.float32)],
    )(x_flat, params['res_w'], params['res_b'],
      jnp.asarray(m_share, jnp.bfloat16), jnp.asarray(m_spec, jnp.bfloat16),
      jnp.asarray(qmask), jnp.asarray(hmask, jnp.bfloat16), jnp.asarray(abias),
      params['win'], params['bin'], params['wout'], params['bout'],
      params['g1'], params['b1n'], params['w1'], params['b1'],
      params['w2'], params['b2'], params['g2'], params['b2n'],
      params['out_w'], params['out_b'])

    return logits_pad[:, :num_classes]


if __name__ == "__main__":
    # x: (b, p, s, h, w) = (2, 3, 4, 8, 8); embed_dim=32 -> d_model=128,
    # num_depth=4 -> 4 layers, 4 heads, mlp_dim=128; num_classes=3.
    B, P, S, H, W = 2, 3, 4, 8, 8
    EMBED_DIM, NUM_DEPTH, NUM_CLASSES = 32, 4, 3

    key = jax.random.PRNGKey(0)
    kx, kp = jax.random.split(key)
    x = jax.random.normal(kx, (B, P, S, H, W), dtype=jnp.float32)
    params = init_params(kp, embed_dim=EMBED_DIM, num_phase=P,
                         num_depth=NUM_DEPTH, num_classes=NUM_CLASSES, hw=H * W)

    logits = ple_trans_forward(x, params, embed_dim=EMBED_DIM, num_phase=P,
                               num_depth=NUM_DEPTH, num_classes=NUM_CLASSES)
    jax.block_until_ready(logits)
    assert logits.shape == (B, NUM_CLASSES)
    print("KERNEL_OK")
</pallas_src>

<mosaic_0001>
module attributes {stable_mosaic.version = 11 : i64} {
  func.func @_ple_trans_kernel(%arg0: memref<6x4x64xf32, #tpu.memory_space<vmem>>, %arg1: memref<64x256xbf16, #tpu.memory_space<vmem>>, %arg2: memref<1x256xf32, #tpu.memory_space<vmem>>, %arg3: memref<8x6xbf16, #tpu.memory_space<vmem>>, %arg4: memref<8x6xbf16, #tpu.memory_space<vmem>>, %arg5: memref<32x128xf32, #tpu.memory_space<vmem>>, %arg6: memref<32x128xbf16, #tpu.memory_space<vmem>>, %arg7: memref<32x8xf32, #tpu.memory_space<vmem>>, %arg8: memref<4x128x384xbf16, #tpu.memory_space<vmem>>, %arg9: memref<4x1x384xf32, #tpu.memory_space<vmem>>, %arg10: memref<4x128x128xbf16, #tpu.memory_space<vmem>>, %arg11: memref<4x1x128xf32, #tpu.memory_space<vmem>>, %arg12: memref<4x1x128xf32, #tpu.memory_space<vmem>>, %arg13: memref<4x1x128xf32, #tpu.memory_space<vmem>>, %arg14: memref<4x128x128xbf16, #tpu.memory_space<vmem>>, %arg15: memref<4x1x128xf32, #tpu.memory_space<vmem>>, %arg16: memref<4x128x128xbf16, #tpu.memory_space<vmem>>, %arg17: memref<4x1x128xf32, #tpu.memory_space<vmem>>, %arg18: memref<4x1x128xf32, #tpu.memory_space<vmem>>, %arg19: memref<4x1x128xf32, #tpu.memory_space<vmem>>, %arg20: memref<512x128xbf16, #tpu.memory_space<vmem>>, %arg21: memref<1x128xf32, #tpu.memory_space<vmem>>, %arg22: memref<2x128xf32, #tpu.memory_space<vmem>>, %arg23: memref<2x512xf32, #tpu.memory_space<vmem>>) attributes {dimension_semantics = [], scalar_prefetch = 0 : i64, scratch_operands = 1 : i64, tpu.core_type = #tpu.core_type<tc>} {
    %c0 = arith.constant 0 : index
    %c0_0 = arith.constant 0 : index
    %c0_1 = arith.constant 0 : index
    %0 = vector.load %arg0[%c0, %c0_0, %c0_1] : memref<6x4x64xf32, #tpu.memory_space<vmem>>, vector<6x4x64xf32>
    %cst = arith.constant dense<0.000000e+00> : vector<6x64xf32>
    %1 = vector.multi_reduction <add>, %0, %cst [1] : vector<6x4x64xf32> to vector<6x64xf32>
    %cst_2 = arith.constant 4.000000e+00 : f32
    %2 = vector.broadcast %cst_2 : f32 to vector<6x64xf32>
    %3 = arith.divf %1, %2 : vector<6x64xf32>
    %4 = arith.truncf %3 : vector<6x64xf32> to vector<6x64xbf16>
    %c0_3 = arith.constant 0 : index
    %c0_4 = arith.constant 0 : index
    %5 = vector.load %arg1[%c0_3, %c0_4] : memref<64x256xbf16, #tpu.memory_space<vmem>>, vector<64x256xbf16>
    %cst_5 = arith.constant dense<0.000000e+00> : vector<6x256xf32>
    %6 = tpu.matmul %4, %5, %cst_5 {dimension_numbers = #tpu.dot_dimension_numbers<[1], [0], [0], [1], [0, 0, 1, 1], [], []>} : vector<6x64xbf16>, vector<64x256xbf16>, vector<6x256xf32> -> vector<6x256xf32>
    %c0_6 = arith.constant 0 : index
    %c0_7 = arith.constant 0 : index
    %7 = vector.load %arg2[%c0_6, %c0_7] : memref<1x256xf32, #tpu.memory_space<vmem>>, vector<1x256xf32>
    %8 = vector.broadcast %7 : vector<1x256xf32> to vector<6x256xf32>
    %9 = arith.addf %6, %8 : vector<6x256xf32>
    %10 = vector.extract_strided_slice %9 {offsets = [0, 0], sizes = [6, 128], strides = [1, 1]} : vector<6x256xf32> to vector<6x128xf32>
    %11 = arith.truncf %10 : vector<6x128xf32> to vector<6x128xbf16>
    %12 = vector.extract_strided_slice %9 {offsets = [0, 128], sizes = [6, 128], strides = [1, 1]} : vector<6x256xf32> to vector<6x128xf32>
    %13 = arith.truncf %12 : vector<6x128xf32> to vector<6x128xbf16>
    %c0_8 = arith.constant 0 : index
    %c0_9 = arith.constant 0 : index
    %14 = vector.load %arg3[%c0_8, %c0_9] : memref<8x6xbf16, #tpu.memory_space<vmem>>, vector<8x6xbf16>
    %cst_10 = arith.constant dense<0.000000e+00> : vector<8x128xf32>
    %15 = tpu.matmul %14, %11, %cst_10 {dimension_numbers = #tpu.dot_dimension_numbers<[1], [0], [0], [1], [0, 0, 1, 1], [], []>} : vector<8x6xbf16>, vector<6x128xbf16>, vector<8x128xf32> -> vector<8x128xf32>
    %c0_11 = arith.constant 0 : index
    %c0_12 = arith.constant 0 : index
    %16 = vector.load %arg4[%c0_11, %c0_12] : memref<8x6xbf16, #tpu.memory_space<vmem>>, vector<8x6xbf16>
    %cst_13 = arith.constant dense<0.000000e+00> : vector<8x128xf32>
    %17 = tpu.matmul %16, %13, %cst_13 {dimension_numbers = #tpu.dot_dimension_numbers<[1], [0], [0], [1], [0, 0, 1, 1], [], []>} : vector<8x6xbf16>, vector<6x128xbf16>, vector<8x128xf32> -> vector<8x128xf32>
    %18 = arith.addf %15, %17 : vector<8x128xf32>
    %c0_14 = arith.constant 0 : index
    %c0_15 = arith.constant 0 : index
    %19 = vector.load %arg5[%c0_14, %c0_15] : memref<32x128xf32, #tpu.memory_space<vmem>>, vector<32x128xf32>
    %c0_16 = arith.constant 0 : index
    %c0_17 = arith.constant 0 : index
    %20 = vector.load %arg6[%c0_16, %c0_17] : memref<32x128xbf16, #tpu.memory_space<vmem>>, vector<32x128xbf16>
    %c0_18 = arith.constant 0 : index
    %c0_19 = arith.constant 0 : index
    %21 = vector.load %arg7[%c0_18, %c0_19] : memref<32x8xf32, #tpu.memory_space<vmem>>, vector<32x8xf32>
    %22 = arith.truncf %18 : vector<8x128xf32> to vector<8x128xbf16>
    %c0_20 = arith.constant 0 : index
    %c0_21 = arith.constant 0 : index
    %c0_22 = arith.constant 0 : index
    %23 = vector.load %arg8[%c0_20, %c0_21, %c0_22] : memref<4x128x384xbf16, #tpu.memory_space<vmem>>, vector<1x128x384xbf16>
    %24 = vector.shape_cast %23 : vector<1x128x384xbf16> to vector<128x384xbf16>
    %cst_23 = arith.constant dense<0.000000e+00> : vector<8x384xf32>
    %25 = tpu.matmul %22, %24, %cst_23 {dimension_numbers = #tpu.dot_dimension_numbers<[1], [0], [0], [1], [0, 0, 1, 1], [], []>} : vector<8x128xbf16>, vector<128x384xbf16>, vector<8x384xf32> -> vector<8x384xf32>
    %c0_24 = arith.constant 0 : index
    %c0_25 = arith.constant 0 : index
    %c0_26 = arith.constant 0 : index
    %26 = vector.load %arg9[%c0_24, %c0_25, %c0_26] : memref<4x1x384xf32, #tpu.memory_space<vmem>>, vector<1x1x384xf32>
    %27 = vector.shape_cast %26 : vector<1x1x384xf32> to vector<1x384xf32>
    %28 = vector.broadcast %27 : vector<1x384xf32> to vector<8x384xf32>
    %29 = arith.addf %25, %28 : vector<8x384xf32>
    %30 = vector.extract_strided_slice %29 {offsets = [0, 0], sizes = [8, 128], strides = [1, 1]} : vector<8x384xf32> to vector<8x128xf32>
    %31 = vector.extract_strided_slice %29 {offsets = [0, 128], sizes = [8, 128], strides = [1, 1]} : vector<8x384xf32> to vector<8x128xf32>
    %32 = vector.extract_strided_slice %29 {offsets = [0, 256], sizes = [8, 128], strides = [1, 1]} : vector<8x384xf32> to vector<8x128xf32>
    %33 = tpu.concatenate %30, %30, %30, %30 in 0 : vector<8x128xf32>, vector<8x128xf32>, vector<8x128xf32>, vector<8x128xf32> -> vector<32x128xf32>
    %34 = arith.mulf %33, %19 : vector<32x128xf32>
    %35 = arith.truncf %34 : vector<32x128xf32> to vector<32x128xbf16>
    %36 = arith.truncf %31 : vector<8x128xf32> to vector<8x128xbf16>
    "tpu.trace_start"() <{level = 10 : i32, message = "rd,kd->rk"}> : () -> ()
    %cst_27 = arith.constant dense<0.000000e+00> : vector<32x8xf32>
    %37 = tpu.matmul %35, %36, %cst_27 {dimension_numbers = #tpu.dot_dimension_numbers<[1], [1], [0], [0], [0, 0, 1, 0], [], []>} : vector<32x128xbf16>, vector<8x128xbf16>, vector<32x8xf32> -> vector<32x8xf32>
    "tpu.trace_stop"() : () -> ()
    %38 = arith.addf %37, %21 : vector<32x8xf32>
    %cst_28 = arith.constant dense<0xFF800000> : vector<32xf32>
    %39 = vector.multi_reduction <maximumf>, %38, %cst_28 [1] : vector<32x8xf32> to vector<32xf32>
    %40 = vector.shape_cast %39 : vector<32xf32> to vector<32x1xf32>
    %41 = vector.broadcast %40 : vector<32x1xf32> to vector<32x8xf32>
    %42 = arith.subf %38, %41 : vector<32x8xf32>
    %43 = math.exp %42 : vector<32x8xf32>
    %cst_29 = arith.constant dense<0.000000e+00> : vector<32xf32>
    %44 = vector.multi_reduction <add>, %43, %cst_29 [1] : vector<32x8xf32> to vector<32xf32>
    %45 = vector.shape_cast %44 : vector<32xf32> to vector<32x1xf32>
    %46 = tpu.reciprocal %45 {approx = true} : vector<32x1xf32> -> vector<32x1xf32>
    %47 = vector.broadcast %46 : vector<32x1xf32> to vector<32x8xf32>
    %48 = arith.mulf %43, %47 : vector<32x8xf32>
    %49 = arith.truncf %48 : vector<32x8xf32> to vector<32x8xbf16>
    %50 = arith.truncf %32 : vector<8x128xf32> to vector<8x128xbf16>
    %cst_30 = arith.constant dense<0.000000e+00> : vector<32x128xf32>
    %51 = tpu.matmul %49, %50, %cst_30 {dimension_numbers = #tpu.dot_dimension_numbers<[1], [0], [0], [1], [0, 0, 1, 1], [], []>} : vector<32x8xbf16>, vector<8x128xbf16>, vector<32x128xf32> -> vector<32x128xf32>
    %52 = arith.extf %20 : vector<32x128xbf16> to vector<32x128xf32>
    %53 = arith.mulf %51, %52 : vector<32x128xf32>
    %54 = vector.extract_strided_slice %53 {offsets = [0, 0], sizes = [8, 128], strides = [1, 1]} : vector<32x128xf32> to vector<8x128xf32>
    %55 = vector.extract_strided_slice %53 {offsets = [8, 0], sizes = [8, 128], strides = [1, 1]} : vector<32x128xf32> to vector<8x128xf32>
    %56 = arith.addf %54, %55 : vector<8x128xf32>
    %57 = vector.extract_strided_slice %53 {offsets = [16, 0], sizes = [8, 128], strides = [1, 1]} : vector<32x128xf32> to vector<8x128xf32>
    %58 = arith.addf %56, %57 : vector<8x128xf32>
    %59 = vector.extract_strided_slice %53 {offsets = [24, 0], sizes = [8, 128], strides = [1, 1]} : vector<32x128xf32> to vector<8x128xf32>
    %60 = arith.addf %58, %59 : vector<8x128xf32>
    %61 = arith.truncf %60 : vector<8x128xf32> to vector<8x128xbf16>
    %c0_31 = arith.constant 0 : index
    %c0_32 = arith.constant 0 : index
    %c0_33 = arith.constant 0 : index
    %62 = vector.load %arg10[%c0_31, %c0_32, %c0_33] : memref<4x128x128xbf16, #tpu.memory_space<vmem>>, vector<1x128x128xbf16>
    %63 = vector.shape_cast %62 : vector<1x128x128xbf16> to vector<128x128xbf16>
    %cst_34 = arith.constant dense<0.000000e+00> : vector<8x128xf32>
    %64 = tpu.matmul %61, %63, %cst_34 {dimension_numbers = #tpu.dot_dimension_numbers<[1], [0], [0], [1], [0, 0, 1, 1], [], []>} : vector<8x128xbf16>, vector<128x128xbf16>, vector<8x128xf32> -> vector<8x128xf32>
    %c0_35 = arith.constant 0 : index
    %c0_36 = arith.constant 0 : index
    %c0_37 = arith.constant 0 : index
    %65 = vector.load %arg11[%c0_35, %c0_36, %c0_37] : memref<4x1x128xf32, #tpu.memory_space<vmem>>, vector<1x1x128xf32>
    %66 = vector.shape_cast %65 : vector<1x1x128xf32> to vector<1x128xf32>
    %67 = vector.broadcast %66 : vector<1x128xf32> to vector<8x128xf32>
    %68 = arith.addf %64, %67 : vector<8x128xf32>
    %69 = arith.addf %18, %68 : vector<8x128xf32>
    %c0_38 = arith.constant 0 : index
    %c0_39 = arith.constant 0 : index
    %c0_40 = arith.constant 0 : index
    %70 = vector.load %arg12[%c0_38, %c0_39, %c0_40] : memref<4x1x128xf32, #tpu.memory_space<vmem>>, vector<1x1x128xf32>
    %71 = vector.shape_cast %70 : vector<1x1x128xf32> to vector<1x128xf32>
    %c0_41 = arith.constant 0 : index
    %c0_42 = arith.constant 0 : index
    %c0_43 = arith.constant 0 : index
    %72 = vector.load %arg13[%c0_41, %c0_42, %c0_43] : memref<4x1x128xf32, #tpu.memory_space<vmem>>, vector<1x1x128xf32>
    %73 = vector.shape_cast %72 : vector<1x1x128xf32> to vector<1x128xf32>
    %cst_44 = arith.constant dense<0.000000e+00> : vector<8xf32>
    %74 = vector.multi_reduction <add>, %69, %cst_44 [1] : vector<8x128xf32> to vector<8xf32>
    %75 = vector.shape_cast %74 : vector<8xf32> to vector<8x1xf32>
    %cst_45 = arith.constant 1.280000e+02 : f32
    %76 = vector.broadcast %cst_45 : f32 to vector<8x1xf32>
    %77 = arith.divf %75, %76 : vector<8x1xf32>
    %78 = vector.broadcast %77 : vector<8x1xf32> to vector<8x128xf32>
    %79 = arith.subf %69, %78 : vector<8x128xf32>
    %80 = arith.mulf %79, %79 : vector<8x128xf32>
    %cst_46 = arith.constant dense<0.000000e+00> : vector<8xf32>
    %81 = vector.multi_reduction <add>, %80, %cst_46 [1] : vector<8x128xf32> to vector<8xf32>
    %82 = vector.shape_cast %81 : vector<8xf32> to vector<8x1xf32>
    %cst_47 = arith.constant 1.280000e+02 : f32
    %83 = vector.broadcast %cst_47 : f32 to vector<8x1xf32>
    %84 = arith.divf %82, %83 : vector<8x1xf32>
    %85 = vector.broadcast %77 : vector<8x1xf32> to vector<8x128xf32>
    %86 = arith.subf %69, %85 : vector<8x128xf32>
    %cst_48 = arith.constant 9.99999974E-6 : f32
    %87 = vector.broadcast %cst_48 : f32 to vector<8x1xf32>
    %88 = arith.addf %84, %87 : vector<8x1xf32>
    %89 = math.rsqrt %88 : vector<8x1xf32>
    %90 = vector.broadcast %89 : vector<8x1xf32> to vector<8x128xf32>
    %91 = arith.mulf %86, %90 : vector<8x128xf32>
    %92 = vector.broadcast %71 : vector<1x128xf32> to vector<8x128xf32>
    %93 = arith.mulf %91, %92 : vector<8x128xf32>
    %94 = vector.broadcast %73 : vector<1x128xf32> to vector<8x128xf32>
    %95 = arith.addf %93, %94 : vector<8x128xf32>
    %96 = arith.truncf %95 : vector<8x128xf32> to vector<8x128xbf16>
    %c0_49 = arith.constant 0 : index
    %c0_50 = arith.constant 0 : index
    %c0_51 = arith.constant 0 : index
    %97 = vector.load %arg14[%c0_49, %c0_50, %c0_51] : memref<4x128x128xbf16, #tpu.memory_space<vmem>>, vector<1x128x128xbf16>
    %98 = vector.shape_cast %97 : vector<1x128x128xbf16> to vector<128x128xbf16>
    %cst_52 = arith.constant dense<0.000000e+00> : vector<8x128xf32>
    %99 = tpu.matmul %96, %98, %cst_52 {dimension_numbers = #tpu.dot_dimension_numbers<[1], [0], [0], [1], [0, 0, 1, 1], [], []>} : vector<8x128xbf16>, vector<128x128xbf16>, vector<8x128xf32> -> vector<8x128xf32>
    %c0_53 = arith.constant 0 : index
    %c0_54 = arith.constant 0 : index
    %c0_55 = arith.constant 0 : index
    %100 = vector.load %arg15[%c0_53, %c0_54, %c0_55] : memref<4x1x128xf32, #tpu.memory_space<vmem>>, vector<1x1x128xf32>
    %101 = vector.shape_cast %100 : vector<1x1x128xf32> to vector<1x128xf32>
    %102 = vector.broadcast %101 : vector<1x128xf32> to vector<8x128xf32>
    %103 = arith.addf %99, %102 : vector<8x128xf32>
    %cst_56 = arith.constant 0.000000e+00 : f32
    %104 = vector.broadcast %cst_56 : f32 to vector<8x128xf32>
    %105 = arith.maximumf %103, %104 : vector<8x128xf32>
    %106 = arith.truncf %105 : vector<8x128xf32> to vector<8x128xbf16>
    %c0_57 = arith.constant 0 : index
    %c0_58 = arith.constant 0 : index
    %c0_59 = arith.constant 0 : index
    %107 = vector.load %arg16[%c0_57, %c0_58, %c0_59] : memref<4x128x128xbf16, #tpu.memory_space<vmem>>, vector<1x128x128xbf16>
    %108 = vector.shape_cast %107 : vector<1x128x128xbf16> to vector<128x128xbf16>
    %cst_60 = arith.constant dense<0.000000e+00> : vector<8x128xf32>
    %109 = tpu.matmul %106, %108, %cst_60 {dimension_numbers = #tpu.dot_dimension_numbers<[1], [0], [0], [1], [0, 0, 1, 1], [], []>} : vector<8x128xbf16>, vector<128x128xbf16>, vector<8x128xf32> -> vector<8x128xf32>
    %c0_61 = arith.constant 0 : index
    %c0_62 = arith.constant 0 : index
    %c0_63 = arith.constant 0 : index
    %110 = vector.load %arg17[%c0_61, %c0_62, %c0_63] : memref<4x1x128xf32, #tpu.memory_space<vmem>>, vector<1x1x128xf32>
    %111 = vector.shape_cast %110 : vector<1x1x128xf32> to vector<1x128xf32>
    %112 = vector.broadcast %111 : vector<1x128xf32> to vector<8x128xf32>
    %113 = arith.addf %109, %112 : vector<8x128xf32>
    %114 = arith.addf %95, %113 : vector<8x128xf32>
    %c0_64 = arith.constant 0 : index
    %c0_65 = arith.constant 0 : index
    %c0_66 = arith.constant 0 : index
    %115 = vector.load %arg18[%c0_64, %c0_65, %c0_66] : memref<4x1x128xf32, #tpu.memory_space<vmem>>, vector<1x1x128xf32>
    %116 = vector.shape_cast %115 : vector<1x1x128xf32> to vector<1x128xf32>
    %c0_67 = arith.constant 0 : index
    %c0_68 = arith.constant 0 : index
    %c0_69 = arith.constant 0 : index
    %117 = vector.load %arg19[%c0_67, %c0_68, %c0_69] : memref<4x1x128xf32, #tpu.memory_space<vmem>>, vector<1x1x128xf32>
    %118 = vector.shape_cast %117 : vector<1x1x128xf32> to vector<1x128xf32>
    %cst_70 = arith.constant dense<0.000000e+00> : vector<8xf32>
    %119 = vector.multi_reduction <add>, %114, %cst_70 [1] : vector<8x128xf32> to vector<8xf32>
    %120 = vector.shape_cast %119 : vector<8xf32> to vector<8x1xf32>
    %cst_71 = arith.constant 1.280000e+02 : f32
    %121 = vector.broadcast %cst_71 : f32 to vector<8x1xf32>
    %122 = arith.divf %120, %121 : vector<8x1xf32>
    %123 = vector.broadcast %122 : vector<8x1xf32> to vector<8x128xf32>
    %124 = arith.subf %114, %123 : vector<8x128xf32>
    %125 = arith.mulf %124, %124 : vector<8x128xf32>
    %cst_72 = arith.constant dense<0.000000e+00> : vector<8xf32>
    %126 = vector.multi_reduction <add>, %125, %cst_72 [1] : vector<8x128xf32> to vector<8xf32>
    %127 = vector.shape_cast %126 : vector<8xf32> to vector<8x1xf32>
    %cst_73 = arith.constant 1.280000e+02 : f32
    %128 = vector.broadcast %cst_73 : f32 to vector<8x1xf32>
    %129 = arith.divf %127, %128 : vector<8x1xf32>
    %130 = vector.broadcast %122 : vector<8x1xf32> to vector<8x128xf32>
    %131 = arith.subf %114, %130 : vector<8x128xf32>
    %cst_74 = arith.constant 9.99999974E-6 : f32
    %132 = vector.broadcast %cst_74 : f32 to vector<8x1xf32>
    %133 = arith.addf %129, %132 : vector<8x1xf32>
    %134 = math.rsqrt %133 : vector<8x1xf32>
    %135 = vector.broadcast %134 : vector<8x1xf32> to vector<8x128xf32>
    %136 = arith.mulf %131, %135 : vector<8x128xf32>
    %137 = vector.broadcast %116 : vector<1x128xf32> to vector<8x128xf32>
    %138 = arith.mulf %136, %137 : vector<8x128xf32>
    %139 = vector.broadcast %118 : vector<1x128xf32> to vector<8x128xf32>
    %140 = arith.addf %138, %139 : vector<8x128xf32>
    %141 = arith.truncf %140 : vector<8x128xf32> to vector<8x128xbf16>
    %c1 = arith.constant 1 : index
    %c0_75 = arith.constant 0 : index
    %c0_76 = arith.constant 0 : index
    %142 = vector.load %arg8[%c1, %c0_75, %c0_76] : memref<4x128x384xbf16, #tpu.memory_space<vmem>>, vector<1x128x384xbf16>
    %143 = vector.shape_cast %142 : vector<1x128x384xbf16> to vector<128x384xbf16>
    %cst_77 = arith.constant dense<0.000000e+00> : vector<8x384xf32>
    %144 = tpu.matmul %141, %143, %cst_77 {dimension_numbers = #tpu.dot_dimension_numbers<[1], [0], [0], [1], [0, 0, 1, 1], [], []>} : vector<8x128xbf16>, vector<128x384xbf16>, vector<8x384xf32> -> vector<8x384xf32>
    %c1_78 = arith.constant 1 : index
    %c0_79 = arith.constant 0 : index
    %c0_80 = arith.constant 0 : index
    %145 = vector.load %arg9[%c1_78, %c0_79, %c0_80] : memref<4x1x384xf32, #tpu.memory_space<vmem>>, vector<1x1x384xf32>
    %146 = vector.shape_cast %145 : vector<1x1x384xf32> to vector<1x384xf32>
    %147 = vector.broadcast %146 : vector<1x384xf32> to vector<8x384xf32>
    %148 = arith.addf %144, %147 : vector<8x384xf32>
    %149 = vector.extract_strided_slice %148 {offsets = [0, 0], sizes = [8, 128], strides = [1, 1]} : vector<8x384xf32> to vector<8x128xf32>
    %150 = vector.extract_strided_slice %148 {offsets = [0, 128], sizes = [8, 128], strides = [1, 1]} : vector<8x384xf32> to vector<8x128xf32>
    %151 = vector.extract_strided_slice %148 {offsets = [0, 256], sizes = [8, 128], strides = [1, 1]} : vector<8x384xf32> to vector<8x128xf32>
    %152 = tpu.concatenate %149, %149, %149, %149 in 0 : vector<8x128xf32>, vector<8x128xf32>, vector<8x128xf32>, vector<8x128xf32> -> vector<32x128xf32>
    %153 = arith.mulf %152, %19 : vector<32x128xf32>
    %154 = arith.truncf %153 : vector<32x128xf32> to vector<32x128xbf16>
    %155 = arith.truncf %150 : vector<8x128xf32> to vector<8x128xbf16>
    "tpu.trace_start"() <{level = 10 : i32, message = "rd,kd->rk"}> : () -> ()
    %cst_81 = arith.constant dense<0.000000e+00> : vector<32x8xf32>
    %156 = tpu.matmul %154, %155, %cst_81 {dimension_numbers = #tpu.dot_dimension_numbers<[1], [1], [0], [0], [0, 0, 1, 0], [], []>} : vector<32x128xbf16>, vector<8x128xbf16>, vector<32x8xf32> -> vector<32x8xf32>
    "tpu.trace_stop"() : () -> ()
    %157 = arith.addf %156, %21 : vector<32x8xf32>
    %cst_82 = arith.constant dense<0xFF800000> : vector<32xf32>
    %158 = vector.multi_reduction <maximumf>, %157, %cst_82 [1] : vector<32x8xf32> to vector<32xf32>
    %159 = vector.shape_cast %158 : vector<32xf32> to vector<32x1xf32>
    %160 = vector.broadcast %159 : vector<32x1xf32> to vector<32x8xf32>
    %161 = arith.subf %157, %160 : vector<32x8xf32>
    %162 = math.exp %161 : vector<32x8xf32>
    %cst_83 = arith.constant dense<0.000000e+00> : vector<32xf32>
    %163 = vector.multi_reduction <add>, %162, %cst_83 [1] : vector<32x8xf32> to vector<32xf32>
    %164 = vector.shape_cast %163 : vector<32xf32> to vector<32x1xf32>
    %165 = tpu.reciprocal %164 {approx = true} : vector<32x1xf32> -> vector<32x1xf32>
    %166 = vector.broadcast %165 : vector<32x1xf32> to vector<32x8xf32>
    %167 = arith.mulf %162, %166 : vector<32x8xf32>
    %168 = arith.truncf %167 : vector<32x8xf32> to vector<32x8xbf16>
    %169 = arith.truncf %151 : vector<8x128xf32> to vector<8x128xbf16>
    %cst_84 = arith.constant dense<0.000000e+00> : vector<32x128xf32>
    %170 = tpu.matmul %168, %169, %cst_84 {dimension_numbers = #tpu.dot_dimension_numbers<[1], [0], [0], [1], [0, 0, 1, 1], [], []>} : vector<32x8xbf16>, vector<8x128xbf16>, vector<32x128xf32> -> vector<32x128xf32>
    %171 = arith.extf %20 : vector<32x128xbf16> to vector<32x128xf32>
    %172 = arith.mulf %170, %171 : vector<32x128xf32>
    %173 = vector.extract_strided_slice %172 {offsets = [0, 0], sizes = [8, 128], strides = [1, 1]} : vector<32x128xf32> to vector<8x128xf32>
    %174 = vector.extract_strided_slice %172 {offsets = [8, 0], sizes = [8, 128], strides = [1, 1]} : vector<32x128xf32> to vector<8x128xf32>
    %175 = arith.addf %173, %174 : vector<8x128xf32>
    %176 = vector.extract_strided_slice %172 {offsets = [16, 0], sizes = [8, 128], strides = [1, 1]} : vector<32x128xf32> to vector<8x128xf32>
    %177 = arith.addf %175, %176 : vector<8x128xf32>
    %178 = vector.extract_strided_slice %172 {offsets = [24, 0], sizes = [8, 128], strides = [1, 1]} : vector<32x128xf32> to vector<8x128xf32>
    %179 = arith.addf %177, %178 : vector<8x128xf32>
    %180 = arith.truncf %179 : vector<8x128xf32> to vector<8x128xbf16>
    %c1_85 = arith.constant 1 : index
    %c0_86 = arith.constant 0 : index
    %c0_87 = arith.constant 0 : index
    %181 = vector.load %arg10[%c1_85, %c0_86, %c0_87] : memref<4x128x128xbf16, #tpu.memory_space<vmem>>, vector<1x128x128xbf16>
    %182 = vector.shape_cast %181 : vector<1x128x128xbf16> to vector<128x128xbf16>
    %cst_88 = arith.constant dense<0.000000e+00> : vector<8x128xf32>
    %183 = tpu.matmul %180, %182, %cst_88 {dimension_numbers = #tpu.dot_dimension_numbers<[1], [0], [0], [1], [0, 0, 1, 1], [], []>} : vector<8x128xbf16>, vector<128x128xbf16>, vector<8x128xf32> -> vector<8x128xf32>
    %c1_89 = arith.constant 1 : index
    %c0_90 = arith.constant 0 : index
    %c0_91 = arith.constant 0 : index
    %184 = vector.load %arg11[%c1_89, %c0_90, %c0_91] : memref<4x1x128xf32, #tpu.memory_space<vmem>>, vector<1x1x128xf32>
    %185 = vector.shape_cast %184 : vector<1x1x128xf32> to vector<1x128xf32>
    %186 = vector.broadcast %185 : vector<1x128xf32> to vector<8x128xf32>
    %187 = arith.addf %183, %186 : vector<8x128xf32>
    %188 = arith.addf %140, %187 : vector<8x128xf32>
    %c1_92 = arith.constant 1 : index
    %c0_93 = arith.constant 0 : index
    %c0_94 = arith.constant 0 : index
    %189 = vector.load %arg12[%c1_92, %c0_93, %c0_94] : memref<4x1x128xf32, #tpu.memory_space<vmem>>, vector<1x1x128xf32>
    %190 = vector.shape_cast %189 : vector<1x1x128xf32> to vector<1x128xf32>
    %c1_95 = arith.constant 1 : index
    %c0_96 = arith.constant 0 : index
    %c0_97 = arith.constant 0 : index
    %191 = vector.load %arg13[%c1_95, %c0_96, %c0_97] : memref<4x1x128xf32, #tpu.memory_space<vmem>>, vector<1x1x128xf32>
    %192 = vector.shape_cast %191 : vector<1x1x128xf32> to vector<1x128xf32>
    %cst_98 = arith.constant dense<0.000000e+00> : vector<8xf32>
    %193 = vector.multi_reduction <add>, %188, %cst_98 [1] : vector<8x128xf32> to vector<8xf32>
    %194 = vector.shape_cast %193 : vector<8xf32> to vector<8x1xf32>
    %cst_99 = arith.constant 1.280000e+02 : f32
    %195 = vector.broadcast %cst_99 : f32 to vector<8x1xf32>
    %196 = arith.divf %194, %195 : vector<8x1xf32>
    %197 = vector.broadcast %196 : vector<8x1xf32> to vector<8x128xf32>
    %198 = arith.subf %188, %197 : vector<8x128xf32>
    %199 = arith.mulf %198, %198 : vector<8x128xf32>
    %cst_100 = arith.constant dense<0.000000e+00> : vector<8xf32>
    %200 = vector.multi_reduction <add>, %199, %cst_100 [1] : vector<8x128xf32> to vector<8xf32>
    %201 = vector.shape_cast %200 : vector<8xf32> to vector<8x1xf32>
    %cst_101 = arith.constant 1.280000e+02 : f32
    %202 = vector.broadcast %cst_101 : f32 to vector<8x1xf32>
    %203 = arith.divf %201, %202 : vector<8x1xf32>
    %204 = vector.broadcast %196 : vector<8x1xf32> to vector<8x128xf32>
    %205 = arith.subf %188, %204 : vector<8x128xf32>
    %cst_102 = arith.constant 9.99999974E-6 : f32
    %206 = vector.broadcast %cst_102 : f32 to vector<8x1xf32>
    %207 = arith.addf %203, %206 : vector<8x1xf32>
    %208 = math.rsqrt %207 : vector<8x1xf32>
    %209 = vector.broadcast %208 : vector<8x1xf32> to vector<8x128xf32>
    %210 = arith.mulf %205, %209 : vector<8x128xf32>
    %211 = vector.broadcast %190 : vector<1x128xf32> to vector<8x128xf32>
    %212 = arith.mulf %210, %211 : vector<8x128xf32>
    %213 = vector.broadcast %192 : vector<1x128xf32> to vector<8x128xf32>
    %214 = arith.addf %212, %213 : vector<8x128xf32>
    %215 = arith.truncf %214 : vector<8x128xf32> to vector<8x128xbf16>
    %c1_103 = arith.constant 1 : index
    %c0_104 = arith.constant 0 : index
    %c0_105 = arith.constant 0 : index
    %216 = vector.load %arg14[%c1_103, %c0_104, %c0_105] : memref<4x128x128xbf16, #tpu.memory_space<vmem>>, vector<1x128x128xbf16>
    %217 = vector.shape_cast %216 : vector<1x128x128xbf16> to vector<128x128xbf16>
    %cst_106 = arith.constant dense<0.000000e+00> : vector<8x128xf32>
    %218 = tpu.matmul %215, %217, %cst_106 {dimension_numbers = #tpu.dot_dimension_numbers<[1], [0], [0], [1], [0, 0, 1, 1], [], []>} : vector<8x128xbf16>, vector<128x128xbf16>, vector<8x128xf32> -> vector<8x128xf32>
    %c1_107 = arith.constant 1 : index
    %c0_108 = arith.constant 0 : index
    %c0_109 = arith.constant 0 : index
    %219 = vector.load %arg15[%c1_107, %c0_108, %c0_109] : memref<4x1x128xf32, #tpu.memory_space<vmem>>, vector<1x1x128xf32>
    %220 = vector.shape_cast %219 : vector<1x1x128xf32> to vector<1x128xf32>
    %221 = vector.broadcast %220 : vector<1x128xf32> to vector<8x128xf32>
    %222 = arith.addf %218, %221 : vector<8x128xf32>
    %cst_110 = arith.constant 0.000000e+00 : f32
    %223 = vector.broadcast %cst_110 : f32 to vector<8x128xf32>
    %224 = arith.maximumf %222, %223 : vector<8x128xf32>
    %225 = arith.truncf %224 : vector<8x128xf32> to vector<8x128xbf16>
    %c1_111 = arith.constant 1 : index
    %c0_112 = arith.constant 0 : index
    %c0_113 = arith.constant 0 : index
    %226 = vector.load %arg16[%c1_111, %c0_112, %c0_113] : memref<4x128x128xbf16, #tpu.memory_space<vmem>>, vector<1x128x128xbf16>
    %227 = vector.shape_cast %226 : vector<1x128x128xbf16> to vector<128x128xbf16>
    %cst_114 = arith.constant dense<0.000000e+00> : vector<8x128xf32>
    %228 = tpu.matmul %225, %227, %cst_114 {dimension_numbers = #tpu.dot_dimension_numbers<[1], [0], [0], [1], [0, 0, 1, 1], [], []>} : vector<8x128xbf16>, vector<128x128xbf16>, vector<8x128xf32> -> vector<8x128xf32>
    %c1_115 = arith.constant 1 : index
    %c0_116 = arith.constant 0 : index
    %c0_117 = arith.constant 0 : index
    %229 = vector.load %arg17[%c1_115, %c0_116, %c0_117] : memref<4x1x128xf32, #tpu.memory_space<vmem>>, vector<1x1x128xf32>
    %230 = vector.shape_cast %229 : vector<1x1x128xf32> to vector<1x128xf32>
    %231 = vector.broadcast %230 : vector<1x128xf32> to vector<8x128xf32>
    %232 = arith.addf %228, %231 : vector<8x128xf32>
    %233 = arith.addf %214, %232 : vector<8x128xf32>
    %c1_118 = arith.constant 1 : index
    %c0_119 = arith.constant 0 : index
    %c0_120 = arith.constant 0 : index
    %234 = vector.load %arg18[%c1_118, %c0_119, %c0_120] : memref<4x1x128xf32, #tpu.memory_space<vmem>>, vector<1x1x128xf32>
    %235 = vector.shape_cast %234 : vector<1x1x128xf32> to vector<1x128xf32>
    %c1_121 = arith.constant 1 : index
    %c0_122 = arith.constant 0 : index
    %c0_123 = arith.constant 0 : index
    %236 = vector.load %arg19[%c1_121, %c0_122, %c0_123] : memref<4x1x128xf32, #tpu.memory_space<vmem>>, vector<1x1x128xf32>
    %237 = vector.shape_cast %236 : vector<1x1x128xf32> to vector<1x128xf32>
    %cst_124 = arith.constant dense<0.000000e+00> : vector<8xf32>
    %238 = vector.multi_reduction <add>, %233, %cst_124 [1] : vector<8x128xf32> to vector<8xf32>
    %239 = vector.shape_cast %238 : vector<8xf32> to vector<8x1xf32>
    %cst_125 = arith.constant 1.280000e+02 : f32
    %240 = vector.broadcast %cst_125 : f32 to vector<8x1xf32>
    %241 = arith.divf %239, %240 : vector<8x1xf32>
    %242 = vector.broadcast %241 : vector<8x1xf32> to vector<8x128xf32>
    %243 = arith.subf %233, %242 : vector<8x128xf32>
    %244 = arith.mulf %243, %243 : vector<8x128xf32>
    %cst_126 = arith.constant dense<0.000000e+00> : vector<8xf32>
    %245 = vector.multi_reduction <add>, %244, %cst_126 [1] : vector<8x128xf32> to vector<8xf32>
    %246 = vector.shape_cast %245 : vector<8xf32> to vector<8x1xf32>
    %cst_127 = arith.constant 1.280000e+02 : f32
    %247 = vector.broadcast %cst_127 : f32 to vector<8x1xf32>
    %248 = arith.divf %246, %247 : vector<8x1xf32>
    %249 = vector.broadcast %241 : vector<8x1xf32> to vector<8x128xf32>
    %250 = arith.subf %233, %249 : vector<8x128xf32>
    %cst_128 = arith.constant 9.99999974E-6 : f32
    %251 = vector.broadcast %cst_128 : f32 to vector<8x1xf32>
    %252 = arith.addf %248, %251 : vector<8x1xf32>
    %253 = math.rsqrt %252 : vector<8x1xf32>
    %254 = vector.broadcast %253 : vector<8x1xf32> to vector<8x128xf32>
    %255 = arith.mulf %250, %254 : vector<8x128xf32>
    %256 = vector.broadcast %235 : vector<1x128xf32> to vector<8x128xf32>
    %257 = arith.mulf %255, %256 : vector<8x128xf32>
    %258 = vector.broadcast %237 : vector<1x128xf32> to vector<8x128xf32>
    %259 = arith.addf %257, %258 : vector<8x128xf32>
    %260 = arith.truncf %259 : vector<8x128xf32> to vector<8x128xbf16>
    %c2 = arith.constant 2 : index
    %c0_129 = arith.constant 0 : index
    %c0_130 = arith.constant 0 : index
    %261 = vector.load %arg8[%c2, %c0_129, %c0_130] : memref<4x128x384xbf16, #tpu.memory_space<vmem>>, vector<1x128x384xbf16>
    %262 = vector.shape_cast %261 : vector<1x128x384xbf16> to vector<128x384xbf16>
    %cst_131 = arith.constant dense<0.000000e+00> : vector<8x384xf32>
    %263 = tpu.matmul %260, %262, %cst_131 {dimension_numbers = #tpu.dot_dimension_numbers<[1], [0], [0], [1], [0, 0, 1, 1], [], []>} : vector<8x128xbf16>, vector<128x384xbf16>, vector<8x384xf32> -> vector<8x384xf32>
    %c2_132 = arith.constant 2 : index
    %c0_133 = arith.constant 0 : index
    %c0_134 = arith.constant 0 : index
    %264 = vector.load %arg9[%c2_132, %c0_133, %c0_134] : memref<4x1x384xf32, #tpu.memory_space<vmem>>, vector<1x1x384xf32>
    %265 = vector.shape_cast %264 : vector<1x1x384xf32> to vector<1x384xf32>
    %266 = vector.broadcast %265 : vector<1x384xf32> to vector<8x384xf32>
    %267 = arith.addf %263, %266 : vector<8x384xf32>
    %268 = vector.extract_strided_slice %267 {offsets = [0, 0], sizes = [8, 128], strides = [1, 1]} : vector<8x384xf32> to vector<8x128xf32>
    %269 = vector.extract_strided_slice %267 {offsets = [0, 128], sizes = [8, 128], strides = [1, 1]} : vector<8x384xf32> to vector<8x128xf32>
    %270 = vector.extract_strided_slice %267 {offsets = [0, 256], sizes = [8, 128], strides = [1, 1]} : vector<8x384xf32> to vector<8x128xf32>
    %271 = tpu.concatenate %268, %268, %268, %268 in 0 : vector<8x128xf32>, vector<8x128xf32>, vector<8x128xf32>, vector<8x128xf32> -> vector<32x128xf32>
    %272 = arith.mulf %271, %19 : vector<32x128xf32>
    %273 = arith.truncf %272 : vector<32x128xf32> to vector<32x128xbf16>
    %274 = arith.truncf %269 : vector<8x128xf32> to vector<8x128xbf16>
    "tpu.trace_start"() <{level = 10 : i32, message = "rd,kd->rk"}> : () -> ()
    %cst_135 = arith.constant dense<0.000000e+00> : vector<32x8xf32>
    %275 = tpu.matmul %273, %274, %cst_135 {dimension_numbers = #tpu.dot_dimension_numbers<[1], [1], [0], [0], [0, 0, 1, 0], [], []>} : vector<32x128xbf16>, vector<8x128xbf16>, vector<32x8xf32> -> vector<32x8xf32>
    "tpu.trace_stop"() : () -> ()
    %276 = arith.addf %275, %21 : vector<32x8xf32>
    %cst_136 = arith.constant dense<0xFF800000> : vector<32xf32>
    %277 = vector.multi_reduction <maximumf>, %276, %cst_136 [1] : vector<32x8xf32> to vector<32xf32>
    %278 = vector.shape_cast %277 : vector<32xf32> to vector<32x1xf32>
    %279 = vector.broadcast %278 : vector<32x1xf32> to vector<32x8xf32>
    %280 = arith.subf %276, %279 : vector<32x8xf32>
    %281 = math.exp %280 : vector<32x8xf32>
    %cst_137 = arith.constant dense<0.000000e+00> : vector<32xf32>
    %282 = vector.multi_reduction <add>, %281, %cst_137 [1] : vector<32x8xf32> to vector<32xf32>
    %283 = vector.shape_cast %282 : vector<32xf32> to vector<32x1xf32>
    %284 = tpu.reciprocal %283 {approx = true} : vector<32x1xf32> -> vector<32x1xf32>
    %285 = vector.broadcast %284 : vector<32x1xf32> to vector<32x8xf32>
    %286 = arith.mulf %281, %285 : vector<32x8xf32>
    %287 = arith.truncf %286 : vector<32x8xf32> to vector<32x8xbf16>
    %288 = arith.truncf %270 : vector<8x128xf32> to vector<8x128xbf16>
    %cst_138 = arith.constant dense<0.000000e+00> : vector<32x128xf32>
    %289 = tpu.matmul %287, %288, %cst_138 {dimension_numbers = #tpu.dot_dimension_numbers<[1], [0], [0], [1], [0, 0, 1, 1], [], []>} : vector<32x8xbf16>, vector<8x128xbf16>, vector<32x128xf32> -> vector<32x128xf32>
    %290 = arith.extf %20 : vector<32x128xbf16> to vector<32x128xf32>
    %291 = arith.mulf %289, %290 : vector<32x128xf32>
    %292 = vector.extract_strided_slice %291 {offsets = [0, 0], sizes = [8, 128], strides = [1, 1]} : vector<32x128xf32> to vector<8x128xf32>
    %293 = vector.extract_strided_slice %291 {offsets = [8, 0], sizes = [8, 128], strides = [1, 1]} : vector<32x128xf32> to vector<8x128xf32>
    %294 = arith.addf %292, %293 : vector<8x128xf32>
    %295 = vector.extract_strided_slice %291 {offsets = [16, 0], sizes = [8, 128], strides = [1, 1]} : vector<32x128xf32> to vector<8x128xf32>
    %296 = arith.addf %294, %295 : vector<8x128xf32>
    %297 = vector.extract_strided_slice %291 {offsets = [24, 0], sizes = [8, 128], strides = [1, 1]} : vector<32x128xf32> to vector<8x128xf32>
    %298 = arith.addf %296, %297 : vector<8x128xf32>
    %299 = arith.truncf %298 : vector<8x128xf32> to vector<8x128xbf16>
    %c2_139 = arith.constant 2 : index
    %c0_140 = arith.constant 0 : index
    %c0_141 = arith.constant 0 : index
    %300 = vector.load %arg10[%c2_139, %c0_140, %c0_141] : memref<4x128x128xbf16, #tpu.memory_space<vmem>>, vector<1x128x128xbf16>
    %301 = vector.shape_cast %300 : vector<1x128x128xbf16> to vector<128x128xbf16>
    %cst_142 = arith.constant dense<0.000000e+00> : vector<8x128xf32>
    %302 = tpu.matmul %299, %301, %cst_142 {dimension_numbers = #tpu.dot_dimension_numbers<[1], [0], [0], [1], [0, 0, 1, 1], [], []>} : vector<8x128xbf16>, vector<128x128xbf16>, vector<8x128xf32> -> vector<8x128xf32>
    %c2_143 = arith.constant 2 : index
    %c0_144 = arith.constant 0 : index
    %c0_145 = arith.constant 0 : index
    %303 = vector.load %arg11[%c2_143, %c0_144, %c0_145] : memref<4x1x128xf32, #tpu.memory_space<vmem>>, vector<1x1x128xf32>
    %304 = vector.shape_cast %303 : vector<1x1x128xf32> to vector<1x128xf32>
    %305 = vector.broadcast %304 : vector<1x128xf32> to vector<8x128xf32>
    %306 = arith.addf %302, %305 : vector<8x128xf32>
    %307 = arith.addf %259, %306 : vector<8x128xf32>
    %c2_146 = arith.constant 2 : index
    %c0_147 = arith.constant 0 : index
    %c0_148 = arith.constant 0 : index
    %308 = vector.load %arg12[%c2_146, %c0_147, %c0_148] : memref<4x1x128xf32, #tpu.memory_space<vmem>>, vector<1x1x128xf32>
    %309 = vector.shape_cast %308 : vector<1x1x128xf32> to vector<1x128xf32>
    %c2_149 = arith.constant 2 : index
    %c0_150 = arith.constant 0 : index
    %c0_151 = arith.constant 0 : index
    %310 = vector.load %arg13[%c2_149, %c0_150, %c0_151] : memref<4x1x128xf32, #tpu.memory_space<vmem>>, vector<1x1x128xf32>
    %311 = vector.shape_cast %310 : vector<1x1x128xf32> to vector<1x128xf32>
    %cst_152 = arith.constant dense<0.000000e+00> : vector<8xf32>
    %312 = vector.multi_reduction <add>, %307, %cst_152 [1] : vector<8x128xf32> to vector<8xf32>
    %313 = vector.shape_cast %312 : vector<8xf32> to vector<8x1xf32>
    %cst_153 = arith.constant 1.280000e+02 : f32
    %314 = vector.broadcast %cst_153 : f32 to vector<8x1xf32>
    %315 = arith.divf %313, %314 : vector<8x1xf32>
    %316 = vector.broadcast %315 : vector<8x1xf32> to vector<8x128xf32>
    %317 = arith.subf %307, %316 : vector<8x128xf32>
    %318 = arith.mulf %317, %317 : vector<8x128xf32>
    %cst_154 = arith.constant dense<0.000000e+00> : vector<8xf32>
    %319 = vector.multi_reduction <add>, %318, %cst_154 [1] : vector<8x128xf32> to vector<8xf32>
    %320 = vector.shape_cast %319 : vector<8xf32> to vector<8x1xf32>
    %cst_155 = arith.constant 1.280000e+02 : f32
    %321 = vector.broadcast %cst_155 : f32 to vector<8x1xf32>
    %322 = arith.divf %320, %321 : vector<8x1xf32>
    %323 = vector.broadcast %315 : vector<8x1xf32> to vector<8x128xf32>
    %324 = arith.subf %307, %323 : vector<8x128xf32>
    %cst_156 = arith.constant 9.99999974E-6 : f32
    %325 = vector.broadcast %cst_156 : f32 to vector<8x1xf32>
    %326 = arith.addf %322, %325 : vector<8x1xf32>
    %327 = math.rsqrt %326 : vector<8x1xf32>
    %328 = vector.broadcast %327 : vector<8x1xf32> to vector<8x128xf32>
    %329 = arith.mulf %324, %328 : vector<8x128xf32>
    %330 = vector.broadcast %309 : vector<1x128xf32> to vector<8x128xf32>
    %331 = arith.mulf %329, %330 : vector<8x128xf32>
    %332 = vector.broadcast %311 : vector<1x128xf32> to vector<8x128xf32>
    %333 = arith.addf %331, %332 : vector<8x128xf32>
    %334 = arith.truncf %333 : vector<8x128xf32> to vector<8x128xbf16>
    %c2_157 = arith.constant 2 : index
    %c0_158 = arith.constant 0 : index
    %c0_159 = arith.constant 0 : index
    %335 = vector.load %arg14[%c2_157, %c0_158, %c0_159] : memref<4x128x128xbf16, #tpu.memory_space<vmem>>, vector<1x128x128xbf16>
    %336 = vector.shape_cast %335 : vector<1x128x128xbf16> to vector<128x128xbf16>
    %cst_160 = arith.constant dense<0.000000e+00> : vector<8x128xf32>
    %337 = tpu.matmul %334, %336, %cst_160 {dimension_numbers = #tpu.dot_dimension_numbers<[1], [0], [0], [1], [0, 0, 1, 1], [], []>} : vector<8x128xbf16>, vector<128x128xbf16>, vector<8x128xf32> -> vector<8x128xf32>
    %c2_161 = arith.constant 2 : index
    %c0_162 = arith.constant 0 : index
    %c0_163 = arith.constant 0 : index
    %338 = vector.load %arg15[%c2_161, %c0_162, %c0_163] : memref<4x1x128xf32, #tpu.memory_space<vmem>>, vector<1x1x128xf32>
    %339 = vector.shape_cast %338 : vector<1x1x128xf32> to vector<1x128xf32>
    %340 = vector.broadcast %339 : vector<1x128xf32> to vector<8x128xf32>
    %341 = arith.addf %337, %340 : vector<8x128xf32>
    %cst_164 = arith.constant 0.000000e+00 : f32
    %342 = vector.broadcast %cst_164 : f32 to vector<8x128xf32>
    %343 = arith.maximumf %341, %342 : vector<8x128xf32>
    %344 = arith.truncf %343 : vector<8x128xf32> to vector<8x128xbf16>
    %c2_165 = arith.constant 2 : index
    %c0_166 = arith.constant 0 : index
    %c0_167 = arith.constant 0 : index
    %345 = vector.load %arg16[%c2_165, %c0_166, %c0_167] : memref<4x128x128xbf16, #tpu.memory_space<vmem>>, vector<1x128x128xbf16>
    %346 = vector.shape_cast %345 : vector<1x128x128xbf16> to vector<128x128xbf16>
    %cst_168 = arith.constant dense<0.000000e+00> : vector<8x128xf32>
    %347 = tpu.matmul %344, %346, %cst_168 {dimension_numbers = #tpu.dot_dimension_numbers<[1], [0], [0], [1], [0, 0, 1, 1], [], []>} : vector<8x128xbf16>, vector<128x128xbf16>, vector<8x128xf32> -> vector<8x128xf32>
    %c2_169 = arith.constant 2 : index
    %c0_170 = arith.constant 0 : index
    %c0_171 = arith.constant 0 : index
    %348 = vector.load %arg17[%c2_169, %c0_170, %c0_171] : memref<4x1x128xf32, #tpu.memory_space<vmem>>, vector<1x1x128xf32>
    %349 = vector.shape_cast %348 : vector<1x1x128xf32> to vector<1x128xf32>
    %350 = vector.broadcast %349 : vector<1x128xf32> to vector<8x128xf32>
    %351 = arith.addf %347, %350 : vector<8x128xf32>
    %352 = arith.addf %333, %351 : vector<8x128xf32>
    %c2_172 = arith.constant 2 : index
    %c0_173 = arith.constant 0 : index
    %c0_174 = arith.constant 0 : index
    %353 = vector.load %arg18[%c2_172, %c0_173, %c0_174] : memref<4x1x128xf32, #tpu.memory_space<vmem>>, vector<1x1x128xf32>
    %354 = vector.shape_cast %353 : vector<1x1x128xf32> to vector<1x128xf32>
    %c2_175 = arith.constant 2 : index
    %c0_176 = arith.constant 0 : index
    %c0_177 = arith.constant 0 : index
    %355 = vector.load %arg19[%c2_175, %c0_176, %c0_177] : memref<4x1x128xf32, #tpu.memory_space<vmem>>, vector<1x1x128xf32>
    %356 = vector.shape_cast %355 : vector<1x1x128xf32> to vector<1x128xf32>
    %cst_178 = arith.constant dense<0.000000e+00> : vector<8xf32>
    %357 = vector.multi_reduction <add>, %352, %cst_178 [1] : vector<8x128xf32> to vector<8xf32>
    %358 = vector.shape_cast %357 : vector<8xf32> to vector<8x1xf32>
    %cst_179 = arith.constant 1.280000e+02 : f32
    %359 = vector.broadcast %cst_179 : f32 to vector<8x1xf32>
    %360 = arith.divf %358, %359 : vector<8x1xf32>
    %361 = vector.broadcast %360 : vector<8x1xf32> to vector<8x128xf32>
    %362 = arith.subf %352, %361 : vector<8x128xf32>
    %363 = arith.mulf %362, %362 : vector<8x128xf32>
    %cst_180 = arith.constant dense<0.000000e+00> : vector<8xf32>
    %364 = vector.multi_reduction <add>, %363, %cst_180 [1] : vector<8x128xf32> to vector<8xf32>
    %365 = vector.shape_cast %364 : vector<8xf32> to vector<8x1xf32>
    %cst_181 = arith.constant 1.280000e+02 : f32
    %366 = vector.broadcast %cst_181 : f32 to vector<8x1xf32>
    %367 = arith.divf %365, %366 : vector<8x1xf32>
    %368 = vector.broadcast %360 : vector<8x1xf32> to vector<8x128xf32>
    %369 = arith.subf %352, %368 : vector<8x128xf32>
    %cst_182 = arith.constant 9.99999974E-6 : f32
    %370 = vector.broadcast %cst_182 : f32 to vector<8x1xf32>
    %371 = arith.addf %367, %370 : vector<8x1xf32>
    %372 = math.rsqrt %371 : vector<8x1xf32>
    %373 = vector.broadcast %372 : vector<8x1xf32> to vector<8x128xf32>
    %374 = arith.mulf %369, %373 : vector<8x128xf32>
    %375 = vector.broadcast %354 : vector<1x128xf32> to vector<8x128xf32>
    %376 = arith.mulf %374, %375 : vector<8x128xf32>
    %377 = vector.broadcast %356 : vector<1x128xf32> to vector<8x128xf32>
    %378 = arith.addf %376, %377 : vector<8x128xf32>
    %379 = arith.truncf %378 : vector<8x128xf32> to vector<8x128xbf16>
    %c3 = arith.constant 3 : index
    %c0_183 = arith.constant 0 : index
    %c0_184 = arith.constant 0 : index
    %380 = vector.load %arg8[%c3, %c0_183, %c0_184] : memref<4x128x384xbf16, #tpu.memory_space<vmem>>, vector<1x128x384xbf16>
    %381 = vector.shape_cast %380 : vector<1x128x384xbf16> to vector<128x384xbf16>
    %cst_185 = arith.constant dense<0.000000e+00> : vector<8x384xf32>
    %382 = tpu.matmul %379, %381, %cst_185 {dimension_numbers = #tpu.dot_dimension_numbers<[1], [0], [0], [1], [0, 0, 1, 1], [], []>} : vector<8x128xbf16>, vector<128x384xbf16>, vector<8x384xf32> -> vector<8x384xf32>
    %c3_186 = arith.constant 3 : index
    %c0_187 = arith.constant 0 : index
    %c0_188 = arith.constant 0 : index
    %383 = vector.load %arg9[%c3_186, %c0_187, %c0_188] : memref<4x1x384xf32, #tpu.memory_space<vmem>>, vector<1x1x384xf32>
    %384 = vector.shape_cast %383 : vector<1x1x384xf32> to vector<1x384xf32>
    %385 = vector.broadcast %384 : vector<1x384xf32> to vector<8x384xf32>
    %386 = arith.addf %382, %385 : vector<8x384xf32>
    %387 = vector.extract_strided_slice %386 {offsets = [0, 0], sizes = [8, 128], strides = [1, 1]} : vector<8x384xf32> to vector<8x128xf32>
    %388 = vector.extract_strided_slice %386 {offsets = [0, 128], sizes = [8, 128], strides = [1, 1]} : vector<8x384xf32> to vector<8x128xf32>
    %389 = vector.extract_strided_slice %386 {offsets = [0, 256], sizes = [8, 128], strides = [1, 1]} : vector<8x384xf32> to vector<8x128xf32>
    %390 = tpu.concatenate %387, %387, %387, %387 in 0 : vector<8x128xf32>, vector<8x128xf32>, vector<8x128xf32>, vector<8x128xf32> -> vector<32x128xf32>
    %391 = arith.mulf %390, %19 : vector<32x128xf32>
    %392 = arith.truncf %391 : vector<32x128xf32> to vector<32x128xbf16>
    %393 = arith.truncf %388 : vector<8x128xf32> to vector<8x128xbf16>
    "tpu.trace_start"() <{level = 10 : i32, message = "rd,kd->rk"}> : () -> ()
    %cst_189 = arith.constant dense<0.000000e+00> : vector<32x8xf32>
    %394 = tpu.matmul %392, %393, %cst_189 {dimension_numbers = #tpu.dot_dimension_numbers<[1], [1], [0], [0], [0, 0, 1, 0], [], []>} : vector<32x128xbf16>, vector<8x128xbf16>, vector<32x8xf32> -> vector<32x8xf32>
    "tpu.trace_stop"() : () -> ()
    %395 = arith.addf %394, %21 : vector<32x8xf32>
    %cst_190 = arith.constant dense<0xFF800000> : vector<32xf32>
    %396 = vector.multi_reduction <maximumf>, %395, %cst_190 [1] : vector<32x8xf32> to vector<32xf32>
    %397 = vector.shape_cast %396 : vector<32xf32> to vector<32x1xf32>
    %398 = vector.broadcast %397 : vector<32x1xf32> to vector<32x8xf32>
    %399 = arith.subf %395, %398 : vector<32x8xf32>
    %400 = math.exp %399 : vector<32x8xf32>
    %cst_191 = arith.constant dense<0.000000e+00> : vector<32xf32>
    %401 = vector.multi_reduction <add>, %400, %cst_191 [1] : vector<32x8xf32> to vector<32xf32>
    %402 = vector.shape_cast %401 : vector<32xf32> to vector<32x1xf32>
    %403 = tpu.reciprocal %402 {approx = true} : vector<32x1xf32> -> vector<32x1xf32>
    %404 = vector.broadcast %403 : vector<32x1xf32> to vector<32x8xf32>
    %405 = arith.mulf %400, %404 : vector<32x8xf32>
    %406 = arith.truncf %405 : vector<32x8xf32> to vector<32x8xbf16>
    %407 = arith.truncf %389 : vector<8x128xf32> to vector<8x128xbf16>
    %cst_192 = arith.constant dense<0.000000e+00> : vector<32x128xf32>
    %408 = tpu.matmul %406, %407, %cst_192 {dimension_numbers = #tpu.dot_dimension_numbers<[1], [0], [0], [1], [0, 0, 1, 1], [], []>} : vector<32x8xbf16>, vector<8x128xbf16>, vector<32x128xf32> -> vector<32x128xf32>
    %409 = arith.extf %20 : vector<32x128xbf16> to vector<32x128xf32>
    %410 = arith.mulf %408, %409 : vector<32x128xf32>
    %411 = vector.extract_strided_slice %410 {offsets = [0, 0], sizes = [8, 128], strides = [1, 1]} : vector<32x128xf32> to vector<8x128xf32>
    %412 = vector.extract_strided_slice %410 {offsets = [8, 0], sizes = [8, 128], strides = [1, 1]} : vector<32x128xf32> to vector<8x128xf32>
    %413 = arith.addf %411, %412 : vector<8x128xf32>
    %414 = vector.extract_strided_slice %410 {offsets = [16, 0], sizes = [8, 128], strides = [1, 1]} : vector<32x128xf32> to vector<8x128xf32>
    %415 = arith.addf %413, %414 : vector<8x128xf32>
    %416 = vector.extract_strided_slice %410 {offsets = [24, 0], sizes = [8, 128], strides = [1, 1]} : vector<32x128xf32> to vector<8x128xf32>
    %417 = arith.addf %415, %416 : vector<8x128xf32>
    %418 = arith.truncf %417 : vector<8x128xf32> to vector<8x128xbf16>
    %c3_193 = arith.constant 3 : index
    %c0_194 = arith.constant 0 : index
    %c0_195 = arith.constant 0 : index
    %419 = vector.load %arg10[%c3_193, %c0_194, %c0_195] : memref<4x128x128xbf16, #tpu.memory_space<vmem>>, vector<1x128x128xbf16>
    %420 = vector.shape_cast %419 : vector<1x128x128xbf16> to vector<128x128xbf16>
    %cst_196 = arith.constant dense<0.000000e+00> : vector<8x128xf32>
    %421 = tpu.matmul %418, %420, %cst_196 {dimension_numbers = #tpu.dot_dimension_numbers<[1], [0], [0], [1], [0, 0, 1, 1], [], []>} : vector<8x128xbf16>, vector<128x128xbf16>, vector<8x128xf32> -> vector<8x128xf32>
    %c3_197 = arith.constant 3 : index
    %c0_198 = arith.constant 0 : index
    %c0_199 = arith.constant 0 : index
    %422 = vector.load %arg11[%c3_197, %c0_198, %c0_199] : memref<4x1x128xf32, #tpu.memory_space<vmem>>, vector<1x1x128xf32>
    %423 = vector.shape_cast %422 : vector<1x1x128xf32> to vector<1x128xf32>
    %424 = vector.broadcast %423 : vector<1x128xf32> to vector<8x128xf32>
    %425 = arith.addf %421, %424 : vector<8x128xf32>
    %426 = arith.addf %378, %425 : vector<8x128xf32>
    %c3_200 = arith.constant 3 : index
    %c0_201 = arith.constant 0 : index
    %c0_202 = arith.constant 0 : index
    %427 = vector.load %arg12[%c3_200, %c0_201, %c0_202] : memref<4x1x128xf32, #tpu.memory_space<vmem>>, vector<1x1x128xf32>
    %428 = vector.shape_cast %427 : vector<1x1x128xf32> to vector<1x128xf32>
    %c3_203 = arith.constant 3 : index
    %c0_204 = arith.constant 0 : index
    %c0_205 = arith.constant 0 : index
    %429 = vector.load %arg13[%c3_203, %c0_204, %c0_205] : memref<4x1x128xf32, #tpu.memory_space<vmem>>, vector<1x1x128xf32>
    %430 = vector.shape_cast %429 : vector<1x1x128xf32> to vector<1x128xf32>
    %cst_206 = arith.constant dense<0.000000e+00> : vector<8xf32>
    %431 = vector.multi_reduction <add>, %426, %cst_206 [1] : vector<8x128xf32> to vector<8xf32>
    %432 = vector.shape_cast %431 : vector<8xf32> to vector<8x1xf32>
    %cst_207 = arith.constant 1.280000e+02 : f32
    %433 = vector.broadcast %cst_207 : f32 to vector<8x1xf32>
    %434 = arith.divf %432, %433 : vector<8x1xf32>
    %435 = vector.broadcast %434 : vector<8x1xf32> to vector<8x128xf32>
    %436 = arith.subf %426, %435 : vector<8x128xf32>
    %437 = arith.mulf %436, %436 : vector<8x128xf32>
    %cst_208 = arith.constant dense<0.000000e+00> : vector<8xf32>
    %438 = vector.multi_reduction <add>, %437, %cst_208 [1] : vector<8x128xf32> to vector<8xf32>
    %439 = vector.shape_cast %438 : vector<8xf32> to vector<8x1xf32>
    %cst_209 = arith.constant 1.280000e+02 : f32
    %440 = vector.broadcast %cst_209 : f32 to vector<8x1xf32>
    %441 = arith.divf %439, %440 : vector<8x1xf32>
    %442 = vector.broadcast %434 : vector<8x1xf32> to vector<8x128xf32>
    %443 = arith.subf %426, %442 : vector<8x128xf32>
    %cst_210 = arith.constant 9.99999974E-6 : f32
    %444 = vector.broadcast %cst_210 : f32 to vector<8x1xf32>
    %445 = arith.addf %441, %444 : vector<8x1xf32>
    %446 = math.rsqrt %445 : vector<8x1xf32>
    %447 = vector.broadcast %446 : vector<8x1xf32> to vector<8x128xf32>
    %448 = arith.mulf %443, %447 : vector<8x128xf32>
    %449 = vector.broadcast %428 : vector<1x128xf32> to vector<8x128xf32>
    %450 = arith.mulf %448, %449 : vector<8x128xf32>
    %451 = vector.broadcast %430 : vector<1x128xf32> to vector<8x128xf32>
    %452 = arith.addf %450, %451 : vector<8x128xf32>
    %453 = arith.truncf %452 : vector<8x128xf32> to vector<8x128xbf16>
    %c3_211 = arith.constant 3 : index
    %c0_212 = arith.constant 0 : index
    %c0_213 = arith.constant 0 : index
    %454 = vector.load %arg14[%c3_211, %c0_212, %c0_213] : memref<4x128x128xbf16, #tpu.memory_space<vmem>>, vector<1x128x128xbf16>
    %455 = vector.shape_cast %454 : vector<1x128x128xbf16> to vector<128x128xbf16>
    %cst_214 = arith.constant dense<0.000000e+00> : vector<8x128xf32>
    %456 = tpu.matmul %453, %455, %cst_214 {dimension_numbers = #tpu.dot_dimension_numbers<[1], [0], [0], [1], [0, 0, 1, 1], [], []>} : vector<8x128xbf16>, vector<128x128xbf16>, vector<8x128xf32> -> vector<8x128xf32>
    %c3_215 = arith.constant 3 : index
    %c0_216 = arith.constant 0 : index
    %c0_217 = arith.constant 0 : index
    %457 = vector.load %arg15[%c3_215, %c0_216, %c0_217] : memref<4x1x128xf32, #tpu.memory_space<vmem>>, vector<1x1x128xf32>
    %458 = vector.shape_cast %457 : vector<1x1x128xf32> to vector<1x128xf32>
    %459 = vector.broadcast %458 : vector<1x128xf32> to vector<8x128xf32>
    %460 = arith.addf %456, %459 : vector<8x128xf32>
    %cst_218 = arith.constant 0.000000e+00 : f32
    %461 = vector.broadcast %cst_218 : f32 to vector<8x128xf32>
    %462 = arith.maximumf %460, %461 : vector<8x128xf32>
    %463 = arith.truncf %462 : vector<8x128xf32> to vector<8x128xbf16>
    %c3_219 = arith.constant 3 : index
    %c0_220 = arith.constant 0 : index
    %c0_221 = arith.constant 0 : index
    %464 = vector.load %arg16[%c3_219, %c0_220, %c0_221] : memref<4x128x128xbf16, #tpu.memory_space<vmem>>, vector<1x128x128xbf16>
    %465 = vector.shape_cast %464 : vector<1x128x128xbf16> to vector<128x128xbf16>
    %cst_222 = arith.constant dense<0.000000e+00> : vector<8x128xf32>
    %466 = tpu.matmul %463, %465, %cst_222 {dimension_numbers = #tpu.dot_dimension_numbers<[1], [0], [0], [1], [0, 0, 1, 1], [], []>} : vector<8x128xbf16>, vector<128x128xbf16>, vector<8x128xf32> -> vector<8x128xf32>
    %c3_223 = arith.constant 3 : index
    %c0_224 = arith.constant 0 : index
    %c0_225 = arith.constant 0 : index
    %467 = vector.load %arg17[%c3_223, %c0_224, %c0_225] : memref<4x1x128xf32, #tpu.memory_space<vmem>>, vector<1x1x128xf32>
    %468 = vector.shape_cast %467 : vector<1x1x128xf32> to vector<1x128xf32>
    %469 = vector.broadcast %468 : vector<1x128xf32> to vector<8x128xf32>
    %470 = arith.addf %466, %469 : vector<8x128xf32>
    %471 = arith.addf %452, %470 : vector<8x128xf32>
    %c3_226 = arith.constant 3 : index
    %c0_227 = arith.constant 0 : index
    %c0_228 = arith.constant 0 : index
    %472 = vector.load %arg18[%c3_226, %c0_227, %c0_228] : memref<4x1x128xf32, #tpu.memory_space<vmem>>, vector<1x1x128xf32>
    %473 = vector.shape_cast %472 : vector<1x1x128xf32> to vector<1x128xf32>
    %c3_229 = arith.constant 3 : index
    %c0_230 = arith.constant 0 : index
    %c0_231 = arith.constant 0 : index
    %474 = vector.load %arg19[%c3_229, %c0_230, %c0_231] : memref<4x1x128xf32, #tpu.memory_space<vmem>>, vector<1x1x128xf32>
    %475 = vector.shape_cast %474 : vector<1x1x128xf32> to vector<1x128xf32>
    %cst_232 = arith.constant dense<0.000000e+00> : vector<8xf32>
    %476 = vector.multi_reduction <add>, %471, %cst_232 [1] : vector<8x128xf32> to vector<8xf32>
    %477 = vector.shape_cast %476 : vector<8xf32> to vector<8x1xf32>
    %cst_233 = arith.constant 1.280000e+02 : f32
    %478 = vector.broadcast %cst_233 : f32 to vector<8x1xf32>
    %479 = arith.divf %477, %478 : vector<8x1xf32>
    %480 = vector.broadcast %479 : vector<8x1xf32> to vector<8x128xf32>
    %481 = arith.subf %471, %480 : vector<8x128xf32>
    %482 = arith.mulf %481, %481 : vector<8x128xf32>
    %cst_234 = arith.constant dense<0.000000e+00> : vector<8xf32>
    %483 = vector.multi_reduction <add>, %482, %cst_234 [1] : vector<8x128xf32> to vector<8xf32>
    %484 = vector.shape_cast %483 : vector<8xf32> to vector<8x1xf32>
    %cst_235 = arith.constant 1.280000e+02 : f32
    %485 = vector.broadcast %cst_235 : f32 to vector<8x1xf32>
    %486 = arith.divf %484, %485 : vector<8x1xf32>
    %487 = vector.broadcast %479 : vector<8x1xf32> to vector<8x128xf32>
    %488 = arith.subf %471, %487 : vector<8x128xf32>
    %cst_236 = arith.constant 9.99999974E-6 : f32
    %489 = vector.broadcast %cst_236 : f32 to vector<8x1xf32>
    %490 = arith.addf %486, %489 : vector<8x1xf32>
    %491 = math.rsqrt %490 : vector<8x1xf32>
    %492 = vector.broadcast %491 : vector<8x1xf32> to vector<8x128xf32>
    %493 = arith.mulf %488, %492 : vector<8x128xf32>
    %494 = vector.broadcast %473 : vector<1x128xf32> to vector<8x128xf32>
    %495 = arith.mulf %493, %494 : vector<8x128xf32>
    %496 = vector.broadcast %475 : vector<1x128xf32> to vector<8x128xf32>
    %497 = arith.addf %495, %496 : vector<8x128xf32>
    %498 = vector.extract_strided_slice %497 {offsets = [0, 0], sizes = [1, 128], strides = [1, 1]} : vector<8x128xf32> to vector<1x128xf32>
    %c0_237 = arith.constant 0 : index
    %c0_238 = arith.constant 0 : index
    %499 = vector.load %arg23[%c0_237, %c0_238] : memref<2x512xf32, #tpu.memory_space<vmem>>, vector<1x128xf32>
    tpu.vector_store %arg23[%c0_237, %c0_238], %498 {strides = array<i32>} : memref<2x512xf32, #tpu.memory_space<vmem>>, vector<1x128xf32>,
    %500 = vector.extract_strided_slice %497 {offsets = [1, 0], sizes = [1, 128], strides = [1, 1]} : vector<8x128xf32> to vector<1x128xf32>
    %c0_239 = arith.constant 0 : index
    %c128 = arith.constant 128 : index
    %501 = vector.load %arg23[%c0_239, %c128] : memref<2x512xf32, #tpu.memory_space<vmem>>, vector<1x128xf32>
    tpu.vector_store %arg23[%c0_239, %c128], %500 {strides = array<i32>} : memref<2x512xf32, #tpu.memory_space<vmem>>, vector<1x128xf32>,
    %502 = vector.extract_strided_slice %497 {offsets = [2, 0], sizes = [1, 128], strides = [1, 1]} : vector<8x128xf32> to vector<1x128xf32>
    %c0_240 = arith.constant 0 : index
    %c256 = arith.constant 256 : index
    %503 = vector.load %arg23[%c0_240, %c256] : memref<2x512xf32, #tpu.memory_space<vmem>>, vector<1x128xf32>
    tpu.vector_store %arg23[%c0_240, %c256], %502 {strides = array<i32>} : memref<2x512xf32, #tpu.memory_space<vmem>>, vector<1x128xf32>,
    %504 = vector.extract_strided_slice %497 {offsets = [3, 0], sizes = [1, 128], strides = [1, 1]} : vector<8x128xf32> to vector<1x128xf32>
    %c0_241 = arith.constant 0 : index
    %c384 = arith.constant 384 : index
    %505 = vector.load %arg23[%c0_241, %c384] : memref<2x512xf32, #tpu.memory_space<vmem>>, vector<1x128xf32>
    tpu.vector_store %arg23[%c0_241, %c384], %504 {strides = array<i32>} : memref<2x512xf32, #tpu.memory_space<vmem>>, vector<1x128xf32>,
    %506 = vector.extract_strided_slice %497 {offsets = [4, 0], sizes = [1, 128], strides = [1, 1]} : vector<8x128xf32> to vector<1x128xf32>
    %c1_242 = arith.constant 1 : index
    %c0_243 = arith.constant 0 : index
    %507 = vector.load %arg23[%c1_242, %c0_243] : memref<2x512xf32, #tpu.memory_space<vmem>>, vector<1x128xf32>
    tpu.vector_store %arg23[%c1_242, %c0_243], %506 {strides = array<i32>} : memref<2x512xf32, #tpu.memory_space<vmem>>, vector<1x128xf32>,
    %508 = vector.extract_strided_slice %497 {offsets = [5, 0], sizes = [1, 128], strides = [1, 1]} : vector<8x128xf32> to vector<1x128xf32>
    %c1_244 = arith.constant 1 : index
    %c128_245 = arith.constant 128 : index
    %509 = vector.load %arg23[%c1_244, %c128_245] : memref<2x512xf32, #tpu.memory_space<vmem>>, vector<1x128xf32>
    tpu.vector_store %arg23[%c1_244, %c128_245], %508 {strides = array<i32>} : memref<2x512xf32, #tpu.memory_space<vmem>>, vector<1x128xf32>,
    %510 = vector.extract_strided_slice %497 {offsets = [6, 0], sizes = [1, 128], strides = [1, 1]} : vector<8x128xf32> to vector<1x128xf32>
    %c1_246 = arith.constant 1 : index
    %c256_247 = arith.constant 256 : index
    %511 = vector.load %arg23[%c1_246, %c256_247] : memref<2x512xf32, #tpu.memory_space<vmem>>, vector<1x128xf32>
    tpu.vector_store %arg23[%c1_246, %c256_247], %510 {strides = array<i32>} : memref<2x512xf32, #tpu.memory_space<vmem>>, vector<1x128xf32>,
    %512 = vector.extract_strided_slice %497 {offsets = [7, 0], sizes = [1, 128], strides = [1, 1]} : vector<8x128xf32> to vector<1x128xf32>
    %c1_248 = arith.constant 1 : index
    %c384_249 = arith.constant 384 : index
    %513 = vector.load %arg23[%c1_248, %c384_249] : memref<2x512xf32, #tpu.memory_space<vmem>>, vector<1x128xf32>
    tpu.vector_store %arg23[%c1_248, %c384_249], %512 {strides = array<i32>} : memref<2x512xf32, #tpu.memory_space<vmem>>, vector<1x128xf32>,
    %c0_250 = arith.constant 0 : index
    %c0_251 = arith.constant 0 : index
    %514 = vector.load %arg23[%c0_250, %c0_251] : memref<2x512xf32, #tpu.memory_space<vmem>>, vector<2x512xf32>
    %515 = arith.truncf %514 : vector<2x512xf32> to vector<2x512xbf16>
    %c0_252 = arith.constant 0 : index
    %c0_253 = arith.constant 0 : index
    %516 = vector.load %arg20[%c0_252, %c0_253] : memref<512x128xbf16, #tpu.memory_space<vmem>>, vector<512x128xbf16>
    %cst_254 = arith.constant dense<0.000000e+00> : vector<2x128xf32>
    %517 = tpu.matmul %515, %516, %cst_254 {dimension_numbers = #tpu.dot_dimension_numbers<[1], [0], [0], [1], [0, 0, 1, 1], [], []>} : vector<2x512xbf16>, vector<512x128xbf16>, vector<2x128xf32> -> vector<2x128xf32>
    %c0_255 = arith.constant 0 : index
    %c0_256 = arith.constant 0 : index
    %518 = vector.load %arg21[%c0_255, %c0_256] : memref<1x128xf32, #tpu.memory_space<vmem>>, vector<1x128xf32>
    %519 = vector.broadcast %518 : vector<1x128xf32> to vector<2x128xf32>
    %520 = arith.addf %517, %519 : vector<2x128xf32>
    %c0_257 = arith.constant 0 : index
    %c0_258 = arith.constant 0 : index
    %521 = vector.load %arg22[%c0_257, %c0_258] : memref<2x128xf32, #tpu.memory_space<vmem>>, vector<2x128xf32>
    tpu.vector_store %arg22[%c0_257, %c0_258], %520 {strides = array<i32>} : memref<2x128xf32, #tpu.memory_space<vmem>>, vector<2x128xf32>,
    return
  }
}

</mosaic_0001>

<llo_original>
// kernel: tpu_custom_call.1
$region0: #{tpu_custom_call.1}
  #allocation0 [shape = 'u32[]', space=smem, size = 0x4, offset = 0x4, fixed_abs, tag = 'smem constant byte address 0x4 - core index']
  #allocation1 [shape = 'u32[72,128]{1,0:T(1,128)}', space=vmem, size = 0x9000, scoped, tag = 'internal scratch']
  #allocation2 [shape = 'f32[2,512]{1,0:T(2,128)}', space=vmem, size = 0x1000, scoped, tag = 'scratch operand']
  %s0 = inlined_call_operand.hbm [shape: f32[6,4,64], index: 0, kind: input, shape index: {}]
  %s1 = inlined_call_operand.hbm [shape: bf16[64,256], index: 1, kind: input, shape index: {}]
  %s2 = inlined_call_operand.hbm [shape: f32[1,256], index: 2, kind: input, shape index: {}]
  %s3 = inlined_call_operand.hbm [shape: bf16[8,6], index: 3, kind: input, shape index: {}]
  %s4 = inlined_call_operand.hbm [shape: bf16[8,6], index: 4, kind: input, shape index: {}]
  %s5 = inlined_call_operand.vmem [shape: f32[32,128], index: 5, kind: input, shape index: {}]
  %s6 = inlined_call_operand.hbm [shape: bf16[32,128], index: 6, kind: input, shape index: {}]
  %s7 = inlined_call_operand.vmem [shape: f32[32,8], index: 7, kind: input, shape index: {}]
  %s8 = inlined_call_operand.hbm [shape: bf16[4,128,384], index: 8, kind: input, shape index: {}]
  %s9 = inlined_call_operand.vmem [shape: f32[4,1,384], index: 9, kind: input, shape index: {}]
  %s10 = inlined_call_operand.hbm [shape: bf16[4,128,128], index: 10, kind: input, shape index: {}]
  %s11 = inlined_call_operand.vmem [shape: f32[4,1,128], index: 11, kind: input, shape index: {}]
  %s12 = inlined_call_operand.hbm [shape: f32[4,1,128], index: 12, kind: input, shape index: {}]
  %s13 = inlined_call_operand.vmem [shape: f32[4,1,128], index: 13, kind: input, shape index: {}]
  %s14 = inlined_call_operand.hbm [shape: bf16[4,128,128], index: 14, kind: input, shape index: {}]
  %s15 = inlined_call_operand.hbm [shape: f32[4,1,128], index: 15, kind: input, shape index: {}]
  %s16 = inlined_call_operand.hbm [shape: bf16[4,128,128], index: 16, kind: input, shape index: {}]
  %s17 = inlined_call_operand.vmem [shape: f32[4,1,128], index: 17, kind: input, shape index: {}]
  %s18 = inlined_call_operand.hbm [shape: f32[4,1,128], index: 18, kind: input, shape index: {}]
  %s19 = inlined_call_operand.hbm [shape: f32[4,1,128], index: 19, kind: input, shape index: {}]
  %s20 = inlined_call_operand.hbm [shape: bf16[512,128], index: 20, kind: input, shape index: {}]
  %s21 = inlined_call_operand.vmem [shape: f32[1,128], index: 21, kind: input, shape index: {}]
  %s22 = inlined_call_operand.hbm [shape: f32[2,128], index: 22, kind: output, shape index: {}]
  %s23 = sld [smem:[#allocation0]]
  $region158: #{tpu_custom_call.1} parent=0
    _
  %s25 = ssub.s32 1, %s23
  %s26 = scalar_select 0, %s25, %s23
  $region1: #{tpu_custom_call.1} parent=0
    #allocation3 [shape = 'u8[12288]{0}', space=vmem, size = 0x3000, scoped, tag = 'input window, operand 0, single buffered']
    #allocation4 [shape = 's32[1]{0}', space=sflag, size = 0x4, scoped, tag = 'scoped memory for tpu_custom_call.1']
    #allocation5 [shape = 's32[1]{0}', space=sflag, size = 0x4, scoped, tag = 'scoped memory for tpu_custom_call.1']
    #allocation6 [shape = 'u8[32768]{0}', space=vmem, size = 0x8000, scoped, tag = 'input window, operand 1, single buffered']
    #allocation7 [shape = 's32[1]{0}', space=sflag, size = 0x4, scoped, tag = 'scoped memory for tpu_custom_call.1']
    #allocation8 [shape = 'u8[1024]{0}', space=vmem, size = 0x400, scoped, tag = 'input window, operand 2, single buffered']
    #allocation9 [shape = 'u8[2048]{0}', space=vmem, size = 0x800, scoped, tag = 'input window, operand 3, single buffered']
    #allocation10 [shape = 's32[1]{0}', space=sflag, size = 0x4, scoped, tag = 'scoped memory for tpu_custom_call.1']
    #allocation11 [shape = 'u8[2048]{0}', space=vmem, size = 0x800, scoped, tag = 'input window, operand 4, single buffered']
    #allocation12 [shape = 'u8[8192]{0}', space=vmem, size = 0x2000, scoped, tag = 'input window, operand 6, single buffered']
    #allocation13 [shape = 's32[1]{0}', space=sflag, size = 0x4, scoped, tag = 'scoped memory for tpu_custom_call.1']
    #allocation14 [shape = 'u8[393216]{0}', space=vmem, size = 0x60000, scoped, tag = 'input window, operand 8, single buffered']
    #allocation15 [shape = 'u8[131072]{0}', space=vmem, size = 0x20000, scoped, tag = 'input window, operand 10, single buffered']
    #allocation16 [shape = 's32[1]{0}', space=sflag, size = 0x4, scoped, tag = 'scoped memory for tpu_custom_call.1']
    #allocation17 [shape = 'u8[2048]{0}', space=vmem, size = 0x800, scoped, tag = 'input window, operand 12, single buffered']
    #allocation18 [shape = 'u8[131072]{0}', space=vmem, size = 0x20000, scoped, tag = 'input window, operand 14, single buffered']
    #allocation19 [shape = 's32[1]{0}', space=sflag, size = 0x4, scoped, tag = 'scoped memory for tpu_custom_call.1']
    #allocation20 [shape = 'u8[2048]{0}', space=vmem, size = 0x800, scoped, tag = 'input window, operand 15, single buffered']
    #allocation21 [shape = 'u8[131072]{0}', space=vmem, size = 0x20000, scoped, tag = 'input window, operand 16, single buffered']
    #allocation22 [shape = 's32[1]{0}', space=sflag, size = 0x4, scoped, tag = 'scoped memory for tpu_custom_call.1']
    #allocation23 [shape = 'u8[2048]{0}', space=vmem, size = 0x800, scoped, tag = 'input window, operand 18, single buffered']
    #allocation24 [shape = 'u8[2048]{0}', space=vmem, size = 0x800, scoped, tag = 'input window, operand 19, single buffered']
    #allocation25 [shape = 's32[1]{0}', space=sflag, size = 0x4, scoped, tag = 'scoped memory for tpu_custom_call.1']
    #allocation26 [shape = 'u8[131072]{0}', space=vmem, size = 0x20000, scoped, tag = 'input window, operand 20, single buffered']
    #allocation27 [shape = 'u8[1024]{0}', space=vmem, size = 0x400, scoped, tag = 'output window, operand 0, single buffered']
    %27 = vsyncpa [#allocation4], 0
    %28 = vsyncpa [#allocation7], 0
    %29 = vsyncpa [#allocation10], 0
    %30 = vsyncpa [#allocation13], 0
    %31 = vsyncpa [#allocation16], 0
    %32 = vsyncpa [#allocation19], 0
    %33 = vsyncpa [#allocation22], 0
    %34 = vsyncpa [#allocation25], 0
    %35 = vsyncpa [#allocation5], 0
    // Predicated region
    $region2: #{tpu_custom_call.1} parent=1 // pred_check
      _
    $region3: #{tpu_custom_call.1} parent=1 // pred_check_branch
      %37 = sbr.rel (0) target = $region5
    $region4: #{tpu_custom_call.1} parent=1 // pred_region
      %39 = vsyncadd [#allocation4], 0
      %s40 = sshll.u32 %s0, 4
      %s41 = int_to_ptr.hbm [resolvable:$true] %s40
      %s42 = sshll.u32 [#allocation3], 4
      %s43 = int_to_ptr.vmem [resolvable:$true] %s42
      %48 = dma.hbm_to_vmem [thread:$0]  %s41, 384, %s43, [#allocation4], 64, 64, 4
    $region5: #{tpu_custom_call.1} parent=1 // pred_fallthru
      _
    // Predicated region
    $region6: #{tpu_custom_call.1} parent=1 // pred_check
      _
    $region7: #{tpu_custom_call.1} parent=1 // pred_check_branch
      %50 = sbr.rel (0) target = $region9
    $region8: #{tpu_custom_call.1} parent=1 // pred_region
      %52 = vsyncadd [#allocation7], 0
      %s53 = sshll.u32 %s1, 4
      %s54 = int_to_ptr.hbm [resolvable:$true] %s53
      %s55 = sshll.u32 [#allocation6], 4
      %s56 = int_to_ptr.vmem [resolvable:$true] %s55
      %61 = dma.hbm_to_vmem [thread:$0]  %s54, 1024, %s56, [#allocation7], 128, 128, 8
    $region9: #{tpu_custom_call.1} parent=1 // pred_fallthru
      _
    // Predicated region
    $region10: #{tpu_custom_call.1} parent=1 // pred_check
      _
    $region11: #{tpu_custom_call.1} parent=1 // pred_check_branch
      %63 = sbr.rel (0) target = $region13
    $region12: #{tpu_custom_call.1} parent=1 // pred_region
      %65 = vsyncadd [#allocation7], 0
      %s67 = sshll.u32 %s2, 4
      %s68 = int_to_ptr.hbm [resolvable:$true] %s67
      %s69 = sshll.u32 [#allocation8], 4
      %s70 = int_to_ptr.vmem [resolvable:$true] %s69
      %72 = dma.hbm_to_vmem [thread:$0]  %s68, 32, %s70, [#allocation7]
    $region13: #{tpu_custom_call.1} parent=1 // pred_fallthru
      _
    // Predicated region
    $region14: #{tpu_custom_call.1} parent=1 // pred_check
      _
    $region15: #{tpu_custom_call.1} parent=1 // pred_check_branch
      %74 = sbr.rel (0) target = $region17
    $region16: #{tpu_custom_call.1} parent=1 // pred_region
      %76 = vsyncadd [#allocation10], 0
      %s78 = sshll.u32 %s3, 4
      %s79 = int_to_ptr.hbm [resolvable:$true] %s78
      %s80 = sshll.u32 [#allocation9], 4
      %s81 = int_to_ptr.vmem [resolvable:$true] %s80
      %83 = dma.hbm_to_vmem [thread:$0]  %s79, 64, %s81, [#allocation10]
    $region17: #{tpu_custom_call.1} parent=1 // pred_fallthru
      _
    // Predicated region
    $region18: #{tpu_custom_call.1} parent=1 // pred_check
      _
    $region19: #{tpu_custom_call.1} parent=1 // pred_check_branch
      %85 = sbr.rel (0) target = $region21
    $region20: #{tpu_custom_call.1} parent=1 // pred_region
      %87 = vsyncadd [#allocation10], 0
      %s89 = sshll.u32 %s4, 4
      %s90 = int_to_ptr.hbm [resolvable:$true] %s89
      %s91 = sshll.u32 [#allocation11], 4
      %s92 = int_to_ptr.vmem [resolvable:$true] %s91
      %94 = dma.hbm_to_vmem [thread:$0]  %s90, 64, %s92, [#allocation10]
    $region21: #{tpu_custom_call.1} parent=1 // pred_fallthru
      _
    // Predicated region
    $region22: #{tpu_custom_call.1} parent=1 // pred_check
      _
    $region23: #{tpu_custom_call.1} parent=1 // pred_check_branch
      %96 = sbr.rel (0) target = $region25
    $region24: #{tpu_custom_call.1} parent=1 // pred_region
      _
    $region25: #{tpu_custom_call.1} parent=1 // pred_fallthru
      _
    // Predicated region
    $region26: #{tpu_custom_call.1} parent=1 // pred_check
      _
    $region27: #{tpu_custom_call.1} parent=1 // pred_check_branch
      %98 = sbr.rel (0) target = $region29
    $region28: #{tpu_custom_call.1} parent=1 // pred_region
      %100 = vsyncadd [#allocation13], 0
      %s101 = sshll.u32 %s6, 4
      %s102 = int_to_ptr.hbm [resolvable:$true] %s101
      %s103 = sshll.u32 [#allocation12], 4
      %s104 = int_to_ptr.vmem [resolvable:$true] %s103
      %109 = dma.hbm_to_vmem [thread:$0]  %s102, 256, %s104, [#allocation13], 64, 64, 4
    $region29: #{tpu_custom_call.1} parent=1 // pred_fallthru
      _
    // Predicated region
    $region30: #{tpu_custom_call.1} parent=1 // pred_check
      _
    $region31: #{tpu_custom_call.1} parent=1 // pred_check_branch
      %111 = sbr.rel (0) target = $region33
    $region32: #{tpu_custom_call.1} parent=1 // pred_region
      _
    $region33: #{tpu_custom_call.1} parent=1 // pred_fallthru
      _
    // Predicated region
    $region34: #{tpu_custom_call.1} parent=1 // pred_check
      _
    $region35: #{tpu_custom_call.1} parent=1 // pred_check_branch
      %113 = sbr.rel (0) target = $region37
    $region36: #{tpu_custom_call.1} parent=1 // pred_region
      %115 = vsyncadd [#allocation13], 0
      %s116 = sshll.u32 %s8, 4
      %s117 = int_to_ptr.hbm [resolvable:$true] %s116
      %s118 = sshll.u32 [#allocation14], 4
      %s119 = int_to_ptr.vmem [resolvable:$true] %s118
      %124 = dma.hbm_to_vmem [thread:$0]  %s117, 12288, %s119, [#allocation13], 192, 192, 12
    $region37: #{tpu_custom_call.1} parent=1 // pred_fallthru
      _
    // Predicated region
    $region38: #{tpu_custom_call.1} parent=1 // pred_check
      _
    $region39: #{tpu_custom_call.1} parent=1 // pred_check_branch
      %126 = sbr.rel (0) target = $region41
    $region40: #{tpu_custom_call.1} parent=1 // pred_region
      _
    $region41: #{tpu_custom_call.1} parent=1 // pred_fallthru
      _
    // Predicated region
    $region42: #{tpu_custom_call.1} parent=1 // pred_check
      _
    $region43: #{tpu_custom_call.1} parent=1 // pred_check_branch
      %128 = sbr.rel (0) target = $region45
    $region44: #{tpu_custom_call.1} parent=1 // pred_region
      %130 = vsyncadd [#allocation16], 0
      %s131 = sshll.u32 %s10, 4
      %s132 = int_to_ptr.hbm [resolvable:$true] %s131
      %s133 = sshll.u32 [#allocation15], 4
      %s134 = int_to_ptr.vmem [resolvable:$true] %s133
      %139 = dma.hbm_to_vmem [thread:$0]  %s132, 4096, %s134, [#allocation16], 64, 64, 4
    $region45: #{tpu_custom_call.1} parent=1 // pred_fallthru
      _
    // Predicated region
    $region46: #{tpu_custom_call.1} parent=1 // pred_check
      _
    $region47: #{tpu_custom_call.1} parent=1 // pred_check_branch
      %141 = sbr.rel (0) target = $region49
    $region48: #{tpu_custom_call.1} parent=1 // pred_region
      _
    $region49: #{tpu_custom_call.1} parent=1 // pred_fallthru
      _
    // Predicated region
    $region50: #{tpu_custom_call.1} parent=1 // pred_check
      _
    $region51: #{tpu_custom_call.1} parent=1 // pred_check_branch
      %143 = sbr.rel (0) target = $region53
    $region52: #{tpu_custom_call.1} parent=1 // pred_region
      %145 = vsyncadd [#allocation16], 0
      %s146 = sshll.u32 %s12, 4
      %s147 = int_to_ptr.hbm [resolvable:$true] %s146
      %s148 = sshll.u32 [#allocation17], 4
      %s149 = int_to_ptr.vmem [resolvable:$true] %s148
      %154 = dma.hbm_to_vmem [thread:$0]  %s147, 64, %s149, [#allocation16], 16, 16, 1
    $region53: #{tpu_custom_call.1} parent=1 // pred_fallthru
      _
    // Predicated region
    $region54: #{tpu_custom_call.1} parent=1 // pred_check
      _
    $region55: #{tpu_custom_call.1} parent=1 // pred_check_branch
      %156 = sbr.rel (0) target = $region57
    $region56: #{tpu_custom_call.1} parent=1 // pred_region
      _
    $region57: #{tpu_custom_call.1} parent=1 // pred_fallthru
      _
    // Predicated region
    $region58: #{tpu_custom_call.1} parent=1 // pred_check
      _
    $region59: #{tpu_custom_call.1} parent=1 // pred_check_branch
      %158 = sbr.rel (0) target = $region61
    $region60: #{tpu_custom_call.1} parent=1 // pred_region
      %160 = vsyncadd [#allocation19], 0
      %s161 = sshll.u32 %s14, 4
      %s162 = int_to_ptr.hbm [resolvable:$true] %s161
      %s163 = sshll.u32 [#allocation18], 4
      %s164 = int_to_ptr.vmem [resolvable:$true] %s163
      %169 = dma.hbm_to_vmem [thread:$0]  %s162, 4096, %s164, [#allocation19], 64, 64, 4
    $region61: #{tpu_custom_call.1} parent=1 // pred_fallthru
      _
    // Predicated region
    $region62: #{tpu_custom_call.1} parent=1 // pred_check
      _
    $region63: #{tpu_custom_call.1} parent=1 // pred_check_branch
      %171 = sbr.rel (0) target = $region65
    $region64: #{tpu_custom_call.1} parent=1 // pred_region
      %173 = vsyncadd [#allocation19], 0
      %s174 = sshll.u32 %s15, 4
      %s175 = int_to_ptr.hbm [resolvable:$true] %s174
      %s176 = sshll.u32 [#allocation20], 4
      %s177 = int_to_ptr.vmem [resolvable:$true] %s176
      %182 = dma.hbm_to_vmem [thread:$0]  %s175, 64, %s177, [#allocation19], 16, 16, 1
    $region65: #{tpu_custom_call.1} parent=1 // pred_fallthru
      _
    // Predicated region
    $region66: #{tpu_custom_call.1} parent=1 // pred_check
      _
    $region67: #{tpu_custom_call.1} parent=1 // pred_check_branch
      %184 = sbr.rel (0) target = $region69
    $region68: #{tpu_custom_call.1} parent=1 // pred_region
      %186 = vsyncadd [#allocation22], 0
      %s187 = sshll.u32 %s16, 4
      %s188 = int_to_ptr.hbm [resolvable:$true] %s187
      %s189 = sshll.u32 [#allocation21], 4
      %s190 = int_to_ptr.vmem [resolvable:$true] %s189
      %195 = dma.hbm_to_vmem [thread:$0]  %s188, 4096, %s190, [#allocation22], 64, 64, 4
    $region69: #{tpu_custom_call.1} parent=1 // pred_fallthru
      _
    // Predicated region
    $region70: #{tpu_custom_call.1} parent=1 // pred_check
      _
    $region71: #{tpu_custom_call.1} parent=1 // pred_check_branch
      %197 = sbr.rel (0) target = $region73
    $region72: #{tpu_custom_call.1} parent=1 // pred_region
      _
    $region73: #{tpu_custom_call.1} parent=1 // pred_fallthru
      _
    // Predicated region
    $region74: #{tpu_custom_call.1} parent=1 // pred_check
      _
    $region75: #{tpu_custom_call.1} parent=1 // pred_check_branch
      %199 = sbr.rel (0) target = $region77
    $region76: #{tpu_custom_call.1} parent=1 // pred_region
      %201 = vsyncadd [#allocation22], 0
      %s202 = sshll.u32 %s18, 4
      %s203 = int_to_ptr.hbm [resolvable:$true] %s202
      %s204 = sshll.u32 [#allocation23], 4
      %s205 = int_to_ptr.vmem [resolvable:$true] %s204
      %210 = dma.hbm_to_vmem [thread:$0]  %s203, 64, %s205, [#allocation22], 16, 16, 1
    $region77: #{tpu_custom_call.1} parent=1 // pred_fallthru
      _
    // Predicated region
    $region78: #{tpu_custom_call.1} parent=1 // pred_check
      _
    $region79: #{tpu_custom_call.1} parent=1 // pred_check_branch
      %212 = sbr.rel (0) target = $region81
    $region80: #{tpu_custom_call.1} parent=1 // pred_region
      %214 = vsyncadd [#allocation25], 0
      %s215 = sshll.u32 %s19, 4
      %s216 = int_to_ptr.hbm [resolvable:$true] %s215
      %s217 = sshll.u32 [#allocation24], 4
      %s218 = int_to_ptr.vmem [resolvable:$true] %s217
      %223 = dma.hbm_to_vmem [thread:$0]  %s216, 64, %s218, [#allocation25], 16, 16, 1
    $region81: #{tpu_custom_call.1} parent=1 // pred_fallthru
      _
    // Predicated region
    $region82: #{tpu_custom_call.1} parent=1 // pred_check
      _
    $region83: #{tpu_custom_call.1} parent=1 // pred_check_branch
      %225 = sbr.rel (0) target = $region85
    $region84: #{tpu_custom_call.1} parent=1 // pred_region
      %227 = vsyncadd [#allocation25], 0
      %s228 = sshll.u32 %s20, 4
      %s229 = int_to_ptr.hbm [resolvable:$true] %s228
      %s230 = sshll.u32 [#allocation26], 4
      %s231 = int_to_ptr.vmem [resolvable:$true] %s230
      %236 = dma.hbm_to_vmem [thread:$0]  %s229, 4096, %s231, [#allocation25], 64, 64, 4
    $region85: #{tpu_custom_call.1} parent=1 // pred_fallthru
      _
    // Predicated region
    $region86: #{tpu_custom_call.1} parent=1 // pred_check
      _
    $region87: #{tpu_custom_call.1} parent=1 // pred_check_branch
      %238 = sbr.rel (0) target = $region89
    $region88: #{tpu_custom_call.1} parent=1 // pred_region
      _
    $region89: #{tpu_custom_call.1} parent=1 // pred_fallthru
      _
    // Predicated region
    $region90: #{tpu_custom_call.1} parent=1 // pred_check
      _
    $region91: #{tpu_custom_call.1} parent=1 // pred_check_branch
      %240 = sbr.rel (0) target = $region93
    $region92: #{tpu_custom_call.1} parent=1 // pred_region
      %242 = dma.done [#allocation4], 384
    $region93: #{tpu_custom_call.1} parent=1 // pred_fallthru
      _
    // Predicated region
    $region94: #{tpu_custom_call.1} parent=1 // pred_check
      _
    $region95: #{tpu_custom_call.1} parent=1 // pred_check_branch
      %244 = sbr.rel (0) target = $region97
    $region96: #{tpu_custom_call.1} parent=1 // pred_region
      %246 = dma.done [#allocation7], 1024
    $region97: #{tpu_custom_call.1} parent=1 // pred_fallthru
      _
    // Predicated region
    $region98: #{tpu_custom_call.1} parent=1 // pred_check
      _
    $region99: #{tpu_custom_call.1} parent=1 // pred_check_branch
      %248 = sbr.rel (0) target = $region101
    $region100: #{tpu_custom_call.1} parent=1 // pred_region
      %250 = dma.done [#allocation7], 32
    $region101: #{tpu_custom_call.1} parent=1 // pred_fallthru
      _
    // Predicated region
    $region102: #{tpu_custom_call.1} parent=1 // pred_check
      _
    $region103: #{tpu_custom_call.1} parent=1 // pred_check_branch
      %252 = sbr.rel (0) target = $region105
    $region104: #{tpu_custom_call.1} parent=1 // pred_region
      %254 = dma.done [#allocation10], 64
    $region105: #{tpu_custom_call.1} parent=1 // pred_fallthru
      _
    // Predicated region
    $region106: #{tpu_custom_call.1} parent=1 // pred_check
      _
    $region107: #{tpu_custom_call.1} parent=1 // pred_check_branch
      %256 = sbr.rel (0) target = $region109
    $region108: #{tpu_custom_call.1} parent=1 // pred_region
      %258 = dma.done [#allocation10], 64
    $region109: #{tpu_custom_call.1} parent=1 // pred_fallthru
      _
    // Predicated region
    $region110: #{tpu_custom_call.1} parent=1 // pred_check
      _
    $region111: #{tpu_custom_call.1} parent=1 // pred_check_branch
      %260 = sbr.rel (0) target = $region113
    $region112: #{tpu_custom_call.1} parent=1 // pred_region
      %262 = dma.done [#allocation13], 256
    $region113: #{tpu_custom_call.1} parent=1 // pred_fallthru
      _
    // Predicated region
    $region114: #{tpu_custom_call.1} parent=1 // pred_check
      _
    $region115: #{tpu_custom_call.1} parent=1 // pred_check_branch
      %264 = sbr.rel (0) target = $region117
    $region116: #{tpu_custom_call.1} parent=1 // pred_region
      %266 = dma.done [#allocation13], 12288
    $region117: #{tpu_custom_call.1} parent=1 // pred_fallthru
      _
    // Predicated region
    $region118: #{tpu_custom_call.1} parent=1 // pred_check
      _
    $region119: #{tpu_custom_call.1} parent=1 // pred_check_branch
      %268 = sbr.rel (0) target = $region121
    $region120: #{tpu_custom_call.1} parent=1 // pred_region
      %270 = dma.done [#allocation16], 4096
    $region121: #{tpu_custom_call.1} parent=1 // pred_fallthru
      _
    // Predicated region
    $region122: #{tpu_custom_call.1} parent=1 // pred_check
      _
    $region123: #{tpu_custom_call.1} parent=1 // pred_check_branch
      %272 = sbr.rel (0) target = $region125
    $region124: #{tpu_custom_call.1} parent=1 // pred_region
      %274 = dma.done [#allocation16], 64
    $region125: #{tpu_custom_call.1} parent=1 // pred_fallthru
      _
    // Predicated region
    $region126: #{tpu_custom_call.1} parent=1 // pred_check
      _
    $region127: #{tpu_custom_call.1} parent=1 // pred_check_branch
      %276 = sbr.rel (0) target = $region129
    $region128: #{tpu_custom_call.1} parent=1 // pred_region
      %278 = dma.done [#allocation19], 4096
    $region129: #{tpu_custom_call.1} parent=1 // pred_fallthru
      _
    // Predicated region
    $region130: #{tpu_custom_call.1} parent=1 // pred_check
      _
    $region131: #{tpu_custom_call.1} parent=1 // pred_check_branch
      %280 = sbr.rel (0) target = $region133
    $region132: #{tpu_custom_call.1} parent=1 // pred_region
      %282 = dma.done [#allocation19], 64
    $region133: #{tpu_custom_call.1} parent=1 // pred_fallthru
      _
    // Predicated region
    $region134: #{tpu_custom_call.1} parent=1 // pred_check
      _
    $region135: #{tpu_custom_call.1} parent=1 // pred_check_branch
      %284 = sbr.rel (0) target = $region137
    $region136: #{tpu_custom_call.1} parent=1 // pred_region
      %286 = dma.done [#allocation22], 4096
    $region137: #{tpu_custom_call.1} parent=1 // pred_fallthru
      _
    // Predicated region
    $region138: #{tpu_custom_call.1} parent=1 // pred_check
      _
    $region139: #{tpu_custom_call.1} parent=1 // pred_check_branch
      %288 = sbr.rel (0) target = $region141
    $region140: #{tpu_custom_call.1} parent=1 // pred_region
      %290 = dma.done [#allocation22], 64
    $region141: #{tpu_custom_call.1} parent=1 // pred_fallthru
      _
    // Predicated region
    $region142: #{tpu_custom_call.1} parent=1 // pred_check
      _
    $region143: #{tpu_custom_call.1} parent=1 // pred_check_branch
      %292 = sbr.rel (0) target = $region145
    $region144: #{tpu_custom_call.1} parent=1 // pred_region
      %294 = dma.done [#allocation25], 64
    $region145: #{tpu_custom_call.1} parent=1 // pred_fallthru
      _
    // Predicated region
    $region146: #{tpu_custom_call.1} parent=1 // pred_check
      _
    $region147: #{tpu_custom_call.1} parent=1 // pred_check_branch
      %296 = sbr.rel (0) target = $region149
    $region148: #{tpu_custom_call.1} parent=1 // pred_region
      %298 = dma.done [#allocation25], 4096
    $region149: #{tpu_custom_call.1} parent=1 // pred_fallthru
      _
    %v300 = vld [vmem:[#allocation3] sm:$0xf]
    %v301 = vld [vmem:[#allocation3 + $0x4] sm:$0xf]
    %v302 = vld [vmem:[#allocation3 + $0x8] sm:$0xf]
    %v303 = vld [vmem:[#allocation3 + $0xc] sm:$0xf]
    %v304 = vld [vmem:[#allocation3 + $0x10] sm:$0xf]
    %v305 = vld [vmem:[#allocation3 + $0x14] sm:$0xf]
    %vm306 = vcmask 519168
    %v307 = vsel %vm306, %v300, 0.0
    %v308 = vrot.slane %v307, 4
    %v309 = vadd.f32 %v307, %v308
    %v310 = vrot.slane %v309, 2
    %v311 = vadd.f32 %v309, %v310
    %v312 = vrot.slane %v311, 1
    %v313 = vadd.f32 %v311, %v312
    %v314 = vsel %vm306, %v301, 0.0
    %v315 = vrot.slane %v314, 4
    %v316 = vadd.f32 %v314, %v315
    %v317 = vrot.slane %v316, 2
    %v318 = vadd.f32 %v316, %v317
    %v319 = vrot.slane %v318, 1
    %v320 = vadd.f32 %v318, %v319
    %v321 = vsel %vm306, %v302, 0.0
    %v322 = vrot.slane %v321, 4
    %v323 = vadd.f32 %v321, %v322
    %v324 = vrot.slane %v323, 2
    %v325 = vadd.f32 %v323, %v324
    %v326 = vrot.slane %v325, 1
    %v327 = vadd.f32 %v325, %v326
    %v328 = vsel %vm306, %v303, 0.0
    %v329 = vrot.slane %v328, 4
    %v330 = vadd.f32 %v328, %v329
    %v331 = vrot.slane %v330, 2
    %v332 = vadd.f32 %v330, %v331
    %v333 = vrot.slane %v332, 1
    %v334 = vadd.f32 %v332, %v333
    %v335 = vsel %vm306, %v304, 0.0
    %v336 = vrot.slane %v335, 4
    %v337 = vadd.f32 %v335, %v336
    %v338 = vrot.slane %v337, 2
    %v339 = vadd.f32 %v337, %v338
    %v340 = vrot.slane %v339, 1
    %v341 = vadd.f32 %v339, %v340
    %v342 = vsel %vm306, %v305, 0.0
    %v343 = vrot.slane %v342, 4
    %v344 = vadd.f32 %v342, %v343
    %v345 = vrot.slane %v344, 2
    %v346 = vadd.f32 %v344, %v345
    %v347 = vrot.slane %v346, 1
    %v348 = vadd.f32 %v346, %v347
    %v349 = vrcp.pop 4.0
    %v350 = vmul.f32 4.0, %v349
    %v351 = vsub.f32 1.0, %v350
    %v352 = vmul.f32 %v349, %v351
    %v353 = vadd.f32 %v349, %v352
    %vm354 = vweird.f32 %v349
    %v355 = vsel %vm354, %v349, %v353
    %v356 = vmul.f32 %v313, %v355
    %v357 = vmul.f32 %v320, %v355
    %v358 = vmul.f32 %v327, %v355
    %v359 = vmul.f32 %v334, %v355
    %v360 = vmul.f32 %v341, %v355
    %v361 = vmul.f32 %v348, %v355
    %v362 = vpack.c.bf16 %v356, %v356
    %v363 = vpack.c.bf16 %v357, %v357
    %v364 = vpack.c.bf16 %v358, %v358
    %v365 = vpack.c.bf16 %v359, %v359
    %v366 = vpack.c.bf16 %v360, %v360
    %v367 = vpack.c.bf16 %v361, %v361
    %v368 = vld [vmem:[#allocation6] sm:$0xff]
    %v369 = vld [vmem:[#allocation6 + $0x8] sm:$0xff]
    %v370 = vld [vmem:[#allocation6 + $0x10] sm:$0xff]
    %v371 = vld [vmem:[#allocation6 + $0x18] sm:$0xff]
    %v372 = vld [vmem:[#allocation6 + $0x20] sm:$0xff]
    %v373 = vld [vmem:[#allocation6 + $0x28] sm:$0xff]
    %v374 = vld [vmem:[#allocation6 + $0x30] sm:$0xff]
    %v375 = vld [vmem:[#allocation6 + $0x38] sm:$0xff]
    %v376 = vld [vmem:[#allocation8] sm:$0x3]
    %v378 = vperm.slane %v376, 0
    %v379 = vperm.slane %v376, 1
    %v388 = vunpack.c.l.b16 %v362
    %v389 = vunpack.c.l.b16 %v363
    %v390 = vunpack.c.l.b16 %v364
    %v391 = vunpack.c.l.b16 %v365
    %v392 = vunpack.c.l.b16 %v366
    %v393 = vunpack.c.l.b16 %v367
    %vm394 = vcmask 1041409
    %v395 = vsel %vm394, %v389, %v388
    %vm396 = vcmask 1042434
    %v397 = vsel %vm396, %v390, %v395
    %vm398 = vcmask 1043459
    %v399 = vsel %vm398, %v391, %v397
    %vm400 = vcmask 1044484
    %v401 = vsel %vm400, %v392, %v399
    %vm402 = vcmask 1045509
    %v403 = vsel %vm402, %v393, %v401
    %v404 = vpack.c.b16 %v403, %v403
    %v413 = vunpack.c.l.b16 %v368
    %v414 = vunpack.c.h.b16 %v368
    %v415 = vunpack.c.l.b16 %v369
    %v416 = vunpack.c.h.b16 %v369
    %v417 = vunpack.c.l.b16 %v370
    %v418 = vunpack.c.h.b16 %v370
    %v419 = vunpack.c.l.b16 %v371
    %v420 = vunpack.c.h.b16 %v371
    %v421 = vunpack.c.l.b16 %v372
    %v422 = vunpack.c.h.b16 %v372
    %v423 = vunpack.c.l.b16 %v373
    %v424 = vunpack.c.h.b16 %v373
    %v425 = vunpack.c.l.b16 %v374
    %v426 = vunpack.c.h.b16 %v374
    %v427 = vunpack.c.l.b16 %v375
    %v428 = vunpack.c.h.b16 %v375
    %v429 = vpack.c.b16 %v415, %v413
    %v430 = vpack.c.b16 %v416, %v414
    %v431 = vpack.c.b16 %v419, %v417
    %v432 = vpack.c.b16 %v420, %v418
    %v433 = vpack.c.b16 %v423, %v421
    %v434 = vpack.c.b16 %v424, %v422
    %v435 = vpack.c.b16 %v427, %v425
    %v436 = vpack.c.b16 %v428, %v426
    %vm445 = vcmask 523264
    %v447 = vsel %vm445, %v404, 0
    %449 = vmatpush.bf16.msra.mxu0 0
    %450 = vmatpush.bf16.msra.mxu0 0
    %451 = vmatpush.bf16.msra.mxu0 0
    %452 = vmatpush.bf16.msra.mxu0 0
    %453 = vmatpush.bf16.msra.mxu0 %v435
    %454 = vmatpush.bf16.msra.mxu0 %v433
    %455 = vmatpush.bf16.msra.mxu0 %v431
    %456 = vmatpush.bf16.msra.mxu0 %v429
    %457 = vmatmul.bf16.gmra.mxu0 %v447
    %v458 = vpop.f32.mrf.mxu0
    %v459 = vadd.f32 %v378, %v458
    %v460 = vpop.f32.mrf.mxu0
    %461 = vdwg.mxu0
    %462 = vmatpush.bf16.msra.mxu0 0
    %463 = vmatpush.bf16.msra.mxu0 0
    %464 = vmatpush.bf16.msra.mxu0 0
    %465 = vmatpush.bf16.msra.mxu0 0
    %466 = vmatpush.bf16.msra.mxu0 %v436
    %467 = vmatpush.bf16.msra.mxu0 %v434
    %468 = vmatpush.bf16.msra.mxu0 %v432
    %469 = vmatpush.bf16.msra.mxu0 %v430
    %470 = vmatmul.bf16.gmra.mxu0 %v447
    %v471 = vpop.f32.mrf.mxu0
    %v472 = vadd.f32 %v379, %v471
    %v473 = vpop.f32.mrf.mxu0
    %474 = vdwg.mxu0
    %v475 = vpack.c.bf16 %v459, %v459
    %v476 = vpack.c.bf16 %v472, %v472
    %v477 = vld [vmem:[#allocation9] sm:$0xf]
    %v478 = vld [vmem:[#allocation11] sm:$0xf]
    %vm479 = vcmask 48128
    %v481 = vsel %vm479, %v478, 0
    %vm483 = vcmask 1042432
    %v485 = vsel %vm483, %v476, 0
    %487 = vmatpush.bf16.msra.mxu0 0
    %488 = vmatpush.bf16.msra.mxu0 0
    %489 = vmatpush.bf16.msra.mxu0 0
    %490 = vmatpush.bf16.msra.mxu0 0
    %491 = vmatpush.bf16.msra.mxu0 0
    %492 = vmatpush.bf16.msra.mxu0 0
    %493 = vmatpush.bf16.msra.mxu0 0
    %494 = vmatpush.bf16.msra.mxu0 %v485
    %495 = vmatmul.bf16.gmra.mxu0 %v481
    %v496 = vpop.f32.mrf.mxu0
    %v497 = vadd.f32 0.0, %v496
    %v498 = vpop.f32.mrf.mxu0
    %499 = vdwg.mxu0
    %v501 = vsel %vm479, %v477, 0
    %v504 = vsel %vm483, %v475, 0
    %506 = vmatpush.bf16.msra.mxu0 0
    %507 = vmatpush.bf16.msra.mxu0 0
    %508 = vmatpush.bf16.msra.mxu0 0
    %509 = vmatpush.bf16.msra.mxu0 0
    %510 = vmatpush.bf16.msra.mxu0 0
    %511 = vmatpush.bf16.msra.mxu0 0
    %512 = vmatpush.bf16.msra.mxu0 0
    %513 = vmatpush.bf16.msra.mxu0 %v504
    %514 = vmatmul.bf16.gmra.mxu0 %v501
    %v515 = vpop.f32.mrf.mxu0
    %v516 = vadd.f32 %v497, %v515
    %v517 = vpop.f32.mrf.mxu0
    %518 = vdwg.mxu0
    %v519 = vld [vmem:[%s5] sm:$0xff]
    %v520 = vld [vmem:[%s5 + $0x8] sm:$0xff]
    %v521 = vld [vmem:[%s5 + $0x10] sm:$0xff]
    %v522 = vld [vmem:[%s5 + $0x18] sm:$0xff]
    %v523 = vld [vmem:[#allocation12] sm:$0xf]
    %v524 = vld [vmem:[#allocation12 + $0x4] sm:$0xf]
    %v525 = vld [vmem:[#allocation12 + $0x8] sm:$0xf]
    %v526 = vld [vmem:[#allocation12 + $0xc] sm:$0xf]
    %v527 = vld [vmem:[%s7] sm:$0xff]
    %v528 = vld [vmem:[%s7 + $0x8] sm:$0xff]
    %v529 = vld [vmem:[%s7 + $0x10] sm:$0xff]
    %v530 = vld [vmem:[%s7 + $0x18] sm:$0xff]
    %v531 = vpack.c.bf16 %v516, %v516
    %v532 = vld [vmem:[#allocation14] sm:$0xff]
    %v533 = vld [vmem:[#allocation14 + $0x8] sm:$0xf]
    %v534 = vld [vmem:[#allocation14 + $0xc] sm:$0xff]
    %v535 = vld [vmem:[#allocation14 + $0x14] sm:$0xf]
    %v536 = vld [vmem:[#allocation14 + $0x18] sm:$0xff]
    %v537 = vld [vmem:[#allocation14 + $0x20] sm:$0xf]
    %v538 = vld [vmem:[#allocation14 + $0x24] sm:$0xff]
    %v539 = vld [vmem:[#allocation14 + $0x2c] sm:$0xf]
    %v540 = vld [vmem:[#allocation14 + $0x30] sm:$0xff]
    %v541 = vld [vmem:[#allocation14 + $0x38] sm:$0xf]
    %v542 = vld [vmem:[#allocation14 + $0x3c] sm:$0xff]
    %v543 = vld [vmem:[#allocation14 + $0x44] sm:$0xf]
    %v544 = vld [vmem:[#allocation14 + $0x48] sm:$0xff]
    %v545 = vld [vmem:[#allocation14 + $0x50] sm:$0xf]
    %v546 = vld [vmem:[#allocation14 + $0x54] sm:$0xff]
    %v547 = vld [vmem:[#allocation14 + $0x5c] sm:$0xf]
    %v548 = vld [vmem:[#allocation14 + $0x60] sm:$0xff]
    %v549 = vld [vmem:[#allocation14 + $0x68] sm:$0xf]
    %v550 = vld [vmem:[#allocation14 + $0x6c] sm:$0xff]
    %v551 = vld [vmem:[#allocation14 + $0x74] sm:$0xf]
    %v552 = vld [vmem:[#allocation14 + $0x78] sm:$0xff]
    %v553 = vld [vmem:[#allocation14 + $0x80] sm:$0xf]
    %v554 = vld [vmem:[#allocation14 + $0x84] sm:$0xff]
    %v555 = vld [vmem:[#allocation14 + $0x8c] sm:$0xf]
    %v556 = vld [vmem:[#allocation14 + $0x90] sm:$0xff]
    %v557 = vld [vmem:[#allocation14 + $0x98] sm:$0xf]
    %v558 = vld [vmem:[#allocation14 + $0x9c] sm:$0xff]
    %v559 = vld [vmem:[#allocation14 + $0xa4] sm:$0xf]
    %v560 = vld [vmem:[#allocation14 + $0xa8] sm:$0xff]
    %v561 = vld [vmem:[#allocation14 + $0xb0] sm:$0xf]
    %v562 = vld [vmem:[#allocation14 + $0xb4] sm:$0xff]
    %v563 = vld [vmem:[#allocation14 + $0xbc] sm:$0xf]
    %v564 = vld [vmem:[%s9] sm:$0x7]
    %v566 = vperm.slane %v564, 0
    %v567 = vperm.slane %v564, 1
    %v568 = vperm.slane %v564, 2
    %v604 = vunpack.c.l.b16 %v532
    %v605 = vunpack.c.h.b16 %v532
    %v606 = vunpack.c.l.b16 %v533
    %v607 = vunpack.c.l.b16 %v534
    %v608 = vunpack.c.h.b16 %v534
    %v609 = vunpack.c.l.b16 %v535
    %v610 = vunpack.c.l.b16 %v536
    %v611 = vunpack.c.h.b16 %v536
    %v612 = vunpack.c.l.b16 %v537
    %v613 = vunpack.c.l.b16 %v538
    %v614 = vunpack.c.h.b16 %v538
    %v615 = vunpack.c.l.b16 %v539
    %v616 = vunpack.c.l.b16 %v540
    %v617 = vunpack.c.h.b16 %v540
    %v618 = vunpack.c.l.b16 %v541
    %v619 = vunpack.c.l.b16 %v542
    %v620 = vunpack.c.h.b16 %v542
    %v621 = vunpack.c.l.b16 %v543
    %v622 = vunpack.c.l.b16 %v544
    %v623 = vunpack.c.h.b16 %v544
    %v624 = vunpack.c.l.b16 %v545
    %v625 = vunpack.c.l.b16 %v546
    %v626 = vunpack.c.h.b16 %v546
    %v627 = vunpack.c.l.b16 %v547
    %v628 = vunpack.c.l.b16 %v548
    %v629 = vunpack.c.h.b16 %v548
    %v630 = vunpack.c.l.b16 %v549
    %v631 = vunpack.c.l.b16 %v550
    %v632 = vunpack.c.h.b16 %v550
    %v633 = vunpack.c.l.b16 %v551
    %v634 = vunpack.c.l.b16 %v552
    %v635 = vunpack.c.h.b16 %v552
    %v636 = vunpack.c.l.b16 %v553
    %v637 = vunpack.c.l.b16 %v554
    %v638 = vunpack.c.h.b16 %v554
    %v639 = vunpack.c.l.b16 %v555
    %v640 = vunpack.c.l.b16 %v556
    %v641 = vunpack.c.h.b16 %v556
    %v642 = vunpack.c.l.b16 %v557
    %v643 = vunpack.c.l.b16 %v558
    %v644 = vunpack.c.h.b16 %v558
    %v645 = vunpack.c.l.b16 %v559
    %v646 = vunpack.c.l.b16 %v560
    %v647 = vunpack.c.h.b16 %v560
    %v648 = vunpack.c.l.b16 %v561
    %v649 = vunpack.c.l.b16 %v562
    %v650 = vunpack.c.h.b16 %v562
    %v651 = vunpack.c.l.b16 %v563
    %v652 = vpack.c.b16 %v607, %v604
    %v653 = vpack.c.b16 %v608, %v605
    %v654 = vpack.c.b16 %v609, %v606
    %v655 = vpack.c.b16 %v613, %v610
    %v656 = vpack.c.b16 %v614, %v611
    %v657 = vpack.c.b16 %v615, %v612
    %v658 = vpack.c.b16 %v619, %v616
    %v659 = vpack.c.b16 %v620, %v617
    %v660 = vpack.c.b16 %v621, %v618
    %v661 = vpack.c.b16 %v625, %v622
    %v662 = vpack.c.b16 %v626, %v623
    %v663 = vpack.c.b16 %v627, %v624
    %v664 = vpack.c.b16 %v631, %v628
    %v665 = vpack.c.b16 %v632, %v629
    %v666 = vpack.c.b16 %v633, %v630
    %v667 = vpack.c.b16 %v637, %v634
    %v668 = vpack.c.b16 %v638, %v635
    %v669 = vpack.c.b16 %v639, %v636
    %v670 = vpack.c.b16 %v643, %v640
    %v671 = vpack.c.b16 %v644, %v641
    %v672 = vpack.c.b16 %v645, %v642
    %v673 = vpack.c.b16 %v649, %v646
    %v674 = vpack.c.b16 %v650, %v647
    %v675 = vpack.c.b16 %v651, %v648
    %700 = vmatpush.bf16.msra.mxu0 %v673
    %701 = vmatpush.bf16.msra.mxu0 %v670
    %702 = vmatpush.bf16.msra.mxu0 %v667
    %703 = vmatpush.bf16.msra.mxu0 %v664
    %704 = vmatpush.bf16.msra.mxu0 %v661
    %705 = vmatpush.bf16.msra.mxu0 %v658
    %706 = vmatpush.bf16.msra.mxu0 %v655
    %707 = vmatpush.bf16.msra.mxu0 %v652
    %708 = vmatmul.bf16.gmra.mxu0 %v531
    %v709 = vpop.f32.mrf.mxu0
    %v710 = vadd.f32 %v566, %v709
    %v711 = vpop.f32.mrf.mxu0
    %712 = vdwg.mxu0
    %713 = vmatpush.bf16.msra.mxu0 %v674
    %714 = vmatpush.bf16.msra.mxu0 %v671
    %715 = vmatpush.bf16.msra.mxu0 %v668
    %716 = vmatpush.bf16.msra.mxu0 %v665
    %717 = vmatpush.bf16.msra.mxu0 %v662
    %718 = vmatpush.bf16.msra.mxu0 %v659
    %719 = vmatpush.bf16.msra.mxu0 %v656
    %720 = vmatpush.bf16.msra.mxu0 %v653
    %721 = vmatmul.bf16.gmra.mxu0 %v531
    %v722 = vpop.f32.mrf.mxu0
    %v723 = vadd.f32 %v567, %v722
    %v724 = vpop.f32.mrf.mxu0
    %725 = vdwg.mxu0
    %726 = vmatpush.bf16.msra.mxu0 %v675
    %727 = vmatpush.bf16.msra.mxu0 %v672
    %728 = vmatpush.bf16.msra.mxu0 %v669
    %729 = vmatpush.bf16.msra.mxu0 %v666
    %730 = vmatpush.bf16.msra.mxu0 %v663
    %731 = vmatpush.bf16.msra.mxu0 %v660
    %732 = vmatpush.bf16.msra.mxu0 %v657
    %733 = vmatpush.bf16.msra.mxu0 %v654
    %734 = vmatmul.bf16.gmra.mxu0 %v531
    %v735 = vpop.f32.mrf.mxu0
    %v736 = vadd.f32 %v568, %v735
    %v737 = vpop.f32.mrf.mxu0
    %738 = vdwg.mxu0
    %v739 = vmul.f32 %v710, %v519
    %v740 = vmul.f32 %v710, %v520
    %v741 = vmul.f32 %v710, %v521
    %v742 = vmul.f32 %v710, %v522
    %v743 = vpack.c.bf16 %v740, %v739
    %v744 = vpack.c.bf16 %v742, %v741
    %v745 = vpack.c.bf16 %v723, %v723
    %746 = vmatpush.bf16.xpose.msra.mxu0 0
    %747 = vmatpush.bf16.xpose.msra.mxu0 0
    %748 = vmatpush.bf16.xpose.msra.mxu0 0
    %749 = vmatpush.bf16.xpose.msra.mxu0 0
    %750 = vmatpush.bf16.xpose.msra.mxu0 0
    %751 = vmatpush.bf16.xpose.msra.mxu0 0
    %752 = vmatpush.bf16.xpose.msra.mxu0 0
    %753 = vmatpush.bf16.xpose.msra.mxu0 %v745
    %754 = vmatmul.bf16.gmra.mxu0 %v743
    %v755 = vpop.f32.mrf.mxu0
    %v756 = vadd.f32 %v527, %v755
    %v757 = vpop.f32.mrf.mxu0
    %v758 = vadd.f32 %v528, %v757
    %759 = vmatmul.bf16.gmra.mxu0 %v744
    %v760 = vpop.f32.mrf.mxu0
    %v761 = vadd.f32 %v529, %v760
    %v762 = vpop.f32.mrf.mxu0
    %v763 = vadd.f32 %v530, %v762
    %764 = vdwg.mxu0
    %vm765 = vcmask 64512
    %v766 = vsel %vm765, %v756, -inf
    %767 = vmax.xlane.f32.xlu0 %v766
    %v768 = vpop.xlane.xlu0 %767
    %v769 = vsel %vm765, %v758, -inf
    %770 = vmax.xlane.f32.xlu0 %v769
    %v771 = vpop.xlane.xlu0 %770
    %v772 = vsel %vm765, %v761, -inf
    %773 = vmax.xlane.f32.xlu0 %v772
    %v774 = vpop.xlane.xlu0 %773
    %v775 = vsel %vm765, %v763, -inf
    %776 = vmax.xlane.f32.xlu0 %v775
    %v777 = vpop.xlane.xlu0 %776
    %v778 = vsub.f32 %v756, %v768
    %v779 = vsub.f32 %v758, %v771
    %v780 = vsub.f32 %v761, %v774
    %v781 = vsub.f32 %v763, %v777
    %v782 = vmul.f32 %v778, 1.442695
    %v783 = vpow.pop %v782
    %v784 = vmul.f32 %v779, 1.442695
    %v785 = vpow.pop %v784
    %v786 = vmul.f32 %v780, 1.442695
    %v787 = vpow.pop %v786
    %v788 = vmul.f32 %v781, 1.442695
    %v789 = vpow.pop %v788
    %v790 = vsel %vm765, %v783, 0.0
    %791 = vadd.xlane.f32.xlu0 %v790
    %v792 = vpop.xlane.xlu0 %791
    %v793 = vsel %vm765, %v785, 0.0
    %794 = vadd.xlane.f32.xlu0 %v793
    %v795 = vpop.xlane.xlu0 %794
    %v796 = vsel %vm765, %v787, 0.0
    %797 = vadd.xlane.f32.xlu0 %v796
    %v798 = vpop.xlane.xlu0 %797
    %v799 = vsel %vm765, %v789, 0.0
    %800 = vadd.xlane.f32.xlu0 %v799
    %v801 = vpop.xlane.xlu0 %800
    %v802 = vrcp.pop %v792
    %v803 = vrcp.pop %v795
    %v804 = vrcp.pop %v798
    %v805 = vrcp.pop %v801
    %v806 = vmul.f32 %v783, %v802
    %v807 = vmul.f32 %v785, %v803
    %v808 = vmul.f32 %v787, %v804
    %v809 = vmul.f32 %v789, %v805
    %v810 = vpack.c.bf16 %v807, %v806
    %v811 = vpack.c.bf16 %v809, %v808
    %v812 = vpack.c.bf16 %v736, %v736
    %v814 = vsel %vm765, %v810, 0
    %v817 = vsel %vm765, %v811, 0
    %vm819 = vcmask 1043456
    %v821 = vsel %vm819, %v812, 0
    %823 = vmatpush.bf16.msra.mxu0 0
    %824 = vmatpush.bf16.msra.mxu0 0
    %825 = vmatpush.bf16.msra.mxu0 0
    %826 = vmatpush.bf16.msra.mxu0 0
    %827 = vmatpush.bf16.msra.mxu0 0
    %828 = vmatpush.bf16.msra.mxu0 0
    %829 = vmatpush.bf16.msra.mxu0 0
    %830 = vmatpush.bf16.msra.mxu0 %v821
    %831 = vmatmul.bf16.gmra.mxu0 %v814
    %v832 = vpop.f32.mrf.mxu0
    %v833 = vadd.f32 0.0, %v832
    %v834 = vpop.f32.mrf.mxu0
    %v835 = vadd.f32 0.0, %v834
    %836 = vmatmul.bf16.gmra.mxu0 %v817
    %v837 = vpop.f32.mrf.mxu0
    %v838 = vadd.f32 0.0, %v837
    %v839 = vpop.f32.mrf.mxu0
    %v840 = vadd.f32 0.0, %v839
    %841 = vdwg.mxu0
    %v842 = vunpack.c.l.bf16 %v523
    %v843 = vunpack.c.l.bf16 %v524
    %v844 = vunpack.c.l.bf16 %v525
    %v845 = vunpack.c.l.bf16 %v526
    %v846 = vmul.f32 %v833, %v842
    %v847 = vmul.f32 %v835, %v843
    %v848 = vmul.f32 %v838, %v844
    %v849 = vmul.f32 %v840, %v845
    %v850 = vadd.f32 %v846, %v847
    %v851 = vadd.f32 %v850, %v848
    %v852 = vadd.f32 %v851, %v849
    %v853 = vpack.c.bf16 %v852, %v852
    %v854 = vld [vmem:[#allocation15] sm:$0xf]
    %v855 = vld [vmem:[#allocation15 + $0x4] sm:$0xf]
    %v856 = vld [vmem:[#allocation15 + $0x8] sm:$0xf]
    %v857 = vld [vmem:[#allocation15 + $0xc] sm:$0xf]
    %v858 = vld [vmem:[#allocation15 + $0x10] sm:$0xf]
    %v859 = vld [vmem:[#allocation15 + $0x14] sm:$0xf]
    %v860 = vld [vmem:[#allocation15 + $0x18] sm:$0xf]
    %v861 = vld [vmem:[#allocation15 + $0x1c] sm:$0xf]
    %v862 = vld [vmem:[#allocation15 + $0x20] sm:$0xf]
    %v863 = vld [vmem:[#allocation15 + $0x24] sm:$0xf]
    %v864 = vld [vmem:[#allocation15 + $0x28] sm:$0xf]
    %v865 = vld [vmem:[#allocation15 + $0x2c] sm:$0xf]
    %v866 = vld [vmem:[#allocation15 + $0x30] sm:$0xf]
    %v867 = vld [vmem:[#allocation15 + $0x34] sm:$0xf]
    %v868 = vld [vmem:[#allocation15 + $0x38] sm:$0xf]
    %v869 = vld [vmem:[#allocation15 + $0x3c] sm:$0xf]
    %v870 = vld [vmem:[%s11] sm:$0x1]
    %v872 = vperm.slane %v870, 0
    %v890 = vunpack.c.l.b16 %v854
    %v891 = vunpack.c.l.b16 %v855
    %v892 = vunpack.c.l.b16 %v856
    %v893 = vunpack.c.l.b16 %v857
    %v894 = vunpack.c.l.b16 %v858
    %v895 = vunpack.c.l.b16 %v859
    %v896 = vunpack.c.l.b16 %v860
    %v897 = vunpack.c.l.b16 %v861
    %v898 = vunpack.c.l.b16 %v862
    %v899 = vunpack.c.l.b16 %v863
    %v900 = vunpack.c.l.b16 %v864
    %v901 = vunpack.c.l.b16 %v865
    %v902 = vunpack.c.l.b16 %v866
    %v903 = vunpack.c.l.b16 %v867
    %v904 = vunpack.c.l.b16 %v868
    %v905 = vunpack.c.l.b16 %v869
    %v906 = vpack.c.b16 %v891, %v890
    %v907 = vpack.c.b16 %v893, %v892
    %v908 = vpack.c.b16 %v895, %v894
    %v909 = vpack.c.b16 %v897, %v896
    %v910 = vpack.c.b16 %v899, %v898
    %v911 = vpack.c.b16 %v901, %v900
    %v912 = vpack.c.b16 %v903, %v902
    %v913 = vpack.c.b16 %v905, %v904
    %922 = vmatpush.bf16.msra.mxu0 %v913
    %923 = vmatpush.bf16.msra.mxu0 %v912
    %924 = vmatpush.bf16.msra.mxu0 %v911
    %925 = vmatpush.bf16.msra.mxu0 %v910
    %926 = vmatpush.bf16.msra.mxu0 %v909
    %927 = vmatpush.bf16.msra.mxu0 %v908
    %928 = vmatpush.bf16.msra.mxu0 %v907
    %929 = vmatpush.bf16.msra.mxu0 %v906
    %930 = vmatmul.bf16.gmra.mxu0 %v853
    %v931 = vpop.f32.mrf.mxu0
    %v932 = vadd.f32 %v872, %v931
    %v933 = vpop.f32.mrf.mxu0
    %934 = vdwg.mxu0
    %v935 = vadd.f32 %v516, %v932
    %v936 = vld [vmem:[#allocation17] sm:$0x1]
    %v937 = vld [vmem:[%s13] sm:$0x1]
    %938 = vadd.xlane.f32.xlu0 %v935
    %v939 = vpop.xlane.xlu0 %938
    %v940 = vrcp.pop 128.0
    %v941 = vmul.f32 128.0, %v940
    %v942 = vsub.f32 1.0, %v941
    %v943 = vmul.f32 %v940, %v942
    %v944 = vadd.f32 %v940, %v943
    %vm945 = vweird.f32 %v940
    %v946 = vsel %vm945, %v940, %v944
    %v947 = vmul.f32 %v939, %v946
    %v948 = vsub.f32 %v935, %v947
    %v949 = vmul.f32 %v948, %v948
    %950 = vadd.xlane.f32.xlu0 %v949
    %v951 = vpop.xlane.xlu0 %950
    %v952 = vmul.f32 %v951, %v946
    %v953 = vadd.f32 %v952, 1e-05
    %v954 = vrsqrt.pop %v953
    %v955 = vmul.f32 %v954, %v953
    %v956 = vmul.f32 %v955, %v954
    %v957 = vmul.f32 0.5, %v956
    %v958 = vsub.f32 1.5, %v957
    %v959 = vmul.f32 %v954, %v958
    %vm960 = vweird.f32 %v953
    %vm961 = vweird.f32 %v954
    %vm962 = vmor %vm960, %vm961
    %v963 = vsel %vm962, %v954, %v959
    %v964 = vmul.f32 %v948, %v963
    %v966 = vperm.slane %v936, 0
    %v968 = vmul.f32 %v964, %v966
    %v970 = vperm.slane %v937, 0
    %v972 = vadd.f32 %v968, %v970
    %v973 = vpack.c.bf16 %v972, %v972
    %v974 = vld [vmem:[#allocation18] sm:$0xf]
    %v975 = vld [vmem:[#allocation18 + $0x4] sm:$0xf]
    %v976 = vld [vmem:[#allocation18 + $0x8] sm:$0xf]
    %v977 = vld [vmem:[#allocation18 + $0xc] sm:$0xf]
    %v978 = vld [vmem:[#allocation18 + $0x10] sm:$0xf]
    %v979 = vld [vmem:[#allocation18 + $0x14] sm:$0xf]
    %v980 = vld [vmem:[#allocation18 + $0x18] sm:$0xf]
    %v981 = vld [vmem:[#allocation18 + $0x1c] sm:$0xf]
    %v982 = vld [vmem:[#allocation18 + $0x20] sm:$0xf]
    %v983 = vld [vmem:[#allocation18 + $0x24] sm:$0xf]
    %v984 = vld [vmem:[#allocation18 + $0x28] sm:$0xf]
    %v985 = vld [vmem:[#allocation18 + $0x2c] sm:$0xf]
    %v986 = vld [vmem:[#allocation18 + $0x30] sm:$0xf]
    %v987 = vld [vmem:[#allocation18 + $0x34] sm:$0xf]
    %v988 = vld [vmem:[#allocation18 + $0x38] sm:$0xf]
    %v989 = vld [vmem:[#allocation18 + $0x3c] sm:$0xf]
    %v990 = vld [vmem:[#allocation20] sm:$0x1]
    %v992 = vperm.slane %v990, 0
    %v1010 = vunpack.c.l.b16 %v974
    %v1011 = vunpack.c.l.b16 %v975
    %v1012 = vunpack.c.l.b16 %v976
    %v1013 = vunpack.c.l.b16 %v977
    %v1014 = vunpack.c.l.b16 %v978
    %v1015 = vunpack.c.l.b16 %v979
    %v1016 = vunpack.c.l.b16 %v980
    %v1017 = vunpack.c.l.b16 %v981
    %v1018 = vunpack.c.l.b16 %v982
    %v1019 = vunpack.c.l.b16 %v983
    %v1020 = vunpack.c.l.b16 %v984
    %v1021 = vunpack.c.l.b16 %v985
    %v1022 = vunpack.c.l.b16 %v986
    %v1023 = vunpack.c.l.b16 %v987
    %v1024 = vunpack.c.l.b16 %v988
    %v1025 = vunpack.c.l.b16 %v989
    %v1026 = vpack.c.b16 %v1011, %v1010
    %v1027 = vpack.c.b16 %v1013, %v1012
    %v1028 = vpack.c.b16 %v1015, %v1014
    %v1029 = vpack.c.b16 %v1017, %v1016
    %v1030 = vpack.c.b16 %v1019, %v1018
    %v1031 = vpack.c.b16 %v1021, %v1020
    %v1032 = vpack.c.b16 %v1023, %v1022
    %v1033 = vpack.c.b16 %v1025, %v1024
    %1042 = vmatpush.bf16.msra.mxu0 %v1033
    %1043 = vmatpush.bf16.msra.mxu0 %v1032
    %1044 = vmatpush.bf16.msra.mxu0 %v1031
    %1045 = vmatpush.bf16.msra.mxu0 %v1030
    %1046 = vmatpush.bf16.msra.mxu0 %v1029
    %1047 = vmatpush.bf16.msra.mxu0 %v1028
    %1048 = vmatpush.bf16.msra.mxu0 %v1027
    %1049 = vmatpush.bf16.msra.mxu0 %v1026
    %1050 = vmatmul.bf16.gmra.mxu0 %v973
    %v1051 = vpop.f32.mrf.mxu0
    %v1052 = vadd.f32 %v992, %v1051
    %v1053 = vpop.f32.mrf.mxu0
    %1054 = vdwg.mxu0
    %v1055 = vmax.f32 %v1052, 0.0
    %v1056 = vpack.c.bf16 %v1055, %v1055
    %v1057 = vld [vmem:[#allocation21] sm:$0xf]
    %v1058 = vld [vmem:[#allocation21 + $0x4] sm:$0xf]
    %v1059 = vld [vmem:[#allocation21 + $0x8] sm:$0xf]
    %v1060 = vld [vmem:[#allocation21 + $0xc] sm:$0xf]
    %v1061 = vld [vmem:[#allocation21 + $0x10] sm:$0xf]
    %v1062 = vld [vmem:[#allocation21 + $0x14] sm:$0xf]
    %v1063 = vld [vmem:[#allocation21 + $0x18] sm:$0xf]
    %v1064 = vld [vmem:[#allocation21 + $0x1c] sm:$0xf]
    %v1065 = vld [vmem:[#allocation21 + $0x20] sm:$0xf]
    %v1066 = vld [vmem:[#allocation21 + $0x24] sm:$0xf]
    %v1067 = vld [vmem:[#allocation21 + $0x28] sm:$0xf]
    %v1068 = vld [vmem:[#allocation21 + $0x2c] sm:$0xf]
    %v1069 = vld [vmem:[#allocation21 + $0x30] sm:$0xf]
    %v1070 = vld [vmem:[#allocation21 + $0x34] sm:$0xf]
    %v1071 = vld [vmem:[#allocation21 + $0x38] sm:$0xf]
    %v1072 = vld [vmem:[#allocation21 + $0x3c] sm:$0xf]
    %v1073 = vld [vmem:[%s17] sm:$0x1]
    %v1075 = vperm.slane %v1073, 0
    %v1093 = vunpack.c.l.b16 %v1057
    %v1094 = vunpack.c.l.b16 %v1058
    %v1095 = vunpack.c.l.b16 %v1059
    %v1096 = vunpack.c.l.b16 %v1060
    %v1097 = vunpack.c.l.b16 %v1061
    %v1098 = vunpack.c.l.b16 %v1062
    %v1099 = vunpack.c.l.b16 %v1063
    %v1100 = vunpack.c.l.b16 %v1064
    %v1101 = vunpack.c.l.b16 %v1065
    %v1102 = vunpack.c.l.b16 %v1066
    %v1103 = vunpack.c.l.b16 %v1067
    %v1104 = vunpack.c.l.b16 %v1068
    %v1105 = vunpack.c.l.b16 %v1069
    %v1106 = vunpack.c.l.b16 %v1070
    %v1107 = vunpack.c.l.b16 %v1071
    %v1108 = vunpack.c.l.b16 %v1072
    %v1109 = vpack.c.b16 %v1094, %v1093
    %v1110 = vpack.c.b16 %v1096, %v1095
    %v1111 = vpack.c.b16 %v1098, %v1097
    %v1112 = vpack.c.b16 %v1100, %v1099
    %v1113 = vpack.c.b16 %v1102, %v1101
    %v1114 = vpack.c.b16 %v1104, %v1103
    %v1115 = vpack.c.b16 %v1106, %v1105
    %v1116 = vpack.c.b16 %v1108, %v1107
    %1125 = vmatpush.bf16.msra.mxu0 %v1116
    %1126 = vmatpush.bf16.msra.mxu0 %v1115
    %1127 = vmatpush.bf16.msra.mxu0 %v1114
    %1128 = vmatpush.bf16.msra.mxu0 %v1113
    %1129 = vmatpush.bf16.msra.mxu0 %v1112
    %1130 = vmatpush.bf16.msra.mxu0 %v1111
    %1131 = vmatpush.bf16.msra.mxu0 %v1110
    %1132 = vmatpush.bf16.msra.mxu0 %v1109
    %1133 = vmatmul.bf16.gmra.mxu0 %v1056
    %v1134 = vpop.f32.mrf.mxu0
    %v1135 = vadd.f32 %v1075, %v1134
    %v1136 = vpop.f32.mrf.mxu0
    %1137 = vdwg.mxu0
    %v1138 = vadd.f32 %v972, %v1135
    %v1139 = vld [vmem:[#allocation23] sm:$0x1]
    %v1140 = vld [vmem:[#allocation24] sm:$0x1]
    %1141 = vadd.xlane.f32.xlu0 %v1138
    %v1142 = vpop.xlane.xlu0 %1141
    %v1143 = vmul.f32 %v1142, %v946
    %v1144 = vsub.f32 %v1138, %v1143
    %v1145 = vmul.f32 %v1144, %v1144
    %1146 = vadd.xlane.f32.xlu0 %v1145
    %v1147 = vpop.xlane.xlu0 %1146
    %v1148 = vmul.f32 %v1147, %v946
    %v1149 = vadd.f32 %v1148, 1e-05
    %v1150 = vrsqrt.pop %v1149
    %v1151 = vmul.f32 %v1150, %v1149
    %v1152 = vmul.f32 %v1151, %v1150
    %v1153 = vmul.f32 0.5, %v1152
    %v1154 = vsub.f32 1.5, %v1153
    %v1155 = vmul.f32 %v1150, %v1154
    %vm1156 = vweird.f32 %v1149
    %vm1157 = vweird.f32 %v1150
    %vm1158 = vmor %vm1156, %vm1157
    %v1159 = vsel %vm1158, %v1150, %v1155
    %v1160 = vmul.f32 %v1144, %v1159
    %v1162 = vperm.slane %v1139, 0
    %v1164 = vmul.f32 %v1160, %v1162
    %v1166 = vperm.slane %v1140, 0
    %v1168 = vadd.f32 %v1164, %v1166
    %v1169 = vpack.c.bf16 %v1168, %v1168
    %s1170 = scalar_lea.vmem [#allocation14], 192
    %v1171 = vld [vmem:[%s1170] sm:$0xff]
    %v1172 = vld [vmem:[%s1170 + $0x8] sm:$0xf]
    %v1173 = vld [vmem:[%s1170 + $0xc] sm:$0xff]
    %v1174 = vld [vmem:[%s1170 + $0x14] sm:$0xf]
    %v1175 = vld [vmem:[%s1170 + $0x18] sm:$0xff]
    %v1176 = vld [vmem:[%s1170 + $0x20] sm:$0xf]
    %v1177 = vld [vmem:[%s1170 + $0x24] sm:$0xff]
    %v1178 = vld [vmem:[%s1170 + $0x2c] sm:$0xf]
    %v1179 = vld [vmem:[%s1170 + $0x30] sm:$0xff]
    %v1180 = vld [vmem:[%s1170 + $0x38] sm:$0xf]
    %v1181 = vld [vmem:[%s1170 + $0x3c] sm:$0xff]
    %v1182 = vld [vmem:[%s1170 + $0x44] sm:$0xf]
    %v1183 = vld [vmem:[%s1170 + $0x48] sm:$0xff]
    %v1184 = vld [vmem:[%s1170 + $0x50] sm:$0xf]
    %v1185 = vld [vmem:[%s1170 + $0x54] sm:$0xff]
    %v1186 = vld [vmem:[%s1170 + $0x5c] sm:$0xf]
    %v1187 = vld [vmem:[%s1170 + $0x60] sm:$0xff]
    %v1188 = vld [vmem:[%s1170 + $0x68] sm:$0xf]
    %v1189 = vld [vmem:[%s1170 + $0x6c] sm:$0xff]
    %v1190 = vld [vmem:[%s1170 + $0x74] sm:$0xf]
    %v1191 = vld [vmem:[%s1170 + $0x78] sm:$0xff]
    %v1192 = vld [vmem:[%s1170 + $0x80] sm:$0xf]
    %v1193 = vld [vmem:[%s1170 + $0x84] sm:$0xff]
    %v1194 = vld [vmem:[%s1170 + $0x8c] sm:$0xf]
    %v1195 = vld [vmem:[%s1170 + $0x90] sm:$0xff]
    %v1196 = vld [vmem:[%s1170 + $0x98] sm:$0xf]
    %v1197 = vld [vmem:[%s1170 + $0x9c] sm:$0xff]
    %v1198 = vld [vmem:[%s1170 + $0xa4] sm:$0xf]
    %v1199 = vld [vmem:[%s1170 + $0xa8] sm:$0xff]
    %v1200 = vld [vmem:[%s1170 + $0xb0] sm:$0xf]
    %v1201 = vld [vmem:[%s1170 + $0xb4] sm:$0xff]
    %v1202 = vld [vmem:[%s1170 + $0xbc] sm:$0xf]
    %s1203 = scalar_lea.vmem %s9, 3
    %v1204 = vld [vmem:[%s1203] sm:$0x7]
    %v1206 = vperm.slane %v1204, 0
    %v1207 = vperm.slane %v1204, 1
    %v1208 = vperm.slane %v1204, 2
    %v1244 = vunpack.c.l.b16 %v1171
    %v1245 = vunpack.c.h.b16 %v1171
    %v1246 = vunpack.c.l.b16 %v1172
    %v1247 = vunpack.c.l.b16 %v1173
    %v1248 = vunpack.c.h.b16 %v1173
    %v1249 = vunpack.c.l.b16 %v1174
    %v1250 = vunpack.c.l.b16 %v1175
    %v1251 = vunpack.c.h.b16 %v1175
    %v1252 = vunpack.c.l.b16 %v1176
    %v1253 = vunpack.c.l.b16 %v1177
    %v1254 = vunpack.c.h.b16 %v1177
    %v1255 = vunpack.c.l.b16 %v1178
    %v1256 = vunpack.c.l.b16 %v1179
    %v1257 = vunpack.c.h.b16 %v1179
    %v1258 = vunpack.c.l.b16 %v1180
    %v1259 = vunpack.c.l.b16 %v1181
    %v1260 = vunpack.c.h.b16 %v1181
    %v1261 = vunpack.c.l.b16 %v1182
    %v1262 = vunpack.c.l.b16 %v1183
    %v1263 = vunpack.c.h.b16 %v1183
    %v1264 = vunpack.c.l.b16 %v1184
    %v1265 = vunpack.c.l.b16 %v1185
    %v1266 = vunpack.c.h.b16 %v1185
    %v1267 = vunpack.c.l.b16 %v1186
    %v1268 = vunpack.c.l.b16 %v1187
    %v1269 = vunpack.c.h.b16 %v1187
    %v1270 = vunpack.c.l.b16 %v1188
    %v1271 = vunpack.c.l.b16 %v1189
    %v1272 = vunpack.c.h.b16 %v1189
    %v1273 = vunpack.c.l.b16 %v1190
    %v1274 = vunpack.c.l.b16 %v1191
    %v1275 = vunpack.c.h.b16 %v1191
    %v1276 = vunpack.c.l.b16 %v1192
    %v1277 = vunpack.c.l.b16 %v1193
    %v1278 = vunpack.c.h.b16 %v1193
    %v1279 = vunpack.c.l.b16 %v1194
    %v1280 = vunpack.c.l.b16 %v1195
    %v1281 = vunpack.c.h.b16 %v1195
    %v1282 = vunpack.c.l.b16 %v1196
    %v1283 = vunpack.c.l.b16 %v1197
    %v1284 = vunpack.c.h.b16 %v1197
    %v1285 = vunpack.c.l.b16 %v1198
    %v1286 = vunpack.c.l.b16 %v1199
    %v1287 = vunpack.c.h.b16 %v1199
    %v1288 = vunpack.c.l.b16 %v1200
    %v1289 = vunpack.c.l.b16 %v1201
    %v1290 = vunpack.c.h.b16 %v1201
    %v1291 = vunpack.c.l.b16 %v1202
    %v1292 = vpack.c.b16 %v1247, %v1244
    %v1293 = vpack.c.b16 %v1248, %v1245
    %v1294 = vpack.c.b16 %v1249, %v1246
    %v1295 = vpack.c.b16 %v1253, %v1250
    %v1296 = vpack.c.b16 %v1254, %v1251
    %v1297 = vpack.c.b16 %v1255, %v1252
    %v1298 = vpack.c.b16 %v1259, %v1256
    %v1299 = vpack.c.b16 %v1260, %v1257
    %v1300 = vpack.c.b16 %v1261, %v1258
    %v1301 = vpack.c.b16 %v1265, %v1262
    %v1302 = vpack.c.b16 %v1266, %v1263
    %v1303 = vpack.c.b16 %v1267, %v1264
    %v1304 = vpack.c.b16 %v1271, %v1268
    %v1305 = vpack.c.b16 %v1272, %v1269
    %v1306 = vpack.c.b16 %v1273, %v1270
    %v1307 = vpack.c.b16 %v1277, %v1274
    %v1308 = vpack.c.b16 %v1278, %v1275
    %v1309 = vpack.c.b16 %v1279, %v1276
    %v1310 = vpack.c.b16 %v1283, %v1280
    %v1311 = vpack.c.b16 %v1284, %v1281
    %v1312 = vpack.c.b16 %v1285, %v1282
    %v1313 = vpack.c.b16 %v1289, %v1286
    %v1314 = vpack.c.b16 %v1290, %v1287
    %v1315 = vpack.c.b16 %v1291, %v1288
    %1340 = vmatpush.bf16.msra.mxu0 %v1313
    %1341 = vmatpush.bf16.msra.mxu0 %v1310
    %1342 = vmatpush.bf16.msra.mxu0 %v1307
    %1343 = vmatpush.bf16.msra.mxu0 %v1304
    %1344 = vmatpush.bf16.msra.mxu0 %v1301
    %1345 = vmatpush.bf16.msra.mxu0 %v1298
    %1346 = vmatpush.bf16.msra.mxu0 %v1295
    %1347 = vmatpush.bf16.msra.mxu0 %v1292
    %1348 = vmatmul.bf16.gmra.mxu0 %v1169
    %v1349 = vpop.f32.mrf.mxu0
    %v1350 = vadd.f32 %v1206, %v1349
    %v1351 = vpop.f32.mrf.mxu0
    %1352 = vdwg.mxu0
    %1353 = vmatpush.bf16.msra.mxu0 %v1314
    %1354 = vmatpush.bf16.msra.mxu0 %v1311
    %1355 = vmatpush.bf16.msra.mxu0 %v1308
    %1356 = vmatpush.bf16.msra.mxu0 %v1305
    %1357 = vmatpush.bf16.msra.mxu0 %v1302
    %1358 = vmatpush.bf16.msra.mxu0 %v1299
    %1359 = vmatpush.bf16.msra.mxu0 %v1296
    %1360 = vmatpush.bf16.msra.mxu0 %v1293
    %1361 = vmatmul.bf16.gmra.mxu0 %v1169
    %v1362 = vpop.f32.mrf.mxu0
    %v1363 = vadd.f32 %v1207, %v1362
    %v1364 = vpop.f32.mrf.mxu0
    %1365 = vdwg.mxu0
    %1366 = vmatpush.bf16.msra.mxu0 %v1315
    %1367 = vmatpush.bf16.msra.mxu0 %v1312
    %1368 = vmatpush.bf16.msra.mxu0 %v1309
    %1369 = vmatpush.bf16.msra.mxu0 %v1306
    %1370 = vmatpush.bf16.msra.mxu0 %v1303
    %1371 = vmatpush.bf16.msra.mxu0 %v1300
    %1372 = vmatpush.bf16.msra.mxu0 %v1297
    %1373 = vmatpush.bf16.msra.mxu0 %v1294
    %1374 = vmatmul.bf16.gmra.mxu0 %v1169
    %v1375 = vpop.f32.mrf.mxu0
    %v1376 = vadd.f32 %v1208, %v1375
    %v1377 = vpop.f32.mrf.mxu0
    %1378 = vdwg.mxu0
    %v1379 = vmul.f32 %v1350, %v519
    %v1380 = vmul.f32 %v1350, %v520
    %v1381 = vmul.f32 %v1350, %v521
    %v1382 = vmul.f32 %v1350, %v522
    %v1383 = vpack.c.bf16 %v1380, %v1379
    %v1384 = vpack.c.bf16 %v1382, %v1381
    %v1385 = vpack.c.bf16 %v1363, %v1363
    %1386 = vmatpush.bf16.xpose.msra.mxu0 0
    %1387 = vmatpush.bf16.xpose.msra.mxu0 0
    %1388 = vmatpush.bf16.xpose.msra.mxu0 0
    %1389 = vmatpush.bf16.xpose.msra.mxu0 0
    %1390 = vmatpush.bf16.xpose.msra.mxu0 0
    %1391 = vmatpush.bf16.xpose.msra.mxu0 0
    %1392 = vmatpush.bf16.xpose.msra.mxu0 0
    %1393 = vmatpush.bf16.xpose.msra.mxu0 %v1385
    %1394 = vmatmul.bf16.gmra.mxu0 %v1383
    %v1395 = vpop.f32.mrf.mxu0
    %v1396 = vadd.f32 %v527, %v1395
    %v1397 = vpop.f32.mrf.mxu0
    %v1398 = vadd.f32 %v528, %v1397
    %1399 = vmatmul.bf16.gmra.mxu0 %v1384
    %v1400 = vpop.f32.mrf.mxu0
    %v1401 = vadd.f32 %v529, %v1400
    %v1402 = vpop.f32.mrf.mxu0
    %v1403 = vadd.f32 %v530, %v1402
    %1404 = vdwg.mxu0
    %v1405 = vsel %vm765, %v1396, -inf
    %1406 = vmax.xlane.f32.xlu0 %v1405
    %v1407 = vpop.xlane.xlu0 %1406
    %v1408 = vsel %vm765, %v1398, -inf
    %1409 = vmax.xlane.f32.xlu0 %v1408
    %v1410 = vpop.xlane.xlu0 %1409
    %v1411 = vsel %vm765, %v1401, -inf
    %1412 = vmax.xlane.f32.xlu0 %v1411
    %v1413 = vpop.xlane.xlu0 %1412
    %v1414 = vsel %vm765, %v1403, -inf
    %1415 = vmax.xlane.f32.xlu0 %v1414
    %v1416 = vpop.xlane.xlu0 %1415
    %v1417 = vsub.f32 %v1396, %v1407
    %v1418 = vsub.f32 %v1398, %v1410
    %v1419 = vsub.f32 %v1401, %v1413
    %v1420 = vsub.f32 %v1403, %v1416
    %v1421 = vmul.f32 %v1417, 1.442695
    %v1422 = vpow.pop %v1421
    %v1423 = vmul.f32 %v1418, 1.442695
    %v1424 = vpow.pop %v1423
    %v1425 = vmul.f32 %v1419, 1.442695
    %v1426 = vpow.pop %v1425
    %v1427 = vmul.f32 %v1420, 1.442695
    %v1428 = vpow.pop %v1427
    %v1429 = vsel %vm765, %v1422, 0.0
    %1430 = vadd.xlane.f32.xlu0 %v1429
    %v1431 = vpop.xlane.xlu0 %1430
    %v1432 = vsel %vm765, %v1424, 0.0
    %1433 = vadd.xlane.f32.xlu0 %v1432
    %v1434 = vpop.xlane.xlu0 %1433
    %v1435 = vsel %vm765, %v1426, 0.0
    %1436 = vadd.xlane.f32.xlu0 %v1435
    %v1437 = vpop.xlane.xlu0 %1436
    %v1438 = vsel %vm765, %v1428, 0.0
    %1439 = vadd.xlane.f32.xlu0 %v1438
    %v1440 = vpop.xlane.xlu0 %1439
    %v1441 = vrcp.pop %v1431
    %v1442 = vrcp.pop %v1434
    %v1443 = vrcp.pop %v1437
    %v1444 = vrcp.pop %v1440
    %v1445 = vmul.f32 %v1422, %v1441
    %v1446 = vmul.f32 %v1424, %v1442
    %v1447 = vmul.f32 %v1426, %v1443
    %v1448 = vmul.f32 %v1428, %v1444
    %v1449 = vpack.c.bf16 %v1446, %v1445
    %v1450 = vpack.c.bf16 %v1448, %v1447
    %v1451 = vpack.c.bf16 %v1376, %v1376
    %v1453 = vsel %vm765, %v1449, 0
    %v1456 = vsel %vm765, %v1450, 0
    %v1459 = vsel %vm819, %v1451, 0
    %1461 = vmatpush.bf16.msra.mxu0 0
    %1462 = vmatpush.bf16.msra.mxu0 0
    %1463 = vmatpush.bf16.msra.mxu0 0
    %1464 = vmatpush.bf16.msra.mxu0 0
    %1465 = vmatpush.bf16.msra.mxu0 0
    %1466 = vmatpush.bf16.msra.mxu0 0
    %1467 = vmatpush.bf16.msra.mxu0 0
    %1468 = vmatpush.bf16.msra.mxu0 %v1459
    %1469 = vmatmul.bf16.gmra.mxu0 %v1453
    %v1470 = vpop.f32.mrf.mxu0
    %v1471 = vadd.f32 0.0, %v1470
    %v1472 = vpop.f32.mrf.mxu0
    %v1473 = vadd.f32 0.0, %v1472
    %1474 = vmatmul.bf16.gmra.mxu0 %v1456
    %v1475 = vpop.f32.mrf.mxu0
    %v1476 = vadd.f32 0.0, %v1475
    %v1477 = vpop.f32.mrf.mxu0
    %v1478 = vadd.f32 0.0, %v1477
    %1479 = vdwg.mxu0
    %v1480 = vmul.f32 %v1471, %v842
    %v1481 = vmul.f32 %v1473, %v843
    %v1482 = vmul.f32 %v1476, %v844
    %v1483 = vmul.f32 %v1478, %v845
    %v1484 = vadd.f32 %v1480, %v1481
    %v1485 = vadd.f32 %v1484, %v1482
    %v1486 = vadd.f32 %v1485, %v1483
    %v1487 = vpack.c.bf16 %v1486, %v1486
    %s1488 = scalar_lea.vmem [#allocation15], 64
    %v1489 = vld [vmem:[%s1488] sm:$0xf]
    %v1490 = vld [vmem:[%s1488 + $0x4] sm:$0xf]
    %v1491 = vld [vmem:[%s1488 + $0x8] sm:$0xf]
    %v1492 = vld [vmem:[%s1488 + $0xc] sm:$0xf]
    %v1493 = vld [vmem:[%s1488 + $0x10] sm:$0xf]
    %v1494 = vld [vmem:[%s1488 + $0x14] sm:$0xf]
    %v1495 = vld [vmem:[%s1488 + $0x18] sm:$0xf]
    %v1496 = vld [vmem:[%s1488 + $0x1c] sm:$0xf]
    %v1497 = vld [vmem:[%s1488 + $0x20] sm:$0xf]
    %v1498 = vld [vmem:[%s1488 + $0x24] sm:$0xf]
    %v1499 = vld [vmem:[%s1488 + $0x28] sm:$0xf]
    %v1500 = vld [vmem:[%s1488 + $0x2c] sm:$0xf]
    %v1501 = vld [vmem:[%s1488 + $0x30] sm:$0xf]
    %v1502 = vld [vmem:[%s1488 + $0x34] sm:$0xf]
    %v1503 = vld [vmem:[%s1488 + $0x38] sm:$0xf]
    %v1504 = vld [vmem:[%s1488 + $0x3c] sm:$0xf]
    %s1505 = scalar_lea.vmem %s11, 1
    %v1506 = vld [vmem:[%s1505] sm:$0x1]
    %v1508 = vperm.slane %v1506, 0
    %v1526 = vunpack.c.l.b16 %v1489
    %v1527 = vunpack.c.l.b16 %v1490
    %v1528 = vunpack.c.l.b16 %v1491
    %v1529 = vunpack.c.l.b16 %v1492
    %v1530 = vunpack.c.l.b16 %v1493
    %v1531 = vunpack.c.l.b16 %v1494
    %v1532 = vunpack.c.l.b16 %v1495
    %v1533 = vunpack.c.l.b16 %v1496
    %v1534 = vunpack.c.l.b16 %v1497
    %v1535 = vunpack.c.l.b16 %v1498
    %v1536 = vunpack.c.l.b16 %v1499
    %v1537 = vunpack.c.l.b16 %v1500
    %v1538 = vunpack.c.l.b16 %v1501
    %v1539 = vunpack.c.l.b16 %v1502
    %v1540 = vunpack.c.l.b16 %v1503
    %v1541 = vunpack.c.l.b16 %v1504
    %v1542 = vpack.c.b16 %v1527, %v1526
    %v1543 = vpack.c.b16 %v1529, %v1528
    %v1544 = vpack.c.b16 %v1531, %v1530
    %v1545 = vpack.c.b16 %v1533, %v1532
    %v1546 = vpack.c.b16 %v1535, %v1534
    %v1547 = vpack.c.b16 %v1537, %v1536
    %v1548 = vpack.c.b16 %v1539, %v1538
    %v1549 = vpack.c.b16 %v1541, %v1540
    %1558 = vmatpush.bf16.msra.mxu0 %v1549
    %1559 = vmatpush.bf16.msra.mxu0 %v1548
    %1560 = vmatpush.bf16.msra.mxu0 %v1547
    %1561 = vmatpush.bf16.msra.mxu0 %v1546
    %1562 = vmatpush.bf16.msra.mxu0 %v1545
    %1563 = vmatpush.bf16.msra.mxu0 %v1544
    %1564 = vmatpush.bf16.msra.mxu0 %v1543
    %1565 = vmatpush.bf16.msra.mxu0 %v1542
    %1566 = vmatmul.bf16.gmra.mxu0 %v1487
    %v1567 = vpop.f32.mrf.mxu0
    %v1568 = vadd.f32 %v1508, %v1567
    %v1569 = vpop.f32.mrf.mxu0
    %1570 = vdwg.mxu0
    %v1571 = vadd.f32 %v1168, %v1568
    %s1572 = scalar_lea.vmem [#allocation17], 1
    %v1573 = vld [vmem:[%s1572] sm:$0x1]
    %s1574 = scalar_lea.vmem %s13, 1
    %v1575 = vld [vmem:[%s1574] sm:$0x1]
    %1576 = vadd.xlane.f32.xlu0 %v1571
    %v1577 = vpop.xlane.xlu0 %1576
    %v1578 = vmul.f32 %v1577, %v946
    %v1579 = vsub.f32 %v1571, %v1578
    %v1580 = vmul.f32 %v1579, %v1579
    %1581 = vadd.xlane.f32.xlu0 %v1580
    %v1582 = vpop.xlane.xlu0 %1581
    %v1583 = vmul.f32 %v1582, %v946
    %v1584 = vadd.f32 %v1583, 1e-05
    %v1585 = vrsqrt.pop %v1584
    %v1586 = vmul.f32 %v1585, %v1584
    %v1587 = vmul.f32 %v1586, %v1585
    %v1588 = vmul.f32 0.5, %v1587
    %v1589 = vsub.f32 1.5, %v1588
    %v1590 = vmul.f32 %v1585, %v1589
    %vm1591 = vweird.f32 %v1584
    %vm1592 = vweird.f32 %v1585
    %vm1593 = vmor %vm1591, %vm1592
    %v1594 = vsel %vm1593, %v1585, %v1590
    %v1595 = vmul.f32 %v1579, %v1594
    %v1597 = vperm.slane %v1573, 0
    %v1599 = vmul.f32 %v1595, %v1597
    %v1601 = vperm.slane %v1575, 0
    %v1603 = vadd.f32 %v1599, %v1601
    %v1604 = vpack.c.bf16 %v1603, %v1603
    %s1605 = scalar_lea.vmem [#allocation18], 64
    %v1606 = vld [vmem:[%s1605] sm:$0xf]
    %v1607 = vld [vmem:[%s1605 + $0x4] sm:$0xf]
    %v1608 = vld [vmem:[%s1605 + $0x8] sm:$0xf]
    %v1609 = vld [vmem:[%s1605 + $0xc] sm:$0xf]
    %v1610 = vld [vmem:[%s1605 + $0x10] sm:$0xf]
    %v1611 = vld [vmem:[%s1605 + $0x14] sm:$0xf]
    %v1612 = vld [vmem:[%s1605 + $0x18] sm:$0xf]
    %v1613 = vld [vmem:[%s1605 + $0x1c] sm:$0xf]
    %v1614 = vld [vmem:[%s1605 + $0x20] sm:$0xf]
    %v1615 = vld [vmem:[%s1605 + $0x24] sm:$0xf]
    %v1616 = vld [vmem:[%s1605 + $0x28] sm:$0xf]
    %v1617 = vld [vmem:[%s1605 + $0x2c] sm:$0xf]
    %v1618 = vld [vmem:[%s1605 + $0x30] sm:$0xf]
    %v1619 = vld [vmem:[%s1605 + $0x34] sm:$0xf]
    %v1620 = vld [vmem:[%s1605 + $0x38] sm:$0xf]
    %v1621 = vld [vmem:[%s1605 + $0x3c] sm:$0xf]
    %s1622 = scalar_lea.vmem [#allocation20], 1
    %v1623 = vld [vmem:[%s1622] sm:$0x1]
    %v1625 = vperm.slane %v1623, 0
    %v1643 = vunpack.c.l.b16 %v1606
    %v1644 = vunpack.c.l.b16 %v1607
    %v1645 = vunpack.c.l.b16 %v1608
    %v1646 = vunpack.c.l.b16 %v1609
    %v1647 = vunpack.c.l.b16 %v1610
    %v1648 = vunpack.c.l.b16 %v1611
    %v1649 = vunpack.c.l.b16 %v1612
    %v1650 = vunpack.c.l.b16 %v1613
    %v1651 = vunpack.c.l.b16 %v1614
    %v1652 = vunpack.c.l.b16 %v1615
    %v1653 = vunpack.c.l.b16 %v1616
    %v1654 = vunpack.c.l.b16 %v1617
    %v1655 = vunpack.c.l.b16 %v1618
    %v1656 = vunpack.c.l.b16 %v1619
    %v1657 = vunpack.c.l.b16 %v1620
    %v1658 = vunpack.c.l.b16 %v1621
    %v1659 = vpack.c.b16 %v1644, %v1643
    %v1660 = vpack.c.b16 %v1646, %v1645
    %v1661 = vpack.c.b16 %v1648, %v1647
    %v1662 = vpack.c.b16 %v1650, %v1649
    %v1663 = vpack.c.b16 %v1652, %v1651
    %v1664 = vpack.c.b16 %v1654, %v1653
    %v1665 = vpack.c.b16 %v1656, %v1655
    %v1666 = vpack.c.b16 %v1658, %v1657
    %1675 = vmatpush.bf16.msra.mxu0 %v1666
    %1676 = vmatpush.bf16.msra.mxu0 %v1665
    %1677 = vmatpush.bf16.msra.mxu0 %v1664
    %1678 = vmatpush.bf16.msra.mxu0 %v1663
    %1679 = vmatpush.bf16.msra.mxu0 %v1662
    %1680 = vmatpush.bf16.msra.mxu0 %v1661
    %1681 = vmatpush.bf16.msra.mxu0 %v1660
    %1682 = vmatpush.bf16.msra.mxu0 %v1659
    %1683 = vmatmul.bf16.gmra.mxu0 %v1604
    %v1684 = vpop.f32.mrf.mxu0
    %v1685 = vadd.f32 %v1625, %v1684
    %v1686 = vpop.f32.mrf.mxu0
    %1687 = vdwg.mxu0
    %v1688 = vmax.f32 %v1685, 0.0
    %v1689 = vpack.c.bf16 %v1688, %v1688
    %s1690 = scalar_lea.vmem [#allocation21], 64
    %v1691 = vld [vmem:[%s1690] sm:$0xf]
    %v1692 = vld [vmem:[%s1690 + $0x4] sm:$0xf]
    %v1693 = vld [vmem:[%s1690 + $0x8] sm:$0xf]
    %v1694 = vld [vmem:[%s1690 + $0xc] sm:$0xf]
    %v1695 = vld [vmem:[%s1690 + $0x10] sm:$0xf]
    %v1696 = vld [vmem:[%s1690 + $0x14] sm:$0xf]
    %v1697 = vld [vmem:[%s1690 + $0x18] sm:$0xf]
    %v1698 = vld [vmem:[%s1690 + $0x1c] sm:$0xf]
    %v1699 = vld [vmem:[%s1690 + $0x20] sm:$0xf]
    %v1700 = vld [vmem:[%s1690 + $0x24] sm:$0xf]
    %v1701 = vld [vmem:[%s1690 + $0x28] sm:$0xf]
    %v1702 = vld [vmem:[%s1690 + $0x2c] sm:$0xf]
    %v1703 = vld [vmem:[%s1690 + $0x30] sm:$0xf]
    %v1704 = vld [vmem:[%s1690 + $0x34] sm:$0xf]
    %v1705 = vld [vmem:[%s1690 + $0x38] sm:$0xf]
    %v1706 = vld [vmem:[%s1690 + $0x3c] sm:$0xf]
    %s1707 = scalar_lea.vmem %s17, 1
    %v1708 = vld [vmem:[%s1707] sm:$0x1]
    %v1710 = vperm.slane %v1708, 0
    %v1728 = vunpack.c.l.b16 %v1691
    %v1729 = vunpack.c.l.b16 %v1692
    %v1730 = vunpack.c.l.b16 %v1693
    %v1731 = vunpack.c.l.b16 %v1694
    %v1732 = vunpack.c.l.b16 %v1695
    %v1733 = vunpack.c.l.b16 %v1696
    %v1734 = vunpack.c.l.b16 %v1697
    %v1735 = vunpack.c.l.b16 %v1698
    %v1736 = vunpack.c.l.b16 %v1699
    %v1737 = vunpack.c.l.b16 %v1700
    %v1738 = vunpack.c.l.b16 %v1701
    %v1739 = vunpack.c.l.b16 %v1702
    %v1740 = vunpack.c.l.b16 %v1703
    %v1741 = vunpack.c.l.b16 %v1704
    %v1742 = vunpack.c.l.b16 %v1705
    %v1743 = vunpack.c.l.b16 %v1706
    %v1744 = vpack.c.b16 %v1729, %v1728
    %v1745 = vpack.c.b16 %v1731, %v1730
    %v1746 = vpack.c.b16 %v1733, %v1732
    %v1747 = vpack.c.b16 %v1735, %v1734
    %v1748 = vpack.c.b16 %v1737, %v1736
    %v1749 = vpack.c.b16 %v1739, %v1738
    %v1750 = vpack.c.b16 %v1741, %v1740
    %v1751 = vpack.c.b16 %v1743, %v1742
    %1760 = vmatpush.bf16.msra.mxu0 %v1751
    %1761 = vmatpush.bf16.msra.mxu0 %v1750
    %1762 = vmatpush.bf16.msra.mxu0 %v1749
    %1763 = vmatpush.bf16.msra.mxu0 %v1748
    %1764 = vmatpush.bf16.msra.mxu0 %v1747
    %1765 = vmatpush.bf16.msra.mxu0 %v1746
    %1766 = vmatpush.bf16.msra.mxu0 %v1745
    %1767 = vmatpush.bf16.msra.mxu0 %v1744
    %1768 = vmatmul.bf16.gmra.mxu0 %v1689
    %v1769 = vpop.f32.mrf.mxu0
    %v1770 = vadd.f32 %v1710, %v1769
    %v1771 = vpop.f32.mrf.mxu0
    %1772 = vdwg.mxu0
    %v1773 = vadd.f32 %v1603, %v1770
    %s1774 = scalar_lea.vmem [#allocation23], 1
    %v1775 = vld [vmem:[%s1774] sm:$0x1]
    %s1776 = scalar_lea.vmem [#allocation24], 1
    %v1777 = vld [vmem:[%s1776] sm:$0x1]
    %1778 = vadd.xlane.f32.xlu0 %v1773
    %v1779 = vpop.xlane.xlu0 %1778
    %v1780 = vmul.f32 %v1779, %v946
    %v1781 = vsub.f32 %v1773, %v1780
    %v1782 = vmul.f32 %v1781, %v1781
    %1783 = vadd.xlane.f32.xlu0 %v1782
    %v1784 = vpop.xlane.xlu0 %1783
    %v1785 = vmul.f32 %v1784, %v946
    %v1786 = vadd.f32 %v1785, 1e-05
    %v1787 = vrsqrt.pop %v1786
    %v1788 = vmul.f32 %v1787, %v1786
    %v1789 = vmul.f32 %v1788, %v1787
    %v1790 = vmul.f32 0.5, %v1789
    %v1791 = vsub.f32 1.5, %v1790
    %v1792 = vmul.f32 %v1787, %v1791
    %vm1793 = vweird.f32 %v1786
    %vm1794 = vweird.f32 %v1787
    %vm1795 = vmor %vm1793, %vm1794
    %v1796 = vsel %vm1795, %v1787, %v1792
    %v1797 = vmul.f32 %v1781, %v1796
    %v1799 = vperm.slane %v1775, 0
    %v1801 = vmul.f32 %v1797, %v1799
    %v1803 = vperm.slane %v1777, 0
    %v1805 = vadd.f32 %v1801, %v1803
    %v1806 = vpack.c.bf16 %v1805, %v1805
    %s1807 = scalar_lea.vmem [#allocation14], 384
    %v1808 = vld [vmem:[%s1807] sm:$0xff]
    %v1809 = vld [vmem:[%s1807 + $0x8] sm:$0xf]
    %v1810 = vld [vmem:[%s1807 + $0xc] sm:$0xff]
    %v1811 = vld [vmem:[%s1807 + $0x14] sm:$0xf]
    %v1812 = vld [vmem:[%s1807 + $0x18] sm:$0xff]
    %v1813 = vld [vmem:[%s1807 + $0x20] sm:$0xf]
    %v1814 = vld [vmem:[%s1807 + $0x24] sm:$0xff]
    %v1815 = vld [vmem:[%s1807 + $0x2c] sm:$0xf]
    %v1816 = vld [vmem:[%s1807 + $0x30] sm:$0xff]
    %v1817 = vld [vmem:[%s1807 + $0x38] sm:$0xf]
    %v1818 = vld [vmem:[%s1807 + $0x3c] sm:$0xff]
    %v1819 = vld [vmem:[%s1807 + $0x44] sm:$0xf]
    %v1820 = vld [vmem:[%s1807 + $0x48] sm:$0xff]
    %v1821 = vld [vmem:[%s1807 + $0x50] sm:$0xf]
    %v1822 = vld [vmem:[%s1807 + $0x54] sm:$0xff]
    %v1823 = vld [vmem:[%s1807 + $0x5c] sm:$0xf]
    %v1824 = vld [vmem:[%s1807 + $0x60] sm:$0xff]
    %v1825 = vld [vmem:[%s1807 + $0x68] sm:$0xf]
    %v1826 = vld [vmem:[%s1807 + $0x6c] sm:$0xff]
    %v1827 = vld [vmem:[%s1807 + $0x74] sm:$0xf]
    %v1828 = vld [vmem:[%s1807 + $0x78] sm:$0xff]
    %v1829 = vld [vmem:[%s1807 + $0x80] sm:$0xf]
    %v1830 = vld [vmem:[%s1807 + $0x84] sm:$0xff]
    %v1831 = vld [vmem:[%s1807 + $0x8c] sm:$0xf]
    %v1832 = vld [vmem:[%s1807 + $0x90] sm:$0xff]
    %v1833 = vld [vmem:[%s1807 + $0x98] sm:$0xf]
    %v1834 = vld [vmem:[%s1807 + $0x9c] sm:$0xff]
    %v1835 = vld [vmem:[%s1807 + $0xa4] sm:$0xf]
    %v1836 = vld [vmem:[%s1807 + $0xa8] sm:$0xff]
    %v1837 = vld [vmem:[%s1807 + $0xb0] sm:$0xf]
    %v1838 = vld [vmem:[%s1807 + $0xb4] sm:$0xff]
    %v1839 = vld [vmem:[%s1807 + $0xbc] sm:$0xf]
    %s1840 = scalar_lea.vmem %s9, 6
    %v1841 = vld [vmem:[%s1840] sm:$0x7]
    %v1843 = vperm.slane %v1841, 0
    %v1844 = vperm.slane %v1841, 1
    %v1845 = vperm.slane %v1841, 2
    %v1881 = vunpack.c.l.b16 %v1808
    %v1882 = vunpack.c.h.b16 %v1808
    %v1883 = vunpack.c.l.b16 %v1809
    %v1884 = vunpack.c.l.b16 %v1810
    %v1885 = vunpack.c.h.b16 %v1810
    %v1886 = vunpack.c.l.b16 %v1811
    %v1887 = vunpack.c.l.b16 %v1812
    %v1888 = vunpack.c.h.b16 %v1812
    %v1889 = vunpack.c.l.b16 %v1813
    %v1890 = vunpack.c.l.b16 %v1814
    %v1891 = vunpack.c.h.b16 %v1814
    %v1892 = vunpack.c.l.b16 %v1815
    %v1893 = vunpack.c.l.b16 %v1816
    %v1894 = vunpack.c.h.b16 %v1816
    %v1895 = vunpack.c.l.b16 %v1817
    %v1896 = vunpack.c.l.b16 %v1818
    %v1897 = vunpack.c.h.b16 %v1818
    %v1898 = vunpack.c.l.b16 %v1819
    %v1899 = vunpack.c.l.b16 %v1820
    %v1900 = vunpack.c.h.b16 %v1820
    %v1901 = vunpack.c.l.b16 %v1821
    %v1902 = vunpack.c.l.b16 %v1822
    %v1903 = vunpack.c.h.b16 %v1822
    %v1904 = vunpack.c.l.b16 %v1823
    %v1905 = vunpack.c.l.b16 %v1824
    %v1906 = vunpack.c.h.b16 %v1824
    %v1907 = vunpack.c.l.b16 %v1825
    %v1908 = vunpack.c.l.b16 %v1826
    %v1909 = vunpack.c.h.b16 %v1826
    %v1910 = vunpack.c.l.b16 %v1827
    %v1911 = vunpack.c.l.b16 %v1828
    %v1912 = vunpack.c.h.b16 %v1828
    %v1913 = vunpack.c.l.b16 %v1829
    %v1914 = vunpack.c.l.b16 %v1830
    %v1915 = vunpack.c.h.b16 %v1830
    %v1916 = vunpack.c.l.b16 %v1831
    %v1917 = vunpack.c.l.b16 %v1832
    %v1918 = vunpack.c.h.b16 %v1832
    %v1919 = vunpack.c.l.b16 %v1833
    %v1920 = vunpack.c.l.b16 %v1834
    %v1921 = vunpack.c.h.b16 %v1834
    %v1922 = vunpack.c.l.b16 %v1835
    %v1923 = vunpack.c.l.b16 %v1836
    %v1924 = vunpack.c.h.b16 %v1836
    %v1925 = vunpack.c.l.b16 %v1837
    %v1926 = vunpack.c.l.b16 %v1838
    %v1927 = vunpack.c.h.b16 %v1838
    %v1928 = vunpack.c.l.b16 %v1839
    %v1929 = vpack.c.b16 %v1884, %v1881
    %v1930 = vpack.c.b16 %v1885, %v1882
    %v1931 = vpack.c.b16 %v1886, %v1883
    %v1932 = vpack.c.b16 %v1890, %v1887
    %v1933 = vpack.c.b16 %v1891, %v1888
    %v1934 = vpack.c.b16 %v1892, %v1889
    %v1935 = vpack.c.b16 %v1896, %v1893
    %v1936 = vpack.c.b16 %v1897, %v1894
    %v1937 = vpack.c.b16 %v1898, %v1895
    %v1938 = vpack.c.b16 %v1902, %v1899
    %v1939 = vpack.c.b16 %v1903, %v1900
    %v1940 = vpack.c.b16 %v1904, %v1901
    %v1941 = vpack.c.b16 %v1908, %v1905
    %v1942 = vpack.c.b16 %v1909, %v1906
    %v1943 = vpack.c.b16 %v1910, %v1907
    %v1944 = vpack.c.b16 %v1914, %v1911
    %v1945 = vpack.c.b16 %v1915, %v1912
    %v1946 = vpack.c.b16 %v1916, %v1913
    %v1947 = vpack.c.b16 %v1920, %v1917
    %v1948 = vpack.c.b16 %v1921, %v1918
    %v1949 = vpack.c.b16 %v1922, %v1919
    %v1950 = vpack.c.b16 %v1926, %v1923
    %v1951 = vpack.c.b16 %v1927, %v1924
    %v1952 = vpack.c.b16 %v1928, %v1925
    %1977 = vmatpush.bf16.msra.mxu0 %v1950
    %1978 = vmatpush.bf16.msra.mxu0 %v1947
    %1979 = vmatpush.bf16.msra.mxu0 %v1944
    %1980 = vmatpush.bf16.msra.mxu0 %v1941
    %1981 = vmatpush.bf16.msra.mxu0 %v1938
    %1982 = vmatpush.bf16.msra.mxu0 %v1935
    %1983 = vmatpush.bf16.msra.mxu0 %v1932
    %1984 = vmatpush.bf16.msra.mxu0 %v1929
    %1985 = vmatmul.bf16.gmra.mxu0 %v1806
    %v1986 = vpop.f32.mrf.mxu0
    %v1987 = vadd.f32 %v1843, %v1986
    %v1988 = vpop.f32.mrf.mxu0
    %1989 = vdwg.mxu0
    %1990 = vmatpush.bf16.msra.mxu0 %v1951
    %1991 = vmatpush.bf16.msra.mxu0 %v1948
    %1992 = vmatpush.bf16.msra.mxu0 %v1945
    %1993 = vmatpush.bf16.msra.mxu0 %v1942
    %1994 = vmatpush.bf16.msra.mxu0 %v1939
    %1995 = vmatpush.bf16.msra.mxu0 %v1936
    %1996 = vmatpush.bf16.msra.mxu0 %v1933
    %1997 = vmatpush.bf16.msra.mxu0 %v1930
    %1998 = vmatmul.bf16.gmra.mxu0 %v1806
    %v1999 = vpop.f32.mrf.mxu0
    %v2000 = vadd.f32 %v1844, %v1999
    %v2001 = vpop.f32.mrf.mxu0
    %2002 = vdwg.mxu0
    %2003 = vmatpush.bf16.msra.mxu0 %v1952
    %2004 = vmatpush.bf16.msra.mxu0 %v1949
    %2005 = vmatpush.bf16.msra.mxu0 %v1946
    %2006 = vmatpush.bf16.msra.mxu0 %v1943
    %2007 = vmatpush.bf16.msra.mxu0 %v1940
    %2008 = vmatpush.bf16.msra.mxu0 %v1937
    %2009 = vmatpush.bf16.msra.mxu0 %v1934
    %2010 = vmatpush.bf16.msra.mxu0 %v1931
    %2011 = vmatmul.bf16.gmra.mxu0 %v1806
    %v2012 = vpop.f32.mrf.mxu0
    %v2013 = vadd.f32 %v1845, %v2012
    %v2014 = vpop.f32.mrf.mxu0
    %2015 = vdwg.mxu0
    %v2016 = vmul.f32 %v1987, %v519
    %v2017 = vmul.f32 %v1987, %v520
    %v2018 = vmul.f32 %v1987, %v521
    %v2019 = vmul.f32 %v1987, %v522
    %v2020 = vpack.c.bf16 %v2017, %v2016
    %v2021 = vpack.c.bf16 %v2019, %v2018
    %v2022 = vpack.c.bf16 %v2000, %v2000
    %2023 = vmatpush.bf16.xpose.msra.mxu0 0
    %2024 = vmatpush.bf16.xpose.msra.mxu0 0
    %2025 = vmatpush.bf16.xpose.msra.mxu0 0
    %2026 = vmatpush.bf16.xpose.msra.mxu0 0
    %2027 = vmatpush.bf16.xpose.msra.mxu0 0
    %2028 = vmatpush.bf16.xpose.msra.mxu0 0
    %2029 = vmatpush.bf16.xpose.msra.mxu0 0
    %2030 = vmatpush.bf16.xpose.msra.mxu0 %v2022
    %2031 = vmatmul.bf16.gmra.mxu0 %v2020
    %v2032 = vpop.f32.mrf.mxu0
    %v2033 = vadd.f32 %v527, %v2032
    %v2034 = vpop.f32.mrf.mxu0
    %v2035 = vadd.f32 %v528, %v2034
    %2036 = vmatmul.bf16.gmra.mxu0 %v2021
    %v2037 = vpop.f32.mrf.mxu0
    %v2038 = vadd.f32 %v529, %v2037
    %v2039 = vpop.f32.mrf.mxu0
    %v2040 = vadd.f32 %v530, %v2039
    %2041 = vdwg.mxu0
    %v2042 = vsel %vm765, %v2033, -inf
    %2043 = vmax.xlane.f32.xlu0 %v2042
    %v2044 = vpop.xlane.xlu0 %2043
    %v2045 = vsel %vm765, %v2035, -inf
    %2046 = vmax.xlane.f32.xlu0 %v2045
    %v2047 = vpop.xlane.xlu0 %2046
    %v2048 = vsel %vm765, %v2038, -inf
    %2049 = vmax.xlane.f32.xlu0 %v2048
    %v2050 = vpop.xlane.xlu0 %2049
    %v2051 = vsel %vm765, %v2040, -inf
    %2052 = vmax.xlane.f32.xlu0 %v2051
    %v2053 = vpop.xlane.xlu0 %2052
    %v2054 = vsub.f32 %v2033, %v2044
    %v2055 = vsub.f32 %v2035, %v2047
    %v2056 = vsub.f32 %v2038, %v2050
    %v2057 = vsub.f32 %v2040, %v2053
    %v2058 = vmul.f32 %v2054, 1.442695
    %v2059 = vpow.pop %v2058
    %v2060 = vmul.f32 %v2055, 1.442695
    %v2061 = vpow.pop %v2060
    %v2062 = vmul.f32 %v2056, 1.442695
    %v2063 = vpow.pop %v2062
    %v2064 = vmul.f32 %v2057, 1.442695
    %v2065 = vpow.pop %v2064
    %v2066 = vsel %vm765, %v2059, 0.0
    %2067 = vadd.xlane.f32.xlu0 %v2066
    %v2068 = vpop.xlane.xlu0 %2067
    %v2069 = vsel %vm765, %v2061, 0.0
    %2070 = vadd.xlane.f32.xlu0 %v2069
    %v2071 = vpop.xlane.xlu0 %2070
    %v2072 = vsel %vm765, %v2063, 0.0
    %2073 = vadd.xlane.f32.xlu0 %v2072
    %v2074 = vpop.xlane.xlu0 %2073
    %v2075 = vsel %vm765, %v2065, 0.0
    %2076 = vadd.xlane.f32.xlu0 %v2075
    %v2077 = vpop.xlane.xlu0 %2076
    %v2078 = vrcp.pop %v2068
    %v2079 = vrcp.pop %v2071
    %v2080 = vrcp.pop %v2074
    %v2081 = vrcp.pop %v2077
    %v2082 = vmul.f32 %v2059, %v2078
    %v2083 = vmul.f32 %v2061, %v2079
    %v2084 = vmul.f32 %v2063, %v2080
    %v2085 = vmul.f32 %v2065, %v2081
    %v2086 = vpack.c.bf16 %v2083, %v2082
    %v2087 = vpack.c.bf16 %v2085, %v2084
    %v2088 = vpack.c.bf16 %v2013, %v2013
    %v2090 = vsel %vm765, %v2086, 0
    %v2093 = vsel %vm765, %v2087, 0
    %v2096 = vsel %vm819, %v2088, 0
    %2098 = vmatpush.bf16.msra.mxu0 0
    %2099 = vmatpush.bf16.msra.mxu0 0
    %2100 = vmatpush.bf16.msra.mxu0 0
    %2101 = vmatpush.bf16.msra.mxu0 0
    %2102 = vmatpush.bf16.msra.mxu0 0
    %2103 = vmatpush.bf16.msra.mxu0 0
    %2104 = vmatpush.bf16.msra.mxu0 0
    %2105 = vmatpush.bf16.msra.mxu0 %v2096
    %2106 = vmatmul.bf16.gmra.mxu0 %v2090
    %v2107 = vpop.f32.mrf.mxu0
    %v2108 = vadd.f32 0.0, %v2107
    %v2109 = vpop.f32.mrf.mxu0
    %v2110 = vadd.f32 0.0, %v2109
    %2111 = vmatmul.bf16.gmra.mxu0 %v2093
    %v2112 = vpop.f32.mrf.mxu0
    %v2113 = vadd.f32 0.0, %v2112
    %v2114 = vpop.f32.mrf.mxu0
    %v2115 = vadd.f32 0.0, %v2114
    %2116 = vdwg.mxu0
    %v2117 = vmul.f32 %v2108, %v842
    %v2118 = vmul.f32 %v2110, %v843
    %v2119 = vmul.f32 %v2113, %v844
    %v2120 = vmul.f32 %v2115, %v845
    %v2121 = vadd.f32 %v2117, %v2118
    %v2122 = vadd.f32 %v2121, %v2119
    %v2123 = vadd.f32 %v2122, %v2120
    %v2124 = vpack.c.bf16 %v2123, %v2123
    %s2125 = scalar_lea.vmem [#allocation15], 128
    %v2126 = vld [vmem:[%s2125] sm:$0xf]
    %v2127 = vld [vmem:[%s2125 + $0x4] sm:$0xf]
    %v2128 = vld [vmem:[%s2125 + $0x8] sm:$0xf]
    %v2129 = vld [vmem:[%s2125 + $0xc] sm:$0xf]
    %v2130 = vld [vmem:[%s2125 + $0x10] sm:$0xf]
    %v2131 = vld [vmem:[%s2125 + $0x14] sm:$0xf]
    %v2132 = vld [vmem:[%s2125 + $0x18] sm:$0xf]
    %v2133 = vld [vmem:[%s2125 + $0x1c] sm:$0xf]
    %v2134 = vld [vmem:[%s2125 + $0x20] sm:$0xf]
    %v2135 = vld [vmem:[%s2125 + $0x24] sm:$0xf]
    %v2136 = vld [vmem:[%s2125 + $0x28] sm:$0xf]
    %v2137 = vld [vmem:[%s2125 + $0x2c] sm:$0xf]
    %v2138 = vld [vmem:[%s2125 + $0x30] sm:$0xf]
    %v2139 = vld [vmem:[%s2125 + $0x34] sm:$0xf]
    %v2140 = vld [vmem:[%s2125 + $0x38] sm:$0xf]
    %v2141 = vld [vmem:[%s2125 + $0x3c] sm:$0xf]
    %s2142 = scalar_lea.vmem %s11, 2
    %v2143 = vld [vmem:[%s2142] sm:$0x1]
    %v2145 = vperm.slane %v2143, 0
    %v2163 = vunpack.c.l.b16 %v2126
    %v2164 = vunpack.c.l.b16 %v2127
    %v2165 = vunpack.c.l.b16 %v2128
    %v2166 = vunpack.c.l.b16 %v2129
    %v2167 = vunpack.c.l.b16 %v2130
    %v2168 = vunpack.c.l.b16 %v2131
    %v2169 = vunpack.c.l.b16 %v2132
    %v2170 = vunpack.c.l.b16 %v2133
    %v2171 = vunpack.c.l.b16 %v2134
    %v2172 = vunpack.c.l.b16 %v2135
    %v2173 = vunpack.c.l.b16 %v2136
    %v2174 = vunpack.c.l.b16 %v2137
    %v2175 = vunpack.c.l.b16 %v2138
    %v2176 = vunpack.c.l.b16 %v2139
    %v2177 = vunpack.c.l.b16 %v2140
    %v2178 = vunpack.c.l.b16 %v2141
    %v2179 = vpack.c.b16 %v2164, %v2163
    %v2180 = vpack.c.b16 %v2166, %v2165
    %v2181 = vpack.c.b16 %v2168, %v2167
    %v2182 = vpack.c.b16 %v2170, %v2169
    %v2183 = vpack.c.b16 %v2172, %v2171
    %v2184 = vpack.c.b16 %v2174, %v2173
    %v2185 = vpack.c.b16 %v2176, %v2175
    %v2186 = vpack.c.b16 %v2178, %v2177
    %2195 = vmatpush.bf16.msra.mxu0 %v2186
    %2196 = vmatpush.bf16.msra.mxu0 %v2185
    %2197 = vmatpush.bf16.msra.mxu0 %v2184
    %2198 = vmatpush.bf16.msra.mxu0 %v2183
    %2199 = vmatpush.bf16.msra.mxu0 %v2182
    %2200 = vmatpush.bf16.msra.mxu0 %v2181
    %2201 = vmatpush.bf16.msra.mxu0 %v2180
    %2202 = vmatpush.bf16.msra.mxu0 %v2179
    %2203 = vmatmul.bf16.gmra.mxu0 %v2124
    %v2204 = vpop.f32.mrf.mxu0
    %v2205 = vadd.f32 %v2145, %v2204
    %v2206 = vpop.f32.mrf.mxu0
    %2207 = vdwg.mxu0
    %v2208 = vadd.f32 %v1805, %v2205
    %s2209 = scalar_lea.vmem [#allocation17], 2
    %v2210 = vld [vmem:[%s2209] sm:$0x1]
    %s2211 = scalar_lea.vmem %s13, 2
    %v2212 = vld [vmem:[%s2211] sm:$0x1]
    %2213 = vadd.xlane.f32.xlu0 %v2208
    %v2214 = vpop.xlane.xlu0 %2213
    %v2215 = vmul.f32 %v2214, %v946
    %v2216 = vsub.f32 %v2208, %v2215
    %v2217 = vmul.f32 %v2216, %v2216
    %2218 = vadd.xlane.f32.xlu0 %v2217
    %v2219 = vpop.xlane.xlu0 %2218
    %v2220 = vmul.f32 %v2219, %v946
    %v2221 = vadd.f32 %v2220, 1e-05
    %v2222 = vrsqrt.pop %v2221
    %v2223 = vmul.f32 %v2222, %v2221
    %v2224 = vmul.f32 %v2223, %v2222
    %v2225 = vmul.f32 0.5, %v2224
    %v2226 = vsub.f32 1.5, %v2225
    %v2227 = vmul.f32 %v2222, %v2226
    %vm2228 = vweird.f32 %v2221
    %vm2229 = vweird.f32 %v2222
    %vm2230 = vmor %vm2228, %vm2229
    %v2231 = vsel %vm2230, %v2222, %v2227
    %v2232 = vmul.f32 %v2216, %v2231
    %v2234 = vperm.slane %v2210, 0
    %v2236 = vmul.f32 %v2232, %v2234
    %v2238 = vperm.slane %v2212, 0
    %v2240 = vadd.f32 %v2236, %v2238
    %v2241 = vpack.c.bf16 %v2240, %v2240
    %s2242 = scalar_lea.vmem [#allocation18], 128
    %v2243 = vld [vmem:[%s2242] sm:$0xf]
    %v2244 = vld [vmem:[%s2242 + $0x4] sm:$0xf]
    %v2245 = vld [vmem:[%s2242 + $0x8] sm:$0xf]
    %v2246 = vld [vmem:[%s2242 + $0xc] sm:$0xf]
    %v2247 = vld [vmem:[%s2242 + $0x10] sm:$0xf]
    %v2248 = vld [vmem:[%s2242 + $0x14] sm:$0xf]
    %v2249 = vld [vmem:[%s2242 + $0x18] sm:$0xf]
    %v2250 = vld [vmem:[%s2242 + $0x1c] sm:$0xf]
    %v2251 = vld [vmem:[%s2242 + $0x20] sm:$0xf]
    %v2252 = vld [vmem:[%s2242 + $0x24] sm:$0xf]
    %v2253 = vld [vmem:[%s2242 + $0x28] sm:$0xf]
    %v2254 = vld [vmem:[%s2242 + $0x2c] sm:$0xf]
    %v2255 = vld [vmem:[%s2242 + $0x30] sm:$0xf]
    %v2256 = vld [vmem:[%s2242 + $0x34] sm:$0xf]
    %v2257 = vld [vmem:[%s2242 + $0x38] sm:$0xf]
    %v2258 = vld [vmem:[%s2242 + $0x3c] sm:$0xf]
    %s2259 = scalar_lea.vmem [#allocation20], 2
    %v2260 = vld [vmem:[%s2259] sm:$0x1]
    %v2262 = vperm.slane %v2260, 0
    %v2280 = vunpack.c.l.b16 %v2243
    %v2281 = vunpack.c.l.b16 %v2244
    %v2282 = vunpack.c.l.b16 %v2245
    %v2283 = vunpack.c.l.b16 %v2246
    %v2284 = vunpack.c.l.b16 %v2247
    %v2285 = vunpack.c.l.b16 %v2248
    %v2286 = vunpack.c.l.b16 %v2249
    %v2287 = vunpack.c.l.b16 %v2250
    %v2288 = vunpack.c.l.b16 %v2251
    %v2289 = vunpack.c.l.b16 %v2252
    %v2290 = vunpack.c.l.b16 %v2253
    %v2291 = vunpack.c.l.b16 %v2254
    %v2292 = vunpack.c.l.b16 %v2255
    %v2293 = vunpack.c.l.b16 %v2256
    %v2294 = vunpack.c.l.b16 %v2257
    %v2295 = vunpack.c.l.b16 %v2258
    %v2296 = vpack.c.b16 %v2281, %v2280
    %v2297 = vpack.c.b16 %v2283, %v2282
    %v2298 = vpack.c.b16 %v2285, %v2284
    %v2299 = vpack.c.b16 %v2287, %v2286
    %v2300 = vpack.c.b16 %v2289, %v2288
    %v2301 = vpack.c.b16 %v2291, %v2290
    %v2302 = vpack.c.b16 %v2293, %v2292
    %v2303 = vpack.c.b16 %v2295, %v2294
    %2312 = vmatpush.bf16.msra.mxu0 %v2303
    %2313 = vmatpush.bf16.msra.mxu0 %v2302
    %2314 = vmatpush.bf16.msra.mxu0 %v2301
    %2315 = vmatpush.bf16.msra.mxu0 %v2300
    %2316 = vmatpush.bf16.msra.mxu0 %v2299
    %2317 = vmatpush.bf16.msra.mxu0 %v2298
    %2318 = vmatpush.bf16.msra.mxu0 %v2297
    %2319 = vmatpush.bf16.msra.mxu0 %v2296
    %2320 = vmatmul.bf16.gmra.mxu0 %v2241
    %v2321 = vpop.f32.mrf.mxu0
    %v2322 = vadd.f32 %v2262, %v2321
    %v2323 = vpop.f32.mrf.mxu0
    %2324 = vdwg.mxu0
    %v2325 = vmax.f32 %v2322, 0.0
    %v2326 = vpack.c.bf16 %v2325, %v2325
    %s2327 = scalar_lea.vmem [#allocation21], 128
    %v2328 = vld [vmem:[%s2327] sm:$0xf]
    %v2329 = vld [vmem:[%s2327 + $0x4] sm:$0xf]
    %v2330 = vld [vmem:[%s2327 + $0x8] sm:$0xf]
    %v2331 = vld [vmem:[%s2327 + $0xc] sm:$0xf]
    %v2332 = vld [vmem:[%s2327 + $0x10] sm:$0xf]
    %v2333 = vld [vmem:[%s2327 + $0x14] sm:$0xf]
    %v2334 = vld [vmem:[%s2327 + $0x18] sm:$0xf]
    %v2335 = vld [vmem:[%s2327 + $0x1c] sm:$0xf]
    %v2336 = vld [vmem:[%s2327 + $0x20] sm:$0xf]
    %v2337 = vld [vmem:[%s2327 + $0x24] sm:$0xf]
    %v2338 = vld [vmem:[%s2327 + $0x28] sm:$0xf]
    %v2339 = vld [vmem:[%s2327 + $0x2c] sm:$0xf]
    %v2340 = vld [vmem:[%s2327 + $0x30] sm:$0xf]
    %v2341 = vld [vmem:[%s2327 + $0x34] sm:$0xf]
    %v2342 = vld [vmem:[%s2327 + $0x38] sm:$0xf]
    %v2343 = vld [vmem:[%s2327 + $0x3c] sm:$0xf]
    %s2344 = scalar_lea.vmem %s17, 2
    %v2345 = vld [vmem:[%s2344] sm:$0x1]
    %v2347 = vperm.slane %v2345, 0
    %v2365 = vunpack.c.l.b16 %v2328
    %v2366 = vunpack.c.l.b16 %v2329
    %v2367 = vunpack.c.l.b16 %v2330
    %v2368 = vunpack.c.l.b16 %v2331
    %v2369 = vunpack.c.l.b16 %v2332
    %v2370 = vunpack.c.l.b16 %v2333
    %v2371 = vunpack.c.l.b16 %v2334
    %v2372 = vunpack.c.l.b16 %v2335
    %v2373 = vunpack.c.l.b16 %v2336
    %v2374 = vunpack.c.l.b16 %v2337
    %v2375 = vunpack.c.l.b16 %v2338
    %v2376 = vunpack.c.l.b16 %v2339
    %v2377 = vunpack.c.l.b16 %v2340
    %v2378 = vunpack.c.l.b16 %v2341
    %v2379 = vunpack.c.l.b16 %v2342
    %v2380 = vunpack.c.l.b16 %v2343
    %v2381 = vpack.c.b16 %v2366, %v2365
    %v2382 = vpack.c.b16 %v2368, %v2367
    %v2383 = vpack.c.b16 %v2370, %v2369
    %v2384 = vpack.c.b16 %v2372, %v2371
    %v2385 = vpack.c.b16 %v2374, %v2373
    %v2386 = vpack.c.b16 %v2376, %v2375
    %v2387 = vpack.c.b16 %v2378, %v2377
    %v2388 = vpack.c.b16 %v2380, %v2379
    %2397 = vmatpush.bf16.msra.mxu0 %v2388
    %2398 = vmatpush.bf16.msra.mxu0 %v2387
    %2399 = vmatpush.bf16.msra.mxu0 %v2386
    %2400 = vmatpush.bf16.msra.mxu0 %v2385
    %2401 = vmatpush.bf16.msra.mxu0 %v2384
    %2402 = vmatpush.bf16.msra.mxu0 %v2383
    %2403 = vmatpush.bf16.msra.mxu0 %v2382
    %2404 = vmatpush.bf16.msra.mxu0 %v2381
    %2405 = vmatmul.bf16.gmra.mxu0 %v2326
    %v2406 = vpop.f32.mrf.mxu0
    %v2407 = vadd.f32 %v2347, %v2406
    %v2408 = vpop.f32.mrf.mxu0
    %2409 = vdwg.mxu0
    %v2410 = vadd.f32 %v2240, %v2407
    %s2411 = scalar_lea.vmem [#allocation23], 2
    %v2412 = vld [vmem:[%s2411] sm:$0x1]
    %s2413 = scalar_lea.vmem [#allocation24], 2
    %v2414 = vld [vmem:[%s2413] sm:$0x1]
    %2415 = vadd.xlane.f32.xlu0 %v2410
    %v2416 = vpop.xlane.xlu0 %2415
    %v2417 = vmul.f32 %v2416, %v946
    %v2418 = vsub.f32 %v2410, %v2417
    %v2419 = vmul.f32 %v2418, %v2418
    %2420 = vadd.xlane.f32.xlu0 %v2419
    %v2421 = vpop.xlane.xlu0 %2420
    %v2422 = vmul.f32 %v2421, %v946
    %v2423 = vadd.f32 %v2422, 1e-05
    %v2424 = vrsqrt.pop %v2423
    %v2425 = vmul.f32 %v2424, %v2423
    %v2426 = vmul.f32 %v2425, %v2424
    %v2427 = vmul.f32 0.5, %v2426
    %v2428 = vsub.f32 1.5, %v2427
    %v2429 = vmul.f32 %v2424, %v2428
    %vm2430 = vweird.f32 %v2423
    %vm2431 = vweird.f32 %v2424
    %vm2432 = vmor %vm2430, %vm2431
    %v2433 = vsel %vm2432, %v2424, %v2429
    %v2434 = vmul.f32 %v2418, %v2433
    %v2436 = vperm.slane %v2412, 0
    %v2438 = vmul.f32 %v2434, %v2436
    %v2440 = vperm.slane %v2414, 0
    %v2442 = vadd.f32 %v2438, %v2440
    %v2443 = vpack.c.bf16 %v2442, %v2442
    %s2444 = scalar_lea.vmem [#allocation14], 576
    %v2445 = vld [vmem:[%s2444] sm:$0xff]
    %v2446 = vld [vmem:[%s2444 + $0x8] sm:$0xf]
    %v2447 = vld [vmem:[%s2444 + $0xc] sm:$0xff]
    %v2448 = vld [vmem:[%s2444 + $0x14] sm:$0xf]
    %v2449 = vld [vmem:[%s2444 + $0x18] sm:$0xff]
    %v2450 = vld [vmem:[%s2444 + $0x20] sm:$0xf]
    %v2451 = vld [vmem:[%s2444 + $0x24] sm:$0xff]
    %v2452 = vld [vmem:[%s2444 + $0x2c] sm:$0xf]
    %v2453 = vld [vmem:[%s2444 + $0x30] sm:$0xff]
    %v2454 = vld [vmem:[%s2444 + $0x38] sm:$0xf]
    %v2455 = vld [vmem:[%s2444 + $0x3c] sm:$0xff]
    %v2456 = vld [vmem:[%s2444 + $0x44] sm:$0xf]
    %v2457 = vld [vmem:[%s2444 + $0x48] sm:$0xff]
    %v2458 = vld [vmem:[%s2444 + $0x50] sm:$0xf]
    %v2459 = vld [vmem:[%s2444 + $0x54] sm:$0xff]
    %v2460 = vld [vmem:[%s2444 + $0x5c] sm:$0xf]
    %v2461 = vld [vmem:[%s2444 + $0x60] sm:$0xff]
    %v2462 = vld [vmem:[%s2444 + $0x68] sm:$0xf]
    %v2463 = vld [vmem:[%s2444 + $0x6c] sm:$0xff]
    %v2464 = vld [vmem:[%s2444 + $0x74] sm:$0xf]
    %v2465 = vld [vmem:[%s2444 + $0x78] sm:$0xff]
    %v2466 = vld [vmem:[%s2444 + $0x80] sm:$0xf]
    %v2467 = vld [vmem:[%s2444 + $0x84] sm:$0xff]
    %v2468 = vld [vmem:[%s2444 + $0x8c] sm:$0xf]
    %v2469 = vld [vmem:[%s2444 + $0x90] sm:$0xff]
    %v2470 = vld [vmem:[%s2444 + $0x98] sm:$0xf]
    %v2471 = vld [vmem:[%s2444 + $0x9c] sm:$0xff]
    %v2472 = vld [vmem:[%s2444 + $0xa4] sm:$0xf]
    %v2473 = vld [vmem:[%s2444 + $0xa8] sm:$0xff]
    %v2474 = vld [vmem:[%s2444 + $0xb0] sm:$0xf]
    %v2475 = vld [vmem:[%s2444 + $0xb4] sm:$0xff]
    %v2476 = vld [vmem:[%s2444 + $0xbc] sm:$0xf]
    %s2477 = scalar_lea.vmem %s9, 9
    %v2478 = vld [vmem:[%s2477] sm:$0x7]
    %v2480 = vperm.slane %v2478, 0
    %v2481 = vperm.slane %v2478, 1
    %v2482 = vperm.slane %v2478, 2
    %v2518 = vunpack.c.l.b16 %v2445
    %v2519 = vunpack.c.h.b16 %v2445
    %v2520 = vunpack.c.l.b16 %v2446
    %v2521 = vunpack.c.l.b16 %v2447
    %v2522 = vunpack.c.h.b16 %v2447
    %v2523 = vunpack.c.l.b16 %v2448
    %v2524 = vunpack.c.l.b16 %v2449
    %v2525 = vunpack.c.h.b16 %v2449
    %v2526 = vunpack.c.l.b16 %v2450
    %v2527 = vunpack.c.l.b16 %v2451
    %v2528 = vunpack.c.h.b16 %v2451
    %v2529 = vunpack.c.l.b16 %v2452
    %v2530 = vunpack.c.l.b16 %v2453
    %v2531 = vunpack.c.h.b16 %v2453
    %v2532 = vunpack.c.l.b16 %v2454
    %v2533 = vunpack.c.l.b16 %v2455
    %v2534 = vunpack.c.h.b16 %v2455
    %v2535 = vunpack.c.l.b16 %v2456
    %v2536 = vunpack.c.l.b16 %v2457
    %v2537 = vunpack.c.h.b16 %v2457
    %v2538 = vunpack.c.l.b16 %v2458
    %v2539 = vunpack.c.l.b16 %v2459
    %v2540 = vunpack.c.h.b16 %v2459
    %v2541 = vunpack.c.l.b16 %v2460
    %v2542 = vunpack.c.l.b16 %v2461
    %v2543 = vunpack.c.h.b16 %v2461
    %v2544 = vunpack.c.l.b16 %v2462
    %v2545 = vunpack.c.l.b16 %v2463
    %v2546 = vunpack.c.h.b16 %v2463
    %v2547 = vunpack.c.l.b16 %v2464
    %v2548 = vunpack.c.l.b16 %v2465
    %v2549 = vunpack.c.h.b16 %v2465
    %v2550 = vunpack.c.l.b16 %v2466
    %v2551 = vunpack.c.l.b16 %v2467
    %v2552 = vunpack.c.h.b16 %v2467
    %v2553 = vunpack.c.l.b16 %v2468
    %v2554 = vunpack.c.l.b16 %v2469
    %v2555 = vunpack.c.h.b16 %v2469
    %v2556 = vunpack.c.l.b16 %v2470
    %v2557 = vunpack.c.l.b16 %v2471
    %v2558 = vunpack.c.h.b16 %v2471
    %v2559 = vunpack.c.l.b16 %v2472
    %v2560 = vunpack.c.l.b16 %v2473
    %v2561 = vunpack.c.h.b16 %v2473
    %v2562 = vunpack.c.l.b16 %v2474
    %v2563 = vunpack.c.l.b16 %v2475
    %v2564 = vunpack.c.h.b16 %v2475
    %v2565 = vunpack.c.l.b16 %v2476
    %v2566 = vpack.c.b16 %v2521, %v2518
    %v2567 = vpack.c.b16 %v2522, %v2519
    %v2568 = vpack.c.b16 %v2523, %v2520
    %v2569 = vpack.c.b16 %v2527, %v2524
    %v2570 = vpack.c.b16 %v2528, %v2525
    %v2571 = vpack.c.b16 %v2529, %v2526
    %v2572 = vpack.c.b16 %v2533, %v2530
    %v2573 = vpack.c.b16 %v2534, %v2531
    %v2574 = vpack.c.b16 %v2535, %v2532
    %v2575 = vpack.c.b16 %v2539, %v2536
    %v2576 = vpack.c.b16 %v2540, %v2537
    %v2577 = vpack.c.b16 %v2541, %v2538
    %v2578 = vpack.c.b16 %v2545, %v2542
    %v2579 = vpack.c.b16 %v2546, %v2543
    %v2580 = vpack.c.b16 %v2547, %v2544
    %v2581 = vpack.c.b16 %v2551, %v2548
    %v2582 = vpack.c.b16 %v2552, %v2549
    %v2583 = vpack.c.b16 %v2553, %v2550
    %v2584 = vpack.c.b16 %v2557, %v2554
    %v2585 = vpack.c.b16 %v2558, %v2555
    %v2586 = vpack.c.b16 %v2559, %v2556
    %v2587 = vpack.c.b16 %v2563, %v2560
    %v2588 = vpack.c.b16 %v2564, %v2561
    %v2589 = vpack.c.b16 %v2565, %v2562
    %2614 = vmatpush.bf16.msra.mxu0 %v2587
    %2615 = vmatpush.bf16.msra.mxu0 %v2584
    %2616 = vmatpush.bf16.msra.mxu0 %v2581
    %2617 = vmatpush.bf16.msra.mxu0 %v2578
    %2618 = vmatpush.bf16.msra.mxu0 %v2575
    %2619 = vmatpush.bf16.msra.mxu0 %v2572
    %2620 = vmatpush.bf16.msra.mxu0 %v2569
    %2621 = vmatpush.bf16.msra.mxu0 %v2566
    %2622 = vmatmul.bf16.gmra.mxu0 %v2443
    %v2623 = vpop.f32.mrf.mxu0
    %v2624 = vadd.f32 %v2480, %v2623
    %v2625 = vpop.f32.mrf.mxu0
    %2626 = vdwg.mxu0
    %2627 = vmatpush.bf16.msra.mxu0 %v2588
    %2628 = vmatpush.bf16.msra.mxu0 %v2585
    %2629 = vmatpush.bf16.msra.mxu0 %v2582
    %2630 = vmatpush.bf16.msra.mxu0 %v2579
    %2631 = vmatpush.bf16.msra.mxu0 %v2576
    %2632 = vmatpush.bf16.msra.mxu0 %v2573
    %2633 = vmatpush.bf16.msra.mxu0 %v2570
    %2634 = vmatpush.bf16.msra.mxu0 %v2567
    %2635 = vmatmul.bf16.gmra.mxu0 %v2443
    %v2636 = vpop.f32.mrf.mxu0
    %v2637 = vadd.f32 %v2481, %v2636
    %v2638 = vpop.f32.mrf.mxu0
    %2639 = vdwg.mxu0
    %2640 = vmatpush.bf16.msra.mxu0 %v2589
    %2641 = vmatpush.bf16.msra.mxu0 %v2586
    %2642 = vmatpush.bf16.msra.mxu0 %v2583
    %2643 = vmatpush.bf16.msra.mxu0 %v2580
    %2644 = vmatpush.bf16.msra.mxu0 %v2577
    %2645 = vmatpush.bf16.msra.mxu0 %v2574
    %2646 = vmatpush.bf16.msra.mxu0 %v2571
    %2647 = vmatpush.bf16.msra.mxu0 %v2568
    %2648 = vmatmul.bf16.gmra.mxu0 %v2443
    %v2649 = vpop.f32.mrf.mxu0
    %v2650 = vadd.f32 %v2482, %v2649
    %v2651 = vpop.f32.mrf.mxu0
    %2652 = vdwg.mxu0
    %v2653 = vmul.f32 %v2624, %v519
    %v2654 = vmul.f32 %v2624, %v520
    %v2655 = vmul.f32 %v2624, %v521
    %v2656 = vmul.f32 %v2624, %v522
    %v2657 = vpack.c.bf16 %v2654, %v2653
    %v2658 = vpack.c.bf16 %v2656, %v2655
    %v2659 = vpack.c.bf16 %v2637, %v2637
    %2660 = vmatpush.bf16.xpose.msra.mxu0 0
    %2661 = vmatpush.bf16.xpose.msra.mxu0 0
    %2662 = vmatpush.bf16.xpose.msra.mxu0 0
    %2663 = vmatpush.bf16.xpose.msra.mxu0 0
    %2664 = vmatpush.bf16.xpose.msra.mxu0 0
    %2665 = vmatpush.bf16.xpose.msra.mxu0 0
    %2666 = vmatpush.bf16.xpose.msra.mxu0 0
    %2667 = vmatpush.bf16.xpose.msra.mxu0 %v2659
    %2668 = vmatmul.bf16.gmra.mxu0 %v2657
    %v2669 = vpop.f32.mrf.mxu0
    %v2670 = vadd.f32 %v527, %v2669
    %v2671 = vpop.f32.mrf.mxu0
    %v2672 = vadd.f32 %v528, %v2671
    %2673 = vmatmul.bf16.gmra.mxu0 %v2658
    %v2674 = vpop.f32.mrf.mxu0
    %v2675 = vadd.f32 %v529, %v2674
    %v2676 = vpop.f32.mrf.mxu0
    %v2677 = vadd.f32 %v530, %v2676
    %2678 = vdwg.mxu0
    %v2679 = vsel %vm765, %v2670, -inf
    %2680 = vmax.xlane.f32.xlu0 %v2679
    %v2681 = vpop.xlane.xlu0 %2680
    %v2682 = vsel %vm765, %v2672, -inf
    %2683 = vmax.xlane.f32.xlu0 %v2682
    %v2684 = vpop.xlane.xlu0 %2683
    %v2685 = vsel %vm765, %v2675, -inf
    %2686 = vmax.xlane.f32.xlu0 %v2685
    %v2687 = vpop.xlane.xlu0 %2686
    %v2688 = vsel %vm765, %v2677, -inf
    %2689 = vmax.xlane.f32.xlu0 %v2688
    %v2690 = vpop.xlane.xlu0 %2689
    %v2691 = vsub.f32 %v2670, %v2681
    %v2692 = vsub.f32 %v2672, %v2684
    %v2693 = vsub.f32 %v2675, %v2687
    %v2694 = vsub.f32 %v2677, %v2690
    %v2695 = vmul.f32 %v2691, 1.442695
    %v2696 = vpow.pop %v2695
    %v2697 = vmul.f32 %v2692, 1.442695
    %v2698 = vpow.pop %v2697
    %v2699 = vmul.f32 %v2693, 1.442695
    %v2700 = vpow.pop %v2699
    %v2701 = vmul.f32 %v2694, 1.442695
    %v2702 = vpow.pop %v2701
    %v2703 = vsel %vm765, %v2696, 0.0
    %2704 = vadd.xlane.f32.xlu0 %v2703
    %v2705 = vpop.xlane.xlu0 %2704
    %v2706 = vsel %vm765, %v2698, 0.0
    %2707 = vadd.xlane.f32.xlu0 %v2706
    %v2708 = vpop.xlane.xlu0 %2707
    %v2709 = vsel %vm765, %v2700, 0.0
    %2710 = vadd.xlane.f32.xlu0 %v2709
    %v2711 = vpop.xlane.xlu0 %2710
    %v2712 = vsel %vm765, %v2702, 0.0
    %2713 = vadd.xlane.f32.xlu0 %v2712
    %v2714 = vpop.xlane.xlu0 %2713
    %v2715 = vrcp.pop %v2705
    %v2716 = vrcp.pop %v2708
    %v2717 = vrcp.pop %v2711
    %v2718 = vrcp.pop %v2714
    %v2719 = vmul.f32 %v2696, %v2715
    %v2720 = vmul.f32 %v2698, %v2716
    %v2721 = vmul.f32 %v2700, %v2717
    %v2722 = vmul.f32 %v2702, %v2718
    %v2723 = vpack.c.bf16 %v2720, %v2719
    %v2724 = vpack.c.bf16 %v2722, %v2721
    %v2725 = vpack.c.bf16 %v2650, %v2650
    %v2727 = vsel %vm765, %v2723, 0
    %v2730 = vsel %vm765, %v2724, 0
    %v2733 = vsel %vm819, %v2725, 0
    %2735 = vmatpush.bf16.msra.mxu0 0
    %2736 = vmatpush.bf16.msra.mxu0 0
    %2737 = vmatpush.bf16.msra.mxu0 0
    %2738 = vmatpush.bf16.msra.mxu0 0
    %2739 = vmatpush.bf16.msra.mxu0 0
    %2740 = vmatpush.bf16.msra.mxu0 0
    %2741 = vmatpush.bf16.msra.mxu0 0
    %2742 = vmatpush.bf16.msra.mxu0 %v2733
    %2743 = vmatmul.bf16.gmra.mxu0 %v2727
    %v2744 = vpop.f32.mrf.mxu0
    %v2745 = vadd.f32 0.0, %v2744
    %v2746 = vpop.f32.mrf.mxu0
    %v2747 = vadd.f32 0.0, %v2746
    %2748 = vmatmul.bf16.gmra.mxu0 %v2730
    %v2749 = vpop.f32.mrf.mxu0
    %v2750 = vadd.f32 0.0, %v2749
    %v2751 = vpop.f32.mrf.mxu0
    %v2752 = vadd.f32 0.0, %v2751
    %2753 = vdwg.mxu0
    %v2754 = vmul.f32 %v2745, %v842
    %v2755 = vmul.f32 %v2747, %v843
    %v2756 = vmul.f32 %v2750, %v844
    %v2757 = vmul.f32 %v2752, %v845
    %v2758 = vadd.f32 %v2754, %v2755
    %v2759 = vadd.f32 %v2758, %v2756
    %v2760 = vadd.f32 %v2759, %v2757
    %v2761 = vpack.c.bf16 %v2760, %v2760
    %s2762 = scalar_lea.vmem [#allocation15], 192
    %v2763 = vld [vmem:[%s2762] sm:$0xf]
    %v2764 = vld [vmem:[%s2762 + $0x4] sm:$0xf]
    %v2765 = vld [vmem:[%s2762 + $0x8] sm:$0xf]
    %v2766 = vld [vmem:[%s2762 + $0xc] sm:$0xf]
    %v2767 = vld [vmem:[%s2762 + $0x10] sm:$0xf]
    %v2768 = vld [vmem:[%s2762 + $0x14] sm:$0xf]
    %v2769 = vld [vmem:[%s2762 + $0x18] sm:$0xf]
    %v2770 = vld [vmem:[%s2762 + $0x1c] sm:$0xf]
    %v2771 = vld [vmem:[%s2762 + $0x20] sm:$0xf]
    %v2772 = vld [vmem:[%s2762 + $0x24] sm:$0xf]
    %v2773 = vld [vmem:[%s2762 + $0x28] sm:$0xf]
    %v2774 = vld [vmem:[%s2762 + $0x2c] sm:$0xf]
    %v2775 = vld [vmem:[%s2762 + $0x30] sm:$0xf]
    %v2776 = vld [vmem:[%s2762 + $0x34] sm:$0xf]
    %v2777 = vld [vmem:[%s2762 + $0x38] sm:$0xf]
    %v2778 = vld [vmem:[%s2762 + $0x3c] sm:$0xf]
    %s2779 = scalar_lea.vmem %s11, 3
    %v2780 = vld [vmem:[%s2779] sm:$0x1]
    %v2782 = vperm.slane %v2780, 0
    %v2800 = vunpack.c.l.b16 %v2763
    %v2801 = vunpack.c.l.b16 %v2764
    %v2802 = vunpack.c.l.b16 %v2765
    %v2803 = vunpack.c.l.b16 %v2766
    %v2804 = vunpack.c.l.b16 %v2767
    %v2805 = vunpack.c.l.b16 %v2768
    %v2806 = vunpack.c.l.b16 %v2769
    %v2807 = vunpack.c.l.b16 %v2770
    %v2808 = vunpack.c.l.b16 %v2771
    %v2809 = vunpack.c.l.b16 %v2772
    %v2810 = vunpack.c.l.b16 %v2773
    %v2811 = vunpack.c.l.b16 %v2774
    %v2812 = vunpack.c.l.b16 %v2775
    %v2813 = vunpack.c.l.b16 %v2776
    %v2814 = vunpack.c.l.b16 %v2777
    %v2815 = vunpack.c.l.b16 %v2778
    %v2816 = vpack.c.b16 %v2801, %v2800
    %v2817 = vpack.c.b16 %v2803, %v2802
    %v2818 = vpack.c.b16 %v2805, %v2804
    %v2819 = vpack.c.b16 %v2807, %v2806
    %v2820 = vpack.c.b16 %v2809, %v2808
    %v2821 = vpack.c.b16 %v2811, %v2810
    %v2822 = vpack.c.b16 %v2813, %v2812
    %v2823 = vpack.c.b16 %v2815, %v2814
    %2832 = vmatpush.bf16.msra.mxu0 %v2823
    %2833 = vmatpush.bf16.msra.mxu0 %v2822
    %2834 = vmatpush.bf16.msra.mxu0 %v2821
    %2835 = vmatpush.bf16.msra.mxu0 %v2820
    %2836 = vmatpush.bf16.msra.mxu0 %v2819
    %2837 = vmatpush.bf16.msra.mxu0 %v2818
    %2838 = vmatpush.bf16.msra.mxu0 %v2817
    %2839 = vmatpush.bf16.msra.mxu0 %v2816
    %2840 = vmatmul.bf16.gmra.mxu0 %v2761
    %v2841 = vpop.f32.mrf.mxu0
    %v2842 = vadd.f32 %v2782, %v2841
    %v2843 = vpop.f32.mrf.mxu0
    %2844 = vdwg.mxu0
    %v2845 = vadd.f32 %v2442, %v2842
    %s2846 = scalar_lea.vmem [#allocation17], 3
    %v2847 = vld [vmem:[%s2846] sm:$0x1]
    %s2848 = scalar_lea.vmem %s13, 3
    %v2849 = vld [vmem:[%s2848] sm:$0x1]
    %2850 = vadd.xlane.f32.xlu0 %v2845
    %v2851 = vpop.xlane.xlu0 %2850
    %v2852 = vmul.f32 %v2851, %v946
    %v2853 = vsub.f32 %v2845, %v2852
    %v2854 = vmul.f32 %v2853, %v2853
    %2855 = vadd.xlane.f32.xlu0 %v2854
    %v2856 = vpop.xlane.xlu0 %2855
    %v2857 = vmul.f32 %v2856, %v946
    %v2858 = vadd.f32 %v2857, 1e-05
    %v2859 = vrsqrt.pop %v2858
    %v2860 = vmul.f32 %v2859, %v2858
    %v2861 = vmul.f32 %v2860, %v2859
    %v2862 = vmul.f32 0.5, %v2861
    %v2863 = vsub.f32 1.5, %v2862
    %v2864 = vmul.f32 %v2859, %v2863
    %vm2865 = vweird.f32 %v2858
    %vm2866 = vweird.f32 %v2859
    %vm2867 = vmor %vm2865, %vm2866
    %v2868 = vsel %vm2867, %v2859, %v2864
    %v2869 = vmul.f32 %v2853, %v2868
    %v2871 = vperm.slane %v2847, 0
    %v2873 = vmul.f32 %v2869, %v2871
    %v2875 = vperm.slane %v2849, 0
    %v2877 = vadd.f32 %v2873, %v2875
    %v2878 = vpack.c.bf16 %v2877, %v2877
    %s2879 = scalar_lea.vmem [#allocation18], 192
    %v2880 = vld [vmem:[%s2879] sm:$0xf]
    %v2881 = vld [vmem:[%s2879 + $0x4] sm:$0xf]
    %v2882 = vld [vmem:[%s2879 + $0x8] sm:$0xf]
    %v2883 = vld [vmem:[%s2879 + $0xc] sm:$0xf]
    %v2884 = vld [vmem:[%s2879 + $0x10] sm:$0xf]
    %v2885 = vld [vmem:[%s2879 + $0x14] sm:$0xf]
    %v2886 = vld [vmem:[%s2879 + $0x18] sm:$0xf]
    %v2887 = vld [vmem:[%s2879 + $0x1c] sm:$0xf]
    %v2888 = vld [vmem:[%s2879 + $0x20] sm:$0xf]
    %v2889 = vld [vmem:[%s2879 + $0x24] sm:$0xf]
    %v2890 = vld [vmem:[%s2879 + $0x28] sm:$0xf]
    %v2891 = vld [vmem:[%s2879 + $0x2c] sm:$0xf]
    %v2892 = vld [vmem:[%s2879 + $0x30] sm:$0xf]
    %v2893 = vld [vmem:[%s2879 + $0x34] sm:$0xf]
    %v2894 = vld [vmem:[%s2879 + $0x38] sm:$0xf]
    %v2895 = vld [vmem:[%s2879 + $0x3c] sm:$0xf]
    %s2896 = scalar_lea.vmem [#allocation20], 3
    %v2897 = vld [vmem:[%s2896] sm:$0x1]
    %v2899 = vperm.slane %v2897, 0
    %v2917 = vunpack.c.l.b16 %v2880
    %v2918 = vunpack.c.l.b16 %v2881
    %v2919 = vunpack.c.l.b16 %v2882
    %v2920 = vunpack.c.l.b16 %v2883
    %v2921 = vunpack.c.l.b16 %v2884
    %v2922 = vunpack.c.l.b16 %v2885
    %v2923 = vunpack.c.l.b16 %v2886
    %v2924 = vunpack.c.l.b16 %v2887
    %v2925 = vunpack.c.l.b16 %v2888
    %v2926 = vunpack.c.l.b16 %v2889
    %v2927 = vunpack.c.l.b16 %v2890
    %v2928 = vunpack.c.l.b16 %v2891
    %v2929 = vunpack.c.l.b16 %v2892
    %v2930 = vunpack.c.l.b16 %v2893
    %v2931 = vunpack.c.l.b16 %v2894
    %v2932 = vunpack.c.l.b16 %v2895
    %v2933 = vpack.c.b16 %v2918, %v2917
    %v2934 = vpack.c.b16 %v2920, %v2919
    %v2935 = vpack.c.b16 %v2922, %v2921
    %v2936 = vpack.c.b16 %v2924, %v2923
    %v2937 = vpack.c.b16 %v2926, %v2925
    %v2938 = vpack.c.b16 %v2928, %v2927
    %v2939 = vpack.c.b16 %v2930, %v2929
    %v2940 = vpack.c.b16 %v2932, %v2931
    %2949 = vmatpush.bf16.msra.mxu0 %v2940
    %2950 = vmatpush.bf16.msra.mxu0 %v2939
    %2951 = vmatpush.bf16.msra.mxu0 %v2938
    %2952 = vmatpush.bf16.msra.mxu0 %v2937
    %2953 = vmatpush.bf16.msra.mxu0 %v2936
    %2954 = vmatpush.bf16.msra.mxu0 %v2935
    %2955 = vmatpush.bf16.msra.mxu0 %v2934
    %2956 = vmatpush.bf16.msra.mxu0 %v2933
    %2957 = vmatmul.bf16.gmra.mxu0 %v2878
    %v2958 = vpop.f32.mrf.mxu0
    %v2959 = vadd.f32 %v2899, %v2958
    %v2960 = vpop.f32.mrf.mxu0
    %2961 = vdwg.mxu0
    %v2962 = vmax.f32 %v2959, 0.0
    %v2963 = vpack.c.bf16 %v2962, %v2962
    %s2964 = scalar_lea.vmem [#allocation21], 192
    %v2965 = vld [vmem:[%s2964] sm:$0xf]
    %v2966 = vld [vmem:[%s2964 + $0x4] sm:$0xf]
    %v2967 = vld [vmem:[%s2964 + $0x8] sm:$0xf]
    %v2968 = vld [vmem:[%s2964 + $0xc] sm:$0xf]
    %v2969 = vld [vmem:[%s2964 + $0x10] sm:$0xf]
    %v2970 = vld [vmem:[%s2964 + $0x14] sm:$0xf]
    %v2971 = vld [vmem:[%s2964 + $0x18] sm:$0xf]
    %v2972 = vld [vmem:[%s2964 + $0x1c] sm:$0xf]
    %v2973 = vld [vmem:[%s2964 + $0x20] sm:$0xf]
    %v2974 = vld [vmem:[%s2964 + $0x24] sm:$0xf]
    %v2975 = vld [vmem:[%s2964 + $0x28] sm:$0xf]
    %v2976 = vld [vmem:[%s2964 + $0x2c] sm:$0xf]
    %v2977 = vld [vmem:[%s2964 + $0x30] sm:$0xf]
    %v2978 = vld [vmem:[%s2964 + $0x34] sm:$0xf]
    %v2979 = vld [vmem:[%s2964 + $0x38] sm:$0xf]
    %v2980 = vld [vmem:[%s2964 + $0x3c] sm:$0xf]
    %s2981 = scalar_lea.vmem %s17, 3
    %v2982 = vld [vmem:[%s2981] sm:$0x1]
    %v2984 = vperm.slane %v2982, 0
    %v3002 = vunpack.c.l.b16 %v2965
    %v3003 = vunpack.c.l.b16 %v2966
    %v3004 = vunpack.c.l.b16 %v2967
    %v3005 = vunpack.c.l.b16 %v2968
    %v3006 = vunpack.c.l.b16 %v2969
    %v3007 = vunpack.c.l.b16 %v2970
    %v3008 = vunpack.c.l.b16 %v2971
    %v3009 = vunpack.c.l.b16 %v2972
    %v3010 = vunpack.c.l.b16 %v2973
    %v3011 = vunpack.c.l.b16 %v2974
    %v3012 = vunpack.c.l.b16 %v2975
    %v3013 = vunpack.c.l.b16 %v2976
    %v3014 = vunpack.c.l.b16 %v2977
    %v3015 = vunpack.c.l.b16 %v2978
    %v3016 = vunpack.c.l.b16 %v2979
    %v3017 = vunpack.c.l.b16 %v2980
    %v3018 = vpack.c.b16 %v3003, %v3002
    %v3019 = vpack.c.b16 %v3005, %v3004
    %v3020 = vpack.c.b16 %v3007, %v3006
    %v3021 = vpack.c.b16 %v3009, %v3008
    %v3022 = vpack.c.b16 %v3011, %v3010
    %v3023 = vpack.c.b16 %v3013, %v3012
    %v3024 = vpack.c.b16 %v3015, %v3014
    %v3025 = vpack.c.b16 %v3017, %v3016
    %3034 = vmatpush.bf16.msra.mxu0 %v3025
    %3035 = vmatpush.bf16.msra.mxu0 %v3024
    %3036 = vmatpush.bf16.msra.mxu0 %v3023
    %3037 = vmatpush.bf16.msra.mxu0 %v3022
    %3038 = vmatpush.bf16.msra.mxu0 %v3021
    %3039 = vmatpush.bf16.msra.mxu0 %v3020
    %3040 = vmatpush.bf16.msra.mxu0 %v3019
    %3041 = vmatpush.bf16.msra.mxu0 %v3018
    %3042 = vmatmul.bf16.gmra.mxu0 %v2963
    %v3043 = vpop.f32.mrf.mxu0
    %v3044 = vadd.f32 %v2984, %v3043
    %v3045 = vpop.f32.mrf.mxu0
    %3046 = vdwg.mxu0
    %v3047 = vadd.f32 %v2877, %v3044
    %s3048 = scalar_lea.vmem [#allocation23], 3
    %v3049 = vld [vmem:[%s3048] sm:$0x1]
    %s3050 = scalar_lea.vmem [#allocation24], 3
    %v3051 = vld [vmem:[%s3050] sm:$0x1]
    %3052 = vadd.xlane.f32.xlu0 %v3047
    %v3053 = vpop.xlane.xlu0 %3052
    %v3054 = vmul.f32 %v3053, %v946
    %v3055 = vsub.f32 %v3047, %v3054
    %v3056 = vmul.f32 %v3055, %v3055
    %3057 = vadd.xlane.f32.xlu0 %v3056
    %v3058 = vpop.xlane.xlu0 %3057
    %v3059 = vmul.f32 %v3058, %v946
    %v3060 = vadd.f32 %v3059, 1e-05
    %v3061 = vrsqrt.pop %v3060
    %v3062 = vmul.f32 %v3061, %v3060
    %v3063 = vmul.f32 %v3062, %v3061
    %v3064 = vmul.f32 0.5, %v3063
    %v3065 = vsub.f32 1.5, %v3064
    %v3066 = vmul.f32 %v3061, %v3065
    %vm3067 = vweird.f32 %v3060
    %vm3068 = vweird.f32 %v3061
    %vm3069 = vmor %vm3067, %vm3068
    %v3070 = vsel %vm3069, %v3061, %v3066
    %v3071 = vmul.f32 %v3055, %v3070
    %v3073 = vperm.slane %v3049, 0
    %v3075 = vmul.f32 %v3071, %v3073
    %v3077 = vperm.slane %v3051, 0
    %v3079 = vadd.f32 %v3075, %v3077
    %3080 = vst [vmem:[#allocation2] sm:$0x1] %v3079
    %v3082 = vrot.slane %v3079, 7
    %v3083 = vrot.slane %v3082, 2
    %3085 = vst [vmem:[#allocation2 + $0x2] sm:$0x1] %v3083
    %3086 = vst.sshfl [vmem:[#allocation1] sm:$0xff pattern:$0x73625140] %v3079
    %s3087 = scalar_lea.vmem [#allocation1], 1
    %v3088 = vld [vmem:[%s3087] ss:$4 sm:$0xff]
    %3090 = vst [vmem:[#allocation2 + $0x4] sm:$0x1] %v3088
    %3091 = vst.sshfl [vmem:[#allocation1] sm:$0xff pattern:$0x73625140] %v3079
    %s3092 = scalar_lea.vmem [#allocation1], 1
    %v3093 = vld [vmem:[%s3092] ss:$4 sm:$0xff]
    %v3094 = vrot.slane %v3093, 7
    %v3095 = vrot.slane %v3094, 2
    %3097 = vst [vmem:[#allocation2 + $0x6] sm:$0x1] %v3095
    %3098 = vst.sshfl [vmem:[#allocation1] sm:$0xff pattern:$0x73625140] %v3079
    %s3099 = scalar_lea.vmem [#allocation1], 2
    %v3100 = vld [vmem:[%s3099] ss:$4 sm:$0xff]
    %3102 = vst [vmem:[#allocation2 + $0x1] sm:$0x1] %v3100
    %3103 = vst.sshfl [vmem:[#allocation1] sm:$0xff pattern:$0x73625140] %v3079
    %s3104 = scalar_lea.vmem [#allocation1], 2
    %v3105 = vld [vmem:[%s3104] ss:$4 sm:$0xff]
    %v3106 = vrot.slane %v3105, 7
    %v3107 = vrot.slane %v3106, 2
    %3109 = vst [vmem:[#allocation2 + $0x3] sm:$0x1] %v3107
    %3110 = vst.sshfl [vmem:[#allocation1] sm:$0xff pattern:$0x73625140] %v3079
    %s3111 = scalar_lea.vmem [#allocation1], 3
    %v3112 = vld [vmem:[%s3111] ss:$4 sm:$0xff]
    %3114 = vst [vmem:[#allocation2 + $0x5] sm:$0x1] %v3112
    %3115 = vst.sshfl [vmem:[#allocation1] sm:$0xff pattern:$0x73625140] %v3079
    %s3116 = scalar_lea.vmem [#allocation1], 3
    %v3117 = vld [vmem:[%s3116] ss:$4 sm:$0xff]
    %v3118 = vrot.slane %v3117, 7
    %v3119 = vrot.slane %v3118, 2
    %3121 = vst [vmem:[#allocation2 + $0x7] sm:$0x1] %v3119
    %v3122 = vld [vmem:[#allocation2] sm:$0xff]
    %3124 = vst [vmem:[#allocation1] ss:$4 sm:$0xff] %v3122
    %v3125 = vld.sshfl [vmem:[#allocation1] sm:$0xff pattern:$0x73625140]
    %v3126 = vld.sshfl [vmem:[#allocation1 + $0x8] sm:$0xff pattern:$0x73625140]
    %v3127 = vld.sshfl [vmem:[#allocation1 + $0x10] sm:$0xff pattern:$0x73625140]
    %v3128 = vld.sshfl [vmem:[#allocation1 + $0x18] sm:$0xff pattern:$0x73625140]
    %v3133 = vpack.c.bf16 %v3125, %v3125
    %v3134 = vpack.c.bf16 %v3126, %v3126
    %v3135 = vpack.c.bf16 %v3127, %v3127
    %v3136 = vpack.c.bf16 %v3128, %v3128
    %v3137 = vld [vmem:[#allocation26] sm:$0xf]
    %v3138 = vld [vmem:[#allocation26 + $0x4] sm:$0xf]
    %v3139 = vld [vmem:[#allocation26 + $0x8] sm:$0xf]
    %v3140 = vld [vmem:[#allocation26 + $0xc] sm:$0xf]
    %v3141 = vld [vmem:[#allocation26 + $0x10] sm:$0xf]
    %v3142 = vld [vmem:[#allocation26 + $0x14] sm:$0xf]
    %v3143 = vld [vmem:[#allocation26 + $0x18] sm:$0xf]
    %v3144 = vld [vmem:[#allocation26 + $0x1c] sm:$0xf]
    %v3145 = vld [vmem:[#allocation26 + $0x20] sm:$0xf]
    %v3146 = vld [vmem:[#allocation26 + $0x24] sm:$0xf]
    %v3147 = vld [vmem:[#allocation26 + $0x28] sm:$0xf]
    %v3148 = vld [vmem:[#allocation26 + $0x2c] sm:$0xf]
    %v3149 = vld [vmem:[#allocation26 + $0x30] sm:$0xf]
    %v3150 = vld [vmem:[#allocation26 + $0x34] sm:$0xf]
    %v3151 = vld [vmem:[#allocation26 + $0x38] sm:$0xf]
    %v3152 = vld [vmem:[#allocation26 + $0x3c] sm:$0xf]
    %v3153 = vld [vmem:[#allocation26 + $0x40] sm:$0xf]
    %v3154 = vld [vmem:[#allocation26 + $0x44] sm:$0xf]
    %v3155 = vld [vmem:[#allocation26 + $0x48] sm:$0xf]
    %v3156 = vld [vmem:[#allocation26 + $0x4c] sm:$0xf]
    %v3157 = vld [vmem:[#allocation26 + $0x50] sm:$0xf]
    %v3158 = vld [vmem:[#allocation26 + $0x54] sm:$0xf]
    %v3159 = vld [vmem:[#allocation26 + $0x58] sm:$0xf]
    %v3160 = vld [vmem:[#allocation26 + $0x5c] sm:$0xf]
    %v3161 = vld [vmem:[#allocation26 + $0x60] sm:$0xf]
    %v3162 = vld [vmem:[#allocation26 + $0x64] sm:$0xf]
    %v3163 = vld [vmem:[#allocation26 + $0x68] sm:$0xf]
    %v3164 = vld [vmem:[#allocation26 + $0x6c] sm:$0xf]
    %v3165 = vld [vmem:[#allocation26 + $0x70] sm:$0xf]
    %v3166 = vld [vmem:[#allocation26 + $0x74] sm:$0xf]
    %v3167 = vld [vmem:[#allocation26 + $0x78] sm:$0xf]
    %v3168 = vld [vmem:[#allocation26 + $0x7c] sm:$0xf]
    %v3169 = vld [vmem:[#allocation26 + $0x80] sm:$0xf]
    %v3170 = vld [vmem:[#allocation26 + $0x84] sm:$0xf]
    %v3171 = vld [vmem:[#allocation26 + $0x88] sm:$0xf]
    %v3172 = vld [vmem:[#allocation26 + $0x8c] sm:$0xf]
    %v3173 = vld [vmem:[#allocation26 + $0x90] sm:$0xf]
    %v3174 = vld [vmem:[#allocation26 + $0x94] sm:$0xf]
    %v3175 = vld [vmem:[#allocation26 + $0x98] sm:$0xf]
    %v3176 = vld [vmem:[#allocation26 + $0x9c] sm:$0xf]
    %v3177 = vld [vmem:[#allocation26 + $0xa0] sm:$0xf]
    %v3178 = vld [vmem:[#allocation26 + $0xa4] sm:$0xf]
    %v3179 = vld [vmem:[#allocation26 + $0xa8] sm:$0xf]
    %v3180 = vld [vmem:[#allocation26 + $0xac] sm:$0xf]
    %v3181 = vld [vmem:[#allocation26 + $0xb0] sm:$0xf]
    %v3182 = vld [vmem:[#allocation26 + $0xb4] sm:$0xf]
    %v3183 = vld [vmem:[#allocation26 + $0xb8] sm:$0xf]
    %v3184 = vld [vmem:[#allocation26 + $0xbc] sm:$0xf]
    %v3185 = vld [vmem:[#allocation26 + $0xc0] sm:$0xf]
    %v3186 = vld [vmem:[#allocation26 + $0xc4] sm:$0xf]
    %v3187 = vld [vmem:[#allocation26 + $0xc8] sm:$0xf]
    %v3188 = vld [vmem:[#allocation26 + $0xcc] sm:$0xf]
    %v3189 = vld [vmem:[#allocation26 + $0xd0] sm:$0xf]
    %v3190 = vld [vmem:[#allocation26 + $0xd4] sm:$0xf]
    %v3191 = vld [vmem:[#allocation26 + $0xd8] sm:$0xf]
    %v3192 = vld [vmem:[#allocation26 + $0xdc] sm:$0xf]
    %v3193 = vld [vmem:[#allocation26 + $0xe0] sm:$0xf]
    %v3194 = vld [vmem:[#allocation26 + $0xe4] sm:$0xf]
    %v3195 = vld [vmem:[#allocation26 + $0xe8] sm:$0xf]
    %v3196 = vld [vmem:[#allocation26 + $0xec] sm:$0xf]
    %v3197 = vld [vmem:[#allocation26 + $0xf0] sm:$0xf]
    %v3198 = vld [vmem:[#allocation26 + $0xf4] sm:$0xf]
    %v3199 = vld [vmem:[#allocation26 + $0xf8] sm:$0xf]
    %v3200 = vld [vmem:[#allocation26 + $0xfc] sm:$0xf]
    %v3201 = vld [vmem:[%s21] sm:$0x1]
    %v3203 = vperm.slane %v3201, 0
    %v3269 = vunpack.c.l.b16 %v3137
    %v3270 = vunpack.c.l.b16 %v3138
    %v3271 = vunpack.c.l.b16 %v3139
    %v3272 = vunpack.c.l.b16 %v3140
    %v3273 = vunpack.c.l.b16 %v3141
    %v3274 = vunpack.c.l.b16 %v3142
    %v3275 = vunpack.c.l.b16 %v3143
    %v3276 = vunpack.c.l.b16 %v3144
    %v3277 = vunpack.c.l.b16 %v3145
    %v3278 = vunpack.c.l.b16 %v3146
    %v3279 = vunpack.c.l.b16 %v3147
    %v3280 = vunpack.c.l.b16 %v3148
    %v3281 = vunpack.c.l.b16 %v3149
    %v3282 = vunpack.c.l.b16 %v3150
    %v3283 = vunpack.c.l.b16 %v3151
    %v3284 = vunpack.c.l.b16 %v3152
    %v3285 = vunpack.c.l.b16 %v3153
    %v3286 = vunpack.c.l.b16 %v3154
    %v3287 = vunpack.c.l.b16 %v3155
    %v3288 = vunpack.c.l.b16 %v3156
    %v3289 = vunpack.c.l.b16 %v3157
    %v3290 = vunpack.c.l.b16 %v3158
    %v3291 = vunpack.c.l.b16 %v3159
    %v3292 = vunpack.c.l.b16 %v3160
    %v3293 = vunpack.c.l.b16 %v3161
    %v3294 = vunpack.c.l.b16 %v3162
    %v3295 = vunpack.c.l.b16 %v3163
    %v3296 = vunpack.c.l.b16 %v3164
    %v3297 = vunpack.c.l.b16 %v3165
    %v3298 = vunpack.c.l.b16 %v3166
    %v3299 = vunpack.c.l.b16 %v3167
    %v3300 = vunpack.c.l.b16 %v3168
    %v3301 = vunpack.c.l.b16 %v3169
    %v3302 = vunpack.c.l.b16 %v3170
    %v3303 = vunpack.c.l.b16 %v3171
    %v3304 = vunpack.c.l.b16 %v3172
    %v3305 = vunpack.c.l.b16 %v3173
    %v3306 = vunpack.c.l.b16 %v3174
    %v3307 = vunpack.c.l.b16 %v3175
    %v3308 = vunpack.c.l.b16 %v3176
    %v3309 = vunpack.c.l.b16 %v3177
    %v3310 = vunpack.c.l.b16 %v3178
    %v3311 = vunpack.c.l.b16 %v3179
    %v3312 = vunpack.c.l.b16 %v3180
    %v3313 = vunpack.c.l.b16 %v3181
    %v3314 = vunpack.c.l.b16 %v3182
    %v3315 = vunpack.c.l.b16 %v3183
    %v3316 = vunpack.c.l.b16 %v3184
    %v3317 = vunpack.c.l.b16 %v3185
    %v3318 = vunpack.c.l.b16 %v3186
    %v3319 = vunpack.c.l.b16 %v3187
    %v3320 = vunpack.c.l.b16 %v3188
    %v3321 = vunpack.c.l.b16 %v3189
    %v3322 = vunpack.c.l.b16 %v3190
    %v3323 = vunpack.c.l.b16 %v3191
    %v3324 = vunpack.c.l.b16 %v3192
    %v3325 = vunpack.c.l.b16 %v3193
    %v3326 = vunpack.c.l.b16 %v3194
    %v3327 = vunpack.c.l.b16 %v3195
    %v3328 = vunpack.c.l.b16 %v3196
    %v3329 = vunpack.c.l.b16 %v3197
    %v3330 = vunpack.c.l.b16 %v3198
    %v3331 = vunpack.c.l.b16 %v3199
    %v3332 = vunpack.c.l.b16 %v3200
    %v3333 = vpack.c.b16 %v3270, %v3269
    %v3334 = vpack.c.b16 %v3272, %v3271
    %v3335 = vpack.c.b16 %v3274, %v3273
    %v3336 = vpack.c.b16 %v3276, %v3275
    %v3337 = vpack.c.b16 %v3278, %v3277
    %v3338 = vpack.c.b16 %v3280, %v3279
    %v3339 = vpack.c.b16 %v3282, %v3281
    %v3340 = vpack.c.b16 %v3284, %v3283
    %v3341 = vpack.c.b16 %v3286, %v3285
    %v3342 = vpack.c.b16 %v3288, %v3287
    %v3343 = vpack.c.b16 %v3290, %v3289
    %v3344 = vpack.c.b16 %v3292, %v3291
    %v3345 = vpack.c.b16 %v3294, %v3293
    %v3346 = vpack.c.b16 %v3296, %v3295
    %v3347 = vpack.c.b16 %v3298, %v3297
    %v3348 = vpack.c.b16 %v3300, %v3299
    %v3349 = vpack.c.b16 %v3302, %v3301
    %v3350 = vpack.c.b16 %v3304, %v3303
    %v3351 = vpack.c.b16 %v3306, %v3305
    %v3352 = vpack.c.b16 %v3308, %v3307
    %v3353 = vpack.c.b16 %v3310, %v3309
    %v3354 = vpack.c.b16 %v3312, %v3311
    %v3355 = vpack.c.b16 %v3314, %v3313
    %v3356 = vpack.c.b16 %v3316, %v3315
    %v3357 = vpack.c.b16 %v3318, %v3317
    %v3358 = vpack.c.b16 %v3320, %v3319
    %v3359 = vpack.c.b16 %v3322, %v3321
    %v3360 = vpack.c.b16 %v3324, %v3323
    %v3361 = vpack.c.b16 %v3326, %v3325
    %v3362 = vpack.c.b16 %v3328, %v3327
    %v3363 = vpack.c.b16 %v3330, %v3329
    %v3364 = vpack.c.b16 %v3332, %v3331
    %3397 = vmatpush.bf16.msra.mxu0 %v3340
    %3398 = vmatpush.bf16.msra.mxu0 %v3339
    %3399 = vmatpush.bf16.msra.mxu0 %v3338
    %3400 = vmatpush.bf16.msra.mxu0 %v3337
    %3401 = vmatpush.bf16.msra.mxu0 %v3336
    %3402 = vmatpush.bf16.msra.mxu0 %v3335
    %3403 = vmatpush.bf16.msra.mxu0 %v3334
    %3404 = vmatpush.bf16.msra.mxu0 %v3333
    %3405 = vmatmul.bf16.gmra.mxu0 %v3133
    %v3406 = vpop.f32.mrf.mxu0
    %v3407 = vadd.f32 %v3203, %v3406
    %v3408 = vpop.f32.mrf.mxu0
    %3409 = vdwg.mxu0
    %3410 = vmatpush.bf16.msra.mxu0 %v3348
    %3411 = vmatpush.bf16.msra.mxu0 %v3347
    %3412 = vmatpush.bf16.msra.mxu0 %v3346
    %3413 = vmatpush.bf16.msra.mxu0 %v3345
    %3414 = vmatpush.bf16.msra.mxu0 %v3344
    %3415 = vmatpush.bf16.msra.mxu0 %v3343
    %3416 = vmatpush.bf16.msra.mxu0 %v3342
    %3417 = vmatpush.bf16.msra.mxu0 %v3341
    %3418 = vmatmul.bf16.gmra.mxu0 %v3134
    %v3419 = vpop.f32.mrf.mxu0
    %v3420 = vadd.f32 %v3407, %v3419
    %v3421 = vpop.f32.mrf.mxu0
    %3422 = vdwg.mxu0
    %3423 = vmatpush.bf16.msra.mxu0 %v3356
    %3424 = vmatpush.bf16.msra.mxu0 %v3355
    %3425 = vmatpush.bf16.msra.mxu0 %v3354
    %3426 = vmatpush.bf16.msra.mxu0 %v3353
    %3427 = vmatpush.bf16.msra.mxu0 %v3352
    %3428 = vmatpush.bf16.msra.mxu0 %v3351
    %3429 = vmatpush.bf16.msra.mxu0 %v3350
    %3430 = vmatpush.bf16.msra.mxu0 %v3349
    %3431 = vmatmul.bf16.gmra.mxu0 %v3135
    %v3432 = vpop.f32.mrf.mxu0
    %v3433 = vadd.f32 %v3420, %v3432
    %v3434 = vpop.f32.mrf.mxu0
    %3435 = vdwg.mxu0
    %3436 = vmatpush.bf16.msra.mxu0 %v3364
    %3437 = vmatpush.bf16.msra.mxu0 %v3363
    %3438 = vmatpush.bf16.msra.mxu0 %v3362
    %3439 = vmatpush.bf16.msra.mxu0 %v3361
    %3440 = vmatpush.bf16.msra.mxu0 %v3360
    %3441 = vmatpush.bf16.msra.mxu0 %v3359
    %3442 = vmatpush.bf16.msra.mxu0 %v3358
    %3443 = vmatpush.bf16.msra.mxu0 %v3357
    %3444 = vmatmul.bf16.gmra.mxu0 %v3136
    %v3445 = vpop.f32.mrf.mxu0
    %v3446 = vadd.f32 %v3433, %v3445
    %v3447 = vpop.f32.mrf.mxu0
    %3448 = vdwg.mxu0
    %3449 = vst [vmem:[#allocation27] sm:$0x3] %v3446
    // Predicated region
    $region150: #{tpu_custom_call.1} parent=1 // pred_check
      _
    $region151: #{tpu_custom_call.1} parent=1 // pred_check_branch
      %3451 = sbr.rel (0) target = $region153
    $region152: #{tpu_custom_call.1} parent=1 // pred_region
      %3453 = vsyncadd [#allocation5], 0
      %s3455 = sshll.u32 [#allocation27], 4
      %s3456 = int_to_ptr.vmem [resolvable:$true] %s3455
      %s3457 = sshll.u32 %s22, 4
      %s3458 = int_to_ptr.hbm [resolvable:$true] %s3457
      %3460 = dma.vmem_to_hbm [thread:$0]  %s3456, 32, %s3458, [#allocation5]
    $region153: #{tpu_custom_call.1} parent=1 // pred_fallthru
      _
    // Predicated region
    $region154: #{tpu_custom_call.1} parent=1 // pred_check
      _
    $region155: #{tpu_custom_call.1} parent=1 // pred_check_branch
      %3462 = sbr.rel (0) target = $region157
    $region156: #{tpu_custom_call.1} parent=1 // pred_region
      %3464 = dma.done [#allocation5], 32
    $region157: #{tpu_custom_call.1} parent=1 // pred_fallthru
      _
    %3465 = vsyncpa [#allocation4], 1
    %3466 = vsyncpa [#allocation7], 1
    %3467 = vsyncpa [#allocation10], 1
    %3468 = vsyncpa [#allocation13], 1
    %3469 = vsyncpa [#allocation16], 1
    %3470 = vsyncpa [#allocation19], 1
    %3471 = vsyncpa [#allocation22], 1
    %3472 = vsyncpa [#allocation25], 1
    %3473 = vsyncpa [#allocation5], 1

</llo_original>
